<compile_context>
chip_gen: v7x
topology: tpu7x:2x2x1
jax: 0.10.0
libtpu: 0.0.40
codegen_flags: <defaults>
</compile_context>

<pallas_src>
import math

import numpy as np
import jax
import jax.numpy as jnp
from jax.experimental import pallas as pl
from jax.experimental.pallas import tpu as pltpu

CFG = [8, "M", 8, "M", 16, "M", 16, "M"]
N_CLS = 10
IMG = 16          # input spatial size (16x16 -> features end at 1x1)
B_STEP = 7        # images per grid step: 7*(16+2)=126 rows ~ MXU systolic height
OUT_PAD = 128     # lane-padded logit width -> one unmasked full-width store per step

MU = np.array([0.485, 0.456, 0.406], np.float32)
STD = np.array([0.229, 0.224, 0.225], np.float32)


def _stage_dims(cfg, img):
    # CFG is a strict (conv, 'M') alternation; each stage = conv3x3+ReLU+maxpool2x2.
    convs = [v for v in cfg if v != "M"]
    assert len(convs) * 2 == len(cfg), "expected conv,'M' alternation"
    dims, h, cin = [], img, 3
    for cout in convs:
        assert h % 2 == 0, "spatial size must stay even for 2x2/2 pooling"
        dims.append((h, h, cin, cout))   # (H, W, Cin, Cout) seen by the conv
        h //= 2
        cin = cout
    return dims


STAGES = _stage_dims(CFG, IMG)   # [(16,16,3,8), (8,8,8,8), (4,4,8,16), (2,2,16,16)]
# The channel-fastest feature flatten only matches PyTorch's NCHW flatten because the
# final feature map is 1x1 after the last pool.
assert STAGES[-1][0] == 2 and STAGES[-1][1] == 2, "final feature map must be 1x1"


# ---------------------------------------------------------------------------
# Fused kernel: one grid step == B_STEP images end-to-end.
# Activation layout: rows = images stacked along sublanes with per-image zero border
# rows; columns = W*C with channel fastest on the lane dim.
# ---------------------------------------------------------------------------
def _vgg_kernel(x_ref,
                m0, b0, s0, m1, b1, s1, m2, b2, s2, m3, b3, s3,
                w1, c1, w2, c2, w3, c3,
                out_ref,
                xp1, xp2, xp3):
    ms = (m0, m1, m2, m3)
    bs = (b0, b1, b2, b3)
    sels = (s0, s1, s2, s3)
    xps = (x_ref, xp1, xp2, xp3)      # stage inputs (stage 0 reads its input block directly)
    nxts = (xp1, xp2, xp3, None)      # stage outputs (None -> classifier features)

    feat = None
    for st, (H, W, Cin, Cout) in enumerate(STAGES):
        xp = xps[st]
        R = xp.shape[0]               # B*(H+2) padded rows
        m, b, sel = ms[st], bs[st], sels[st]

        # 3x3 conv (+bias +ReLU) = 3 row-shifted MXU matmuls against band matrices.
        # Valid output rows for image i sit at global indices i*(H+2)+r; the two rows per
        # image that straddle the zero borders are garbage and are skipped by `sel` below.
        acc = jnp.dot(xp[0:R - 2, :], m[0], preferred_element_type=jnp.float32)
        acc = acc + jnp.dot(xp[1:R - 1, :], m[1], preferred_element_type=jnp.float32)
        acc = acc + jnp.dot(xp[2:R, :], m[2], preferred_element_type=jnp.float32)
        y = jnp.maximum(acc + b[...], 0.0)                        # (R-2, W*Cout)

        # 2x2/2 maxpool, horizontal half: one lane-shifted max; pooled column j now lives
        # in channel-group 2j (odd groups are garbage but are never read downstream).
        hmax = jnp.maximum(y[:, :(W - 1) * Cout], y[:, Cout:])    # (R-2, (W-1)*Cout)

        # Vertical half + row scatter: two constant 0/1 selection matmuls pick the even /
        # odd rows of each image's pool windows (skipping the cross-image garbage rows)
        # and place each image's pooled rows into the next stage's zero-bordered slots
        # (border rows are written as exact zeros -> no memsets anywhere).
        pooled = jnp.maximum(
            jnp.dot(sel[0], hmax, preferred_element_type=jnp.float32),
            jnp.dot(sel[1], hmax, preferred_element_type=jnp.float32))
        if nxts[st] is not None:
            nxts[st][...] = pooled                                # one full-buffer store
        else:
            feat = pooled                                         # (B, Cout) 1x1 features

    # Classifier: Linear-ReLU-Linear-ReLU-Linear on the (B, n_out) feature slab.
    # fc3 is lane-padded to 128 outputs -> a single unmasked full-width output store.
    h = jnp.maximum(jnp.dot(feat, w1[...], preferred_element_type=jnp.float32) + c1[...], 0.0)
    h = jnp.maximum(jnp.dot(h, w2[...], preferred_element_type=jnp.float32) + c2[...], 0.0)
    out_ref[...] = jnp.dot(h, w3[...], preferred_element_type=jnp.float32) + c3[...]


# ---------------------------------------------------------------------------
# Host-side one-time parameter repacking.
# ---------------------------------------------------------------------------
def _build_band_matrices(w_hwio, W, stage0):
    """M[kh] maps one padded activation row to one conv-output row:
         conv = sum_kh  rows[kh : kh+H, :] @ M[kh]
    Stage 0 reads the explicitly zero-padded image layout ((W+2)*Cin columns).
    Stages >=1 read the previous stage's un-compacted horizontal-max buffer: pooled
    spatial column c lives at column group 2c, and the spatial zero-padding columns are
    folded in by simply omitting those (zero) contributions."""
    _, _, cin, cout = w_hwio.shape
    w = np.asarray(w_hwio, np.float32)
    if stage0:
        in_cols = (W + 2) * cin
        col_of = lambda c: (c + 1) * cin          # borders exist (and hold zeros)
        present = lambda c: True
    else:
        in_cols = (2 * W - 1) * cin
        col_of = lambda c: 2 * c * cin            # even groups of the un-compacted buffer
        present = lambda c: 0 <= c < W
    m = np.zeros((3, in_cols, W * cout), np.float32)
    for kh in range(3):
        for kw in range(3):
            for j in range(W):
                c = j + kw - 1
                if not present(c):
                    continue
                m[kh, col_of(c):col_of(c) + cin, j * cout:(j + 1) * cout] = w[kh, kw]
    return jnp.asarray(m)


def _build_pool_select(H, B):
    """S[p, i*(H//2+2)+1+t, i*(H+2)+2t+p] = 1 (p in {0,1}): picks the two conv rows of each
    2x2 pool window per image, skips garbage cross-image rows, and scatters the pooled row
    into the next stage's padded-row slot (zeroing its borders)."""
    Hn = H // 2
    S = np.zeros((2, B * (Hn + 2), B * (H + 2) - 2), np.float32)
    for i in range(B):
        for t in range(Hn):
            S[0, i * (Hn + 2) + 1 + t, i * (H + 2) + 2 * t] = 1.0
            S[1, i * (Hn + 2) + 1 + t, i * (H + 2) + 2 * t + 1] = 1.0
    return jnp.asarray(S)


def _build_feat_select(H, B):
    """Final stage (H//2 == 1): pick the single pooled row of each image."""
    S = np.zeros((2, B, B * (H + 2) - 2), np.float32)
    for i in range(B):
        S[0, i, i * (H + 2)] = 1.0
        S[1, i, i * (H + 2) + 1] = 1.0
    return jnp.asarray(S)


def prepare_vgg(params, batch_per_step=B_STEP):
    """Repack PyTorch-style params into the fused-kernel operands (runs once on host)."""
    B = batch_per_step
    prep = {"conv_m": [], "conv_b": [], "sel": [], "fc": []}
    for s, ((w, b), (H, W, Cin, Cout)) in enumerate(zip(params["convs"], STAGES)):
        prep["conv_m"].append(_build_band_matrices(w, W, stage0=(s == 0)))
        prep["conv_b"].append(jnp.asarray(np.tile(np.asarray(b, np.float32), W)[None, :]))
        if s + 1 < len(STAGES):
            prep["sel"].append(_build_pool_select(H, B))
        else:
            prep["sel"].append(_build_feat_select(H, B))
    (w1, b1), (w2, b2), (w3, b3) = params["fcs"]
    # Lane-pad the last Linear to 128 outputs so the final store is full-width.
    w3p = np.zeros((w3.shape[0], OUT_PAD), np.float32)
    w3p[:, :w3.shape[1]] = np.asarray(w3, np.float32)
    b3p = np.zeros((1, OUT_PAD), np.float32)
    b3p[0, :b3.shape[0]] = np.asarray(b3, np.float32)
    prep["fc"] = [
        (jnp.asarray(np.asarray(w1, np.float32)), jnp.asarray(np.asarray(b1, np.float32)[None, :])),
        (jnp.asarray(np.asarray(w2, np.float32)), jnp.asarray(np.asarray(b2, np.float32)[None, :])),
        (jnp.asarray(w3p), jnp.asarray(b3p)),
    ]
    return prep


def prepare_input(x_nchw, B=B_STEP):
    """NCHW -> normalized, zero-bordered, per-step stacked layout:
    (steps, B*(H+2), (W+2)*3), channel fastest on lanes.  One fused XLA pass over the
    input (layout + normalization); hoist upstream if inputs are reused across calls."""
    N = x_nchw.shape[0]
    steps = -(-N // B)
    x = jnp.transpose(x_nchw.astype(jnp.float32), (0, 2, 3, 1))          # NHWC
    x = (x - jnp.asarray(MU)) * jnp.asarray(1.0 / STD)                   # normalize
    x = x.reshape(N, IMG, IMG * 3)
    if steps * B != N:
        x = jnp.pad(x, ((0, steps * B - N), (0, 0), (0, 0)))             # pad batch
    x = jnp.pad(x, ((0, 0), (1, 1), (3, 3)))                             # zero H/W borders
    return x.reshape(steps, B * (IMG + 2), (IMG + 2) * 3)


# ---------------------------------------------------------------------------
# Forward pass (single pallas_call).
# ---------------------------------------------------------------------------
def vgg_forward(prep, x_nchw):
    B = B_STEP
    N = x_nchw.shape[0]
    x_steps = prepare_input(x_nchw, B)
    steps = x_steps.shape[0]          # keep >= 2 when possible so both v7x TCs get work

    def const_spec(shape):
        nd = len(shape)
        return pl.BlockSpec(shape, lambda i, _nd=nd: (0,) * _nd)

    in_specs = [pl.BlockSpec((None,) + tuple(x_steps.shape[1:]), lambda i: (i, 0, 0))]
    operands = [x_steps]
    for m, b, s in zip(prep["conv_m"], prep["conv_b"], prep["sel"]):
        in_specs += [const_spec(m.shape), const_spec(b.shape), const_spec(s.shape)]
        operands += [m, b, s]
    for w, b in prep["fc"]:
        in_specs += [const_spec(w.shape), const_spec(b.shape)]
        operands += [w, b]

    # Next-stage padded activation buffers (stage 0 uses the input block directly).
    scratch = [pltpu.VMEM((B * (H // 2 + 2), (W - 1) * Cout), jnp.float32)
               for (H, W, Cin, Cout) in STAGES[:-1]]

    out = pl.pallas_call(
        _vgg_kernel,
        grid=(steps,),
        in_specs=in_specs,
        out_specs=pl.BlockSpec((None, B, OUT_PAD), lambda i: (i, 0, 0)),
        out_shape=jax.ShapeDtypeStruct((steps, B, OUT_PAD), jnp.float32),
        scratch_shapes=scratch,
        compiler_params=pltpu.CompilerParams(dimension_semantics=("parallel",)),
    )(*operands)
    return out.reshape(steps * B, OUT_PAD)[:N, :N_CLS]
    # TODO(synk): half_prec flag of the original module is ignored (fp32 only).


# ---------------------------------------------------------------------------
# Parameter init (matches the PyTorch __init__ shapes/scheme) + pure-JAX reference.
# ---------------------------------------------------------------------------
def init_vgg_params(key, cfg, n_cls):
    params = {"convs": [], "fcs": []}
    in_ch = 3
    for v in cfg:
        if v == "M":
            continue
        key, kw = jax.random.split(key)
        n = 3 * 3 * v  # kernel_size[0]*kernel_size[1]*out_channels
        w = jax.random.normal(kw, (3, 3, in_ch, v), jnp.float32) * math.sqrt(2.0 / n)
        b = jnp.zeros((v,), jnp.float32)
        params["convs"].append((w, b))
        in_ch = v
    n_out = cfg[-2]
    for fin, fout in [(n_out, n_out), (n_out, n_out), (n_out, n_cls)]:
        key, k1, k2 = jax.random.split(key, 3)
        bound = 1.0 / math.sqrt(fin)          # ~ PyTorch default Linear init
        w = jax.random.uniform(k1, (fin, fout), jnp.float32, -bound, bound)
        b = jax.random.uniform(k2, (fout,), jnp.float32, -bound, bound)
        params["fcs"].append((w, b))
    return params


def vgg_reference(params, x_nchw):
    hp = jax.lax.Precision.HIGHEST
    x = jnp.transpose(x_nchw, (0, 2, 3, 1)).astype(jnp.float32)
    x = (x - jnp.asarray(MU)) / jnp.asarray(STD)
    ci = 0
    for v in CFG:
        if v == "M":
            x = jax.lax.reduce_window(x, -jnp.inf, jax.lax.max,
                                      (1, 2, 2, 1), (1, 2, 2, 1), "VALID")
        else:
            w, b = params["convs"][ci]; ci += 1
            x = jax.lax.conv_general_dilated(
                x, w, (1, 1), "SAME",
                dimension_numbers=("NHWC", "HWIO", "NHWC"), precision=hp) + b
            x = jnp.maximum(x, 0.0)
    x = jnp.transpose(x, (0, 3, 1, 2)).reshape(x.shape[0], -1)
    for li, (w, b) in enumerate(params["fcs"]):
        x = jnp.dot(x, w, precision=hp) + b
        if li < len(params["fcs"]) - 1:
            x = jnp.maximum(x, 0.0)
    return x


if __name__ == "__main__":
    key = jax.random.PRNGKey(0)
    kx, kp = jax.random.split(key)
    # 14 3-channel 16x16 images in [0, 1]: 2 grid steps of B_STEP=7 images each.
    N = 2 * B_STEP
    x = jax.random.uniform(kx, (N, 3, IMG, IMG), dtype=jnp.float32)
    params = init_vgg_params(kp, CFG, N_CLS)
    prep = prepare_vgg(params)                       # one-time host-side repack

    fwd = jax.jit(vgg_forward)
    out = fwd(prep, x)
    jax.block_until_ready(out)

    assert out.shape == (N, N_CLS), out.shape
    assert out.dtype == jnp.float32
    ref = vgg_reference(params, x)
    err = float(jnp.max(jnp.abs(out - ref)))
    # Tightened from 5e-2; headroom covers MXU default-precision (bf16-pass) rounding
    # while still catching an accidental low-precision regression in storage dtypes.
    assert err < 1e-2, f"max abs err vs reference: {err}"
    print("KERNEL_OK")
</pallas_src>

<mosaic_0001>
module attributes {stable_mosaic.version = 11 : i64} {
  func.func @_vgg_kernel(%arg0: i32, %arg1: memref<1x126x54xf32, #tpu.memory_space<vmem>>, %arg2: memref<3x54x128xf32, #tpu.memory_space<vmem>>, %arg3: memref<1x128xf32, #tpu.memory_space<vmem>>, %arg4: memref<2x70x124xf32, #tpu.memory_space<vmem>>, %arg5: memref<3x120x64xf32, #tpu.memory_space<vmem>>, %arg6: memref<1x64xf32, #tpu.memory_space<vmem>>, %arg7: memref<2x42x68xf32, #tpu.memory_space<vmem>>, %arg8: memref<3x56x64xf32, #tpu.memory_space<vmem>>, %arg9: memref<1x64xf32, #tpu.memory_space<vmem>>, %arg10: memref<2x28x40xf32, #tpu.memory_space<vmem>>, %arg11: memref<3x48x32xf32, #tpu.memory_space<vmem>>, %arg12: memref<1x32xf32, #tpu.memory_space<vmem>>, %arg13: memref<2x7x26xf32, #tpu.memory_space<vmem>>, %arg14: memref<16x16xf32, #tpu.memory_space<vmem>>, %arg15: memref<1x16xf32, #tpu.memory_space<vmem>>, %arg16: memref<16x16xf32, #tpu.memory_space<vmem>>, %arg17: memref<1x16xf32, #tpu.memory_space<vmem>>, %arg18: memref<16x128xf32, #tpu.memory_space<vmem>>, %arg19: memref<1x128xf32, #tpu.memory_space<vmem>>, %arg20: memref<1x7x128xf32, #tpu.memory_space<vmem>>, %arg21: memref<70x120xf32, #tpu.memory_space<vmem>>, %arg22: memref<42x56xf32, #tpu.memory_space<vmem>>, %arg23: memref<28x48xf32, #tpu.memory_space<vmem>>) attributes {dimension_semantics = [#tpu.dimension_semantics<parallel>], iteration_bounds = array<i64: 2>, scalar_prefetch = 0 : i64, scratch_operands = 3 : i64, tpu.core_type = #tpu.core_type<tc>, window_params = [{transform_indices = @transform_0, window_bounds = array<i64: 1, 126, 54>}, {pipeline_mode = #tpu.pipeline_mode<synchronous>, transform_indices = @transform_1, window_bounds = array<i64: 3, 54, 128>}, {pipeline_mode = #tpu.pipeline_mode<synchronous>, transform_indices = @transform_2, window_bounds = array<i64: 1, 128>}, {pipeline_mode = #tpu.pipeline_mode<synchronous>, transform_indices = @transform_3, window_bounds = array<i64: 2, 70, 124>}, {pipeline_mode = #tpu.pipeline_mode<synchronous>, transform_indices = @transform_4, window_bounds = array<i64: 3, 120, 64>}, {pipeline_mode = #tpu.pipeline_mode<synchronous>, transform_indices = @transform_5, window_bounds = array<i64: 1, 64>}, {pipeline_mode = #tpu.pipeline_mode<synchronous>, transform_indices = @transform_6, window_bounds = array<i64: 2, 42, 68>}, {pipeline_mode = #tpu.pipeline_mode<synchronous>, transform_indices = @transform_7, window_bounds = array<i64: 3, 56, 64>}, {pipeline_mode = #tpu.pipeline_mode<synchronous>, transform_indices = @transform_8, window_bounds = array<i64: 1, 64>}, {pipeline_mode = #tpu.pipeline_mode<synchronous>, transform_indices = @transform_9, window_bounds = array<i64: 2, 28, 40>}, {pipeline_mode = #tpu.pipeline_mode<synchronous>, transform_indices = @transform_10, window_bounds = array<i64: 3, 48, 32>}, {pipeline_mode = #tpu.pipeline_mode<synchronous>, transform_indices = @transform_11, window_bounds = array<i64: 1, 32>}, {pipeline_mode = #tpu.pipeline_mode<synchronous>, transform_indices = @transform_12, window_bounds = array<i64: 2, 7, 26>}, {pipeline_mode = #tpu.pipeline_mode<synchronous>, transform_indices = @transform_13, window_bounds = array<i64: 16, 16>}, {pipeline_mode = #tpu.pipeline_mode<synchronous>, transform_indices = @transform_14, window_bounds = array<i64: 1, 16>}, {pipeline_mode = #tpu.pipeline_mode<synchronous>, transform_indices = @transform_15, window_bounds = array<i64: 16, 16>}, {pipeline_mode = #tpu.pipeline_mode<synchronous>, transform_indices = @transform_16, window_bounds = array<i64: 1, 16>}, {pipeline_mode = #tpu.pipeline_mode<synchronous>, transform_indices = @transform_17, window_bounds = array<i64: 16, 128>}, {pipeline_mode = #tpu.pipeline_mode<synchronous>, transform_indices = @transform_18, window_bounds = array<i64: 1, 128>}, {transform_indices = @transform_19, window_bounds = array<i64: 1, 7, 128>}]} {
    %c0 = arith.constant 0 : index
    %c0_0 = arith.constant 0 : index
    %c0_1 = arith.constant 0 : index
    %0 = vector.load %arg1[%c0, %c0_0, %c0_1] : memref<1x126x54xf32, #tpu.memory_space<vmem>>, vector<1x124x54xf32>
    %1 = vector.shape_cast %0 : vector<1x124x54xf32> to vector<124x54xf32>
    %c0_2 = arith.constant 0 : index
    %c0_3 = arith.constant 0 : index
    %c0_4 = arith.constant 0 : index
    %2 = vector.load %arg2[%c0_2, %c0_3, %c0_4] : memref<3x54x128xf32, #tpu.memory_space<vmem>>, vector<1x54x128xf32>
    %3 = vector.shape_cast %2 : vector<1x54x128xf32> to vector<54x128xf32>
    %cst = arith.constant dense<0.000000e+00> : vector<124x128xf32>
    %4 = tpu.matmul %1, %3, %cst {dimension_numbers = #tpu.dot_dimension_numbers<[1], [0], [0], [1], [0, 0, 1, 1], [], []>} : vector<124x54xf32>, vector<54x128xf32>, vector<124x128xf32> -> vector<124x128xf32>
    %c0_5 = arith.constant 0 : index
    %c1 = arith.constant 1 : index
    %c0_6 = arith.constant 0 : index
    %5 = vector.load %arg1[%c0_5, %c1, %c0_6] : memref<1x126x54xf32, #tpu.memory_space<vmem>>, vector<1x124x54xf32>
    %6 = vector.shape_cast %5 : vector<1x124x54xf32> to vector<124x54xf32>
    %c1_7 = arith.constant 1 : index
    %c0_8 = arith.constant 0 : index
    %c0_9 = arith.constant 0 : index
    %7 = vector.load %arg2[%c1_7, %c0_8, %c0_9] : memref<3x54x128xf32, #tpu.memory_space<vmem>>, vector<1x54x128xf32>
    %8 = vector.shape_cast %7 : vector<1x54x128xf32> to vector<54x128xf32>
    %cst_10 = arith.constant dense<0.000000e+00> : vector<124x128xf32>
    %9 = tpu.matmul %6, %8, %cst_10 {dimension_numbers = #tpu.dot_dimension_numbers<[1], [0], [0], [1], [0, 0, 1, 1], [], []>} : vector<124x54xf32>, vector<54x128xf32>, vector<124x128xf32> -> vector<124x128xf32>
    %10 = arith.addf %4, %9 : vector<124x128xf32>
    %c0_11 = arith.constant 0 : index
    %c2 = arith.constant 2 : index
    %c0_12 = arith.constant 0 : index
    %11 = vector.load %arg1[%c0_11, %c2, %c0_12] : memref<1x126x54xf32, #tpu.memory_space<vmem>>, vector<1x124x54xf32>
    %12 = vector.shape_cast %11 : vector<1x124x54xf32> to vector<124x54xf32>
    %c2_13 = arith.constant 2 : index
    %c0_14 = arith.constant 0 : index
    %c0_15 = arith.constant 0 : index
    %13 = vector.load %arg2[%c2_13, %c0_14, %c0_15] : memref<3x54x128xf32, #tpu.memory_space<vmem>>, vector<1x54x128xf32>
    %14 = vector.shape_cast %13 : vector<1x54x128xf32> to vector<54x128xf32>
    %cst_16 = arith.constant dense<0.000000e+00> : vector<124x128xf32>
    %15 = tpu.matmul %12, %14, %cst_16 {dimension_numbers = #tpu.dot_dimension_numbers<[1], [0], [0], [1], [0, 0, 1, 1], [], []>} : vector<124x54xf32>, vector<54x128xf32>, vector<124x128xf32> -> vector<124x128xf32>
    %16 = arith.addf %10, %15 : vector<124x128xf32>
    %c0_17 = arith.constant 0 : index
    %c0_18 = arith.constant 0 : index
    %17 = vector.load %arg3[%c0_17, %c0_18] : memref<1x128xf32, #tpu.memory_space<vmem>>, vector<1x128xf32>
    %18 = vector.broadcast %17 : vector<1x128xf32> to vector<124x128xf32>
    %19 = arith.addf %16, %18 : vector<124x128xf32>
    %cst_19 = arith.constant 0.000000e+00 : f32
    %20 = vector.broadcast %cst_19 : f32 to vector<124x128xf32>
    %21 = arith.maximumf %19, %20 : vector<124x128xf32>
    %22 = vector.extract_strided_slice %21 {offsets = [0, 0], sizes = [124, 120], strides = [1, 1]} : vector<124x128xf32> to vector<124x120xf32>
    %23 = vector.extract_strided_slice %21 {offsets = [0, 8], sizes = [124, 120], strides = [1, 1]} : vector<124x128xf32> to vector<124x120xf32>
    %24 = arith.maximumf %22, %23 : vector<124x120xf32>
    %c0_20 = arith.constant 0 : index
    %c0_21 = arith.constant 0 : index
    %c0_22 = arith.constant 0 : index
    %25 = vector.load %arg4[%c0_20, %c0_21, %c0_22] : memref<2x70x124xf32, #tpu.memory_space<vmem>>, vector<1x70x124xf32>
    %26 = vector.shape_cast %25 : vector<1x70x124xf32> to vector<70x124xf32>
    %cst_23 = arith.constant dense<0.000000e+00> : vector<70x120xf32>
    %27 = tpu.matmul %26, %24, %cst_23 {dimension_numbers = #tpu.dot_dimension_numbers<[1], [0], [0], [1], [0, 0, 1, 1], [], []>} : vector<70x124xf32>, vector<124x120xf32>, vector<70x120xf32> -> vector<70x120xf32>
    %c1_24 = arith.constant 1 : index
    %c0_25 = arith.constant 0 : index
    %c0_26 = arith.constant 0 : index
    %28 = vector.load %arg4[%c1_24, %c0_25, %c0_26] : memref<2x70x124xf32, #tpu.memory_space<vmem>>, vector<1x70x124xf32>
    %29 = vector.shape_cast %28 : vector<1x70x124xf32> to vector<70x124xf32>
    %cst_27 = arith.constant dense<0.000000e+00> : vector<70x120xf32>
    %30 = tpu.matmul %29, %24, %cst_27 {dimension_numbers = #tpu.dot_dimension_numbers<[1], [0], [0], [1], [0, 0, 1, 1], [], []>} : vector<70x124xf32>, vector<124x120xf32>, vector<70x120xf32> -> vector<70x120xf32>
    %31 = arith.maximumf %27, %30 : vector<70x120xf32>
    %c0_28 = arith.constant 0 : index
    %c0_29 = arith.constant 0 : index
    %32 = vector.load %arg21[%c0_28, %c0_29] : memref<70x120xf32, #tpu.memory_space<vmem>>, vector<70x120xf32>
    tpu.vector_store %arg21[%c0_28, %c0_29], %31 {strides = array<i32>} : memref<70x120xf32, #tpu.memory_space<vmem>>, vector<70x120xf32>,
    %c0_30 = arith.constant 0 : index
    %c0_31 = arith.constant 0 : index
    %33 = vector.load %arg21[%c0_30, %c0_31] : memref<70x120xf32, #tpu.memory_space<vmem>>, vector<68x120xf32>
    %c0_32 = arith.constant 0 : index
    %c0_33 = arith.constant 0 : index
    %c0_34 = arith.constant 0 : index
    %34 = vector.load %arg5[%c0_32, %c0_33, %c0_34] : memref<3x120x64xf32, #tpu.memory_space<vmem>>, vector<1x120x64xf32>
    %35 = vector.shape_cast %34 : vector<1x120x64xf32> to vector<120x64xf32>
    %cst_35 = arith.constant dense<0.000000e+00> : vector<68x64xf32>
    %36 = tpu.matmul %33, %35, %cst_35 {dimension_numbers = #tpu.dot_dimension_numbers<[1], [0], [0], [1], [0, 0, 1, 1], [], []>} : vector<68x120xf32>, vector<120x64xf32>, vector<68x64xf32> -> vector<68x64xf32>
    %c1_36 = arith.constant 1 : index
    %c0_37 = arith.constant 0 : index
    %37 = vector.load %arg21[%c1_36, %c0_37] : memref<70x120xf32, #tpu.memory_space<vmem>>, vector<68x120xf32>
    %c1_38 = arith.constant 1 : index
    %c0_39 = arith.constant 0 : index
    %c0_40 = arith.constant 0 : index
    %38 = vector.load %arg5[%c1_38, %c0_39, %c0_40] : memref<3x120x64xf32, #tpu.memory_space<vmem>>, vector<1x120x64xf32>
    %39 = vector.shape_cast %38 : vector<1x120x64xf32> to vector<120x64xf32>
    %cst_41 = arith.constant dense<0.000000e+00> : vector<68x64xf32>
    %40 = tpu.matmul %37, %39, %cst_41 {dimension_numbers = #tpu.dot_dimension_numbers<[1], [0], [0], [1], [0, 0, 1, 1], [], []>} : vector<68x120xf32>, vector<120x64xf32>, vector<68x64xf32> -> vector<68x64xf32>
    %41 = arith.addf %36, %40 : vector<68x64xf32>
    %c2_42 = arith.constant 2 : index
    %c0_43 = arith.constant 0 : index
    %42 = vector.load %arg21[%c2_42, %c0_43] : memref<70x120xf32, #tpu.memory_space<vmem>>, vector<68x120xf32>
    %c2_44 = arith.constant 2 : index
    %c0_45 = arith.constant 0 : index
    %c0_46 = arith.constant 0 : index
    %43 = vector.load %arg5[%c2_44, %c0_45, %c0_46] : memref<3x120x64xf32, #tpu.memory_space<vmem>>, vector<1x120x64xf32>
    %44 = vector.shape_cast %43 : vector<1x120x64xf32> to vector<120x64xf32>
    %cst_47 = arith.constant dense<0.000000e+00> : vector<68x64xf32>
    %45 = tpu.matmul %42, %44, %cst_47 {dimension_numbers = #tpu.dot_dimension_numbers<[1], [0], [0], [1], [0, 0, 1, 1], [], []>} : vector<68x120xf32>, vector<120x64xf32>, vector<68x64xf32> -> vector<68x64xf32>
    %46 = arith.addf %41, %45 : vector<68x64xf32>
    %c0_48 = arith.constant 0 : index
    %c0_49 = arith.constant 0 : index
    %47 = vector.load %arg6[%c0_48, %c0_49] : memref<1x64xf32, #tpu.memory_space<vmem>>, vector<1x64xf32>
    %48 = vector.broadcast %47 : vector<1x64xf32> to vector<68x64xf32>
    %49 = arith.addf %46, %48 : vector<68x64xf32>
    %cst_50 = arith.constant 0.000000e+00 : f32
    %50 = vector.broadcast %cst_50 : f32 to vector<68x64xf32>
    %51 = arith.maximumf %49, %50 : vector<68x64xf32>
    %52 = vector.extract_strided_slice %51 {offsets = [0, 0], sizes = [68, 56], strides = [1, 1]} : vector<68x64xf32> to vector<68x56xf32>
    %53 = vector.extract_strided_slice %51 {offsets = [0, 8], sizes = [68, 56], strides = [1, 1]} : vector<68x64xf32> to vector<68x56xf32>
    %54 = arith.maximumf %52, %53 : vector<68x56xf32>
    %c0_51 = arith.constant 0 : index
    %c0_52 = arith.constant 0 : index
    %c0_53 = arith.constant 0 : index
    %55 = vector.load %arg7[%c0_51, %c0_52, %c0_53] : memref<2x42x68xf32, #tpu.memory_space<vmem>>, vector<1x42x68xf32>
    %56 = vector.shape_cast %55 : vector<1x42x68xf32> to vector<42x68xf32>
    %cst_54 = arith.constant dense<0.000000e+00> : vector<42x56xf32>
    %57 = tpu.matmul %56, %54, %cst_54 {dimension_numbers = #tpu.dot_dimension_numbers<[1], [0], [0], [1], [0, 0, 1, 1], [], []>} : vector<42x68xf32>, vector<68x56xf32>, vector<42x56xf32> -> vector<42x56xf32>
    %c1_55 = arith.constant 1 : index
    %c0_56 = arith.constant 0 : index
    %c0_57 = arith.constant 0 : index
    %58 = vector.load %arg7[%c1_55, %c0_56, %c0_57] : memref<2x42x68xf32, #tpu.memory_space<vmem>>, vector<1x42x68xf32>
    %59 = vector.shape_cast %58 : vector<1x42x68xf32> to vector<42x68xf32>
    %cst_58 = arith.constant dense<0.000000e+00> : vector<42x56xf32>
    %60 = tpu.matmul %59, %54, %cst_58 {dimension_numbers = #tpu.dot_dimension_numbers<[1], [0], [0], [1], [0, 0, 1, 1], [], []>} : vector<42x68xf32>, vector<68x56xf32>, vector<42x56xf32> -> vector<42x56xf32>
    %61 = arith.maximumf %57, %60 : vector<42x56xf32>
    %c0_59 = arith.constant 0 : index
    %c0_60 = arith.constant 0 : index
    %62 = vector.load %arg22[%c0_59, %c0_60] : memref<42x56xf32, #tpu.memory_space<vmem>>, vector<42x56xf32>
    tpu.vector_store %arg22[%c0_59, %c0_60], %61 {strides = array<i32>} : memref<42x56xf32, #tpu.memory_space<vmem>>, vector<42x56xf32>,
    %c0_61 = arith.constant 0 : index
    %c0_62 = arith.constant 0 : index
    %63 = vector.load %arg22[%c0_61, %c0_62] : memref<42x56xf32, #tpu.memory_space<vmem>>, vector<40x56xf32>
    %c0_63 = arith.constant 0 : index
    %c0_64 = arith.constant 0 : index
    %c0_65 = arith.constant 0 : index
    %64 = vector.load %arg8[%c0_63, %c0_64, %c0_65] : memref<3x56x64xf32, #tpu.memory_space<vmem>>, vector<1x56x64xf32>
    %65 = vector.shape_cast %64 : vector<1x56x64xf32> to vector<56x64xf32>
    %cst_66 = arith.constant dense<0.000000e+00> : vector<40x64xf32>
    %66 = tpu.matmul %63, %65, %cst_66 {dimension_numbers = #tpu.dot_dimension_numbers<[1], [0], [0], [1], [0, 0, 1, 1], [], []>} : vector<40x56xf32>, vector<56x64xf32>, vector<40x64xf32> -> vector<40x64xf32>
    %c1_67 = arith.constant 1 : index
    %c0_68 = arith.constant 0 : index
    %67 = vector.load %arg22[%c1_67, %c0_68] : memref<42x56xf32, #tpu.memory_space<vmem>>, vector<40x56xf32>
    %c1_69 = arith.constant 1 : index
    %c0_70 = arith.constant 0 : index
    %c0_71 = arith.constant 0 : index
    %68 = vector.load %arg8[%c1_69, %c0_70, %c0_71] : memref<3x56x64xf32, #tpu.memory_space<vmem>>, vector<1x56x64xf32>
    %69 = vector.shape_cast %68 : vector<1x56x64xf32> to vector<56x64xf32>
    %cst_72 = arith.constant dense<0.000000e+00> : vector<40x64xf32>
    %70 = tpu.matmul %67, %69, %cst_72 {dimension_numbers = #tpu.dot_dimension_numbers<[1], [0], [0], [1], [0, 0, 1, 1], [], []>} : vector<40x56xf32>, vector<56x64xf32>, vector<40x64xf32> -> vector<40x64xf32>
    %71 = arith.addf %66, %70 : vector<40x64xf32>
    %c2_73 = arith.constant 2 : index
    %c0_74 = arith.constant 0 : index
    %72 = vector.load %arg22[%c2_73, %c0_74] : memref<42x56xf32, #tpu.memory_space<vmem>>, vector<40x56xf32>
    %c2_75 = arith.constant 2 : index
    %c0_76 = arith.constant 0 : index
    %c0_77 = arith.constant 0 : index
    %73 = vector.load %arg8[%c2_75, %c0_76, %c0_77] : memref<3x56x64xf32, #tpu.memory_space<vmem>>, vector<1x56x64xf32>
    %74 = vector.shape_cast %73 : vector<1x56x64xf32> to vector<56x64xf32>
    %cst_78 = arith.constant dense<0.000000e+00> : vector<40x64xf32>
    %75 = tpu.matmul %72, %74, %cst_78 {dimension_numbers = #tpu.dot_dimension_numbers<[1], [0], [0], [1], [0, 0, 1, 1], [], []>} : vector<40x56xf32>, vector<56x64xf32>, vector<40x64xf32> -> vector<40x64xf32>
    %76 = arith.addf %71, %75 : vector<40x64xf32>
    %c0_79 = arith.constant 0 : index
    %c0_80 = arith.constant 0 : index
    %77 = vector.load %arg9[%c0_79, %c0_80] : memref<1x64xf32, #tpu.memory_space<vmem>>, vector<1x64xf32>
    %78 = vector.broadcast %77 : vector<1x64xf32> to vector<40x64xf32>
    %79 = arith.addf %76, %78 : vector<40x64xf32>
    %cst_81 = arith.constant 0.000000e+00 : f32
    %80 = vector.broadcast %cst_81 : f32 to vector<40x64xf32>
    %81 = arith.maximumf %79, %80 : vector<40x64xf32>
    %82 = vector.extract_strided_slice %81 {offsets = [0, 0], sizes = [40, 48], strides = [1, 1]} : vector<40x64xf32> to vector<40x48xf32>
    %83 = vector.extract_strided_slice %81 {offsets = [0, 16], sizes = [40, 48], strides = [1, 1]} : vector<40x64xf32> to vector<40x48xf32>
    %84 = arith.maximumf %82, %83 : vector<40x48xf32>
    %c0_82 = arith.constant 0 : index
    %c0_83 = arith.constant 0 : index
    %c0_84 = arith.constant 0 : index
    %85 = vector.load %arg10[%c0_82, %c0_83, %c0_84] : memref<2x28x40xf32, #tpu.memory_space<vmem>>, vector<1x28x40xf32>
    %86 = vector.shape_cast %85 : vector<1x28x40xf32> to vector<28x40xf32>
    %cst_85 = arith.constant dense<0.000000e+00> : vector<28x48xf32>
    %87 = tpu.matmul %86, %84, %cst_85 {dimension_numbers = #tpu.dot_dimension_numbers<[1], [0], [0], [1], [0, 0, 1, 1], [], []>} : vector<28x40xf32>, vector<40x48xf32>, vector<28x48xf32> -> vector<28x48xf32>
    %c1_86 = arith.constant 1 : index
    %c0_87 = arith.constant 0 : index
    %c0_88 = arith.constant 0 : index
    %88 = vector.load %arg10[%c1_86, %c0_87, %c0_88] : memref<2x28x40xf32, #tpu.memory_space<vmem>>, vector<1x28x40xf32>
    %89 = vector.shape_cast %88 : vector<1x28x40xf32> to vector<28x40xf32>
    %cst_89 = arith.constant dense<0.000000e+00> : vector<28x48xf32>
    %90 = tpu.matmul %89, %84, %cst_89 {dimension_numbers = #tpu.dot_dimension_numbers<[1], [0], [0], [1], [0, 0, 1, 1], [], []>} : vector<28x40xf32>, vector<40x48xf32>, vector<28x48xf32> -> vector<28x48xf32>
    %91 = arith.maximumf %87, %90 : vector<28x48xf32>
    %c0_90 = arith.constant 0 : index
    %c0_91 = arith.constant 0 : index
    %92 = vector.load %arg23[%c0_90, %c0_91] : memref<28x48xf32, #tpu.memory_space<vmem>>, vector<28x48xf32>
    tpu.vector_store %arg23[%c0_90, %c0_91], %91 {strides = array<i32>} : memref<28x48xf32, #tpu.memory_space<vmem>>, vector<28x48xf32>,
    %c0_92 = arith.constant 0 : index
    %c0_93 = arith.constant 0 : index
    %93 = vector.load %arg23[%c0_92, %c0_93] : memref<28x48xf32, #tpu.memory_space<vmem>>, vector<26x48xf32>
    %c0_94 = arith.constant 0 : index
    %c0_95 = arith.constant 0 : index
    %c0_96 = arith.constant 0 : index
    %94 = vector.load %arg11[%c0_94, %c0_95, %c0_96] : memref<3x48x32xf32, #tpu.memory_space<vmem>>, vector<1x48x32xf32>
    %95 = vector.shape_cast %94 : vector<1x48x32xf32> to vector<48x32xf32>
    %cst_97 = arith.constant dense<0.000000e+00> : vector<26x32xf32>
    %96 = tpu.matmul %93, %95, %cst_97 {dimension_numbers = #tpu.dot_dimension_numbers<[1], [0], [0], [1], [0, 0, 1, 1], [], []>} : vector<26x48xf32>, vector<48x32xf32>, vector<26x32xf32> -> vector<26x32xf32>
    %c1_98 = arith.constant 1 : index
    %c0_99 = arith.constant 0 : index
    %97 = vector.load %arg23[%c1_98, %c0_99] : memref<28x48xf32, #tpu.memory_space<vmem>>, vector<26x48xf32>
    %c1_100 = arith.constant 1 : index
    %c0_101 = arith.constant 0 : index
    %c0_102 = arith.constant 0 : index
    %98 = vector.load %arg11[%c1_100, %c0_101, %c0_102] : memref<3x48x32xf32, #tpu.memory_space<vmem>>, vector<1x48x32xf32>
    %99 = vector.shape_cast %98 : vector<1x48x32xf32> to vector<48x32xf32>
    %cst_103 = arith.constant dense<0.000000e+00> : vector<26x32xf32>
    %100 = tpu.matmul %97, %99, %cst_103 {dimension_numbers = #tpu.dot_dimension_numbers<[1], [0], [0], [1], [0, 0, 1, 1], [], []>} : vector<26x48xf32>, vector<48x32xf32>, vector<26x32xf32> -> vector<26x32xf32>
    %101 = arith.addf %96, %100 : vector<26x32xf32>
    %c2_104 = arith.constant 2 : index
    %c0_105 = arith.constant 0 : index
    %102 = vector.load %arg23[%c2_104, %c0_105] : memref<28x48xf32, #tpu.memory_space<vmem>>, vector<26x48xf32>
    %c2_106 = arith.constant 2 : index
    %c0_107 = arith.constant 0 : index
    %c0_108 = arith.constant 0 : index
    %103 = vector.load %arg11[%c2_106, %c0_107, %c0_108] : memref<3x48x32xf32, #tpu.memory_space<vmem>>, vector<1x48x32xf32>
    %104 = vector.shape_cast %103 : vector<1x48x32xf32> to vector<48x32xf32>
    %cst_109 = arith.constant dense<0.000000e+00> : vector<26x32xf32>
    %105 = tpu.matmul %102, %104, %cst_109 {dimension_numbers = #tpu.dot_dimension_numbers<[1], [0], [0], [1], [0, 0, 1, 1], [], []>} : vector<26x48xf32>, vector<48x32xf32>, vector<26x32xf32> -> vector<26x32xf32>
    %106 = arith.addf %101, %105 : vector<26x32xf32>
    %c0_110 = arith.constant 0 : index
    %c0_111 = arith.constant 0 : index
    %107 = vector.load %arg12[%c0_110, %c0_111] : memref<1x32xf32, #tpu.memory_space<vmem>>, vector<1x32xf32>
    %108 = vector.broadcast %107 : vector<1x32xf32> to vector<26x32xf32>
    %109 = arith.addf %106, %108 : vector<26x32xf32>
    %cst_112 = arith.constant 0.000000e+00 : f32
    %110 = vector.broadcast %cst_112 : f32 to vector<26x32xf32>
    %111 = arith.maximumf %109, %110 : vector<26x32xf32>
    %112 = vector.extract_strided_slice %111 {offsets = [0, 0], sizes = [26, 16], strides = [1, 1]} : vector<26x32xf32> to vector<26x16xf32>
    %113 = vector.extract_strided_slice %111 {offsets = [0, 16], sizes = [26, 16], strides = [1, 1]} : vector<26x32xf32> to vector<26x16xf32>
    %114 = arith.maximumf %112, %113 : vector<26x16xf32>
    %c0_113 = arith.constant 0 : index
    %c0_114 = arith.constant 0 : index
    %c0_115 = arith.constant 0 : index
    %115 = vector.load %arg13[%c0_113, %c0_114, %c0_115] : memref<2x7x26xf32, #tpu.memory_space<vmem>>, vector<1x7x26xf32>
    %116 = vector.shape_cast %115 : vector<1x7x26xf32> to vector<7x26xf32>
    %cst_116 = arith.constant dense<0.000000e+00> : vector<7x16xf32>
    %117 = tpu.matmul %116, %114, %cst_116 {dimension_numbers = #tpu.dot_dimension_numbers<[1], [0], [0], [1], [0, 0, 1, 1], [], []>} : vector<7x26xf32>, vector<26x16xf32>, vector<7x16xf32> -> vector<7x16xf32>
    %c1_117 = arith.constant 1 : index
    %c0_118 = arith.constant 0 : index
    %c0_119 = arith.constant 0 : index
    %118 = vector.load %arg13[%c1_117, %c0_118, %c0_119] : memref<2x7x26xf32, #tpu.memory_space<vmem>>, vector<1x7x26xf32>
    %119 = vector.shape_cast %118 : vector<1x7x26xf32> to vector<7x26xf32>
    %cst_120 = arith.constant dense<0.000000e+00> : vector<7x16xf32>
    %120 = tpu.matmul %119, %114, %cst_120 {dimension_numbers = #tpu.dot_dimension_numbers<[1], [0], [0], [1], [0, 0, 1, 1], [], []>} : vector<7x26xf32>, vector<26x16xf32>, vector<7x16xf32> -> vector<7x16xf32>
    %121 = arith.maximumf %117, %120 : vector<7x16xf32>
    %c0_121 = arith.constant 0 : index
    %c0_122 = arith.constant 0 : index
    %122 = vector.load %arg14[%c0_121, %c0_122] : memref<16x16xf32, #tpu.memory_space<vmem>>, vector<16x16xf32>
    %cst_123 = arith.constant dense<0.000000e+00> : vector<7x16xf32>
    %123 = tpu.matmul %121, %122, %cst_123 {dimension_numbers = #tpu.dot_dimension_numbers<[1], [0], [0], [1], [0, 0, 1, 1], [], []>} : vector<7x16xf32>, vector<16x16xf32>, vector<7x16xf32> -> vector<7x16xf32>
    %c0_124 = arith.constant 0 : index
    %c0_125 = arith.constant 0 : index
    %124 = vector.load %arg15[%c0_124, %c0_125] : memref<1x16xf32, #tpu.memory_space<vmem>>, vector<1x16xf32>
    %125 = vector.broadcast %124 : vector<1x16xf32> to vector<7x16xf32>
    %126 = arith.addf %123, %125 : vector<7x16xf32>
    %cst_126 = arith.constant 0.000000e+00 : f32
    %127 = vector.broadcast %cst_126 : f32 to vector<7x16xf32>
    %128 = arith.maximumf %126, %127 : vector<7x16xf32>
    %c0_127 = arith.constant 0 : index
    %c0_128 = arith.constant 0 : index
    %129 = vector.load %arg16[%c0_127, %c0_128] : memref<16x16xf32, #tpu.memory_space<vmem>>, vector<16x16xf32>
    %cst_129 = arith.constant dense<0.000000e+00> : vector<7x16xf32>
    %130 = tpu.matmul %128, %129, %cst_129 {dimension_numbers = #tpu.dot_dimension_numbers<[1], [0], [0], [1], [0, 0, 1, 1], [], []>} : vector<7x16xf32>, vector<16x16xf32>, vector<7x16xf32> -> vector<7x16xf32>
    %c0_130 = arith.constant 0 : index
    %c0_131 = arith.constant 0 : index
    %131 = vector.load %arg17[%c0_130, %c0_131] : memref<1x16xf32, #tpu.memory_space<vmem>>, vector<1x16xf32>
    %132 = vector.broadcast %131 : vector<1x16xf32> to vector<7x16xf32>
    %133 = arith.addf %130, %132 : vector<7x16xf32>
    %cst_132 = arith.constant 0.000000e+00 : f32
    %134 = vector.broadcast %cst_132 : f32 to vector<7x16xf32>
    %135 = arith.maximumf %133, %134 : vector<7x16xf32>
    %c0_133 = arith.constant 0 : index
    %c0_134 = arith.constant 0 : index
    %136 = vector.load %arg18[%c0_133, %c0_134] : memref<16x128xf32, #tpu.memory_space<vmem>>, vector<16x128xf32>
    %cst_135 = arith.constant dense<0.000000e+00> : vector<7x128xf32>
    %137 = tpu.matmul %135, %136, %cst_135 {dimension_numbers = #tpu.dot_dimension_numbers<[1], [0], [0], [1], [0, 0, 1, 1], [], []>} : vector<7x16xf32>, vector<16x128xf32>, vector<7x128xf32> -> vector<7x128xf32>
    %c0_136 = arith.constant 0 : index
    %c0_137 = arith.constant 0 : index
    %138 = vector.load %arg19[%c0_136, %c0_137] : memref<1x128xf32, #tpu.memory_space<vmem>>, vector<1x128xf32>
    %139 = vector.broadcast %138 : vector<1x128xf32> to vector<7x128xf32>
    %140 = arith.addf %137, %139 : vector<7x128xf32>
    %c0_138 = arith.constant 0 : index
    %c0_139 = arith.constant 0 : index
    %c0_140 = arith.constant 0 : index
    %141 = vector.load %arg20[%c0_138, %c0_139, %c0_140] : memref<1x7x128xf32, #tpu.memory_space<vmem>>, vector<1x7x128xf32>
    %142 = vector.shape_cast %141 : vector<1x7x128xf32> to vector<7x128xf32>
    %143 = vector.shape_cast %140 : vector<7x128xf32> to vector<1x7x128xf32>
    tpu.vector_store %arg20[%c0_138, %c0_139, %c0_140], %143 {strides = array<i32>} : memref<1x7x128xf32, #tpu.memory_space<vmem>>, vector<1x7x128xf32>,
    return
  }
  func.func @transform_0(%arg0: i32) -> (i32, i32, i32) {
    %c0_i32 = arith.constant 0 : i32
    %c0_i32_0 = arith.constant 0 : i32
    %c0_i32_1 = arith.constant 0 : i32
    return %arg0, %c0_i32, %c0_i32_0 : i32, i32, i32
  }
  func.func @transform_1(%arg0: i32) -> (i32, i32, i32) {
    %c0_i32 = arith.constant 0 : i32
    %c0_i32_0 = arith.constant 0 : i32
    %c0_i32_1 = arith.constant 0 : i32
    %c0_i32_2 = arith.constant 0 : i32
    return %c0_i32, %c0_i32_0, %c0_i32_1 : i32, i32, i32
  }
  func.func @transform_2(%arg0: i32) -> (i32, i32) {
    %c0_i32 = arith.constant 0 : i32
    %c0_i32_0 = arith.constant 0 : i32
    %c0_i32_1 = arith.constant 0 : i32
    return %c0_i32, %c0_i32_0 : i32, i32
  }
  func.func @transform_3(%arg0: i32) -> (i32, i32, i32) {
    %c0_i32 = arith.constant 0 : i32
    %c0_i32_0 = arith.constant 0 : i32
    %c0_i32_1 = arith.constant 0 : i32
    %c0_i32_2 = arith.constant 0 : i32
    return %c0_i32, %c0_i32_0, %c0_i32_1 : i32, i32, i32
  }
  func.func @transform_4(%arg0: i32) -> (i32, i32, i32) {
    %c0_i32 = arith.constant 0 : i32
    %c0_i32_0 = arith.constant 0 : i32
    %c0_i32_1 = arith.constant 0 : i32
    %c0_i32_2 = arith.constant 0 : i32
    return %c0_i32, %c0_i32_0, %c0_i32_1 : i32, i32, i32
  }
  func.func @transform_5(%arg0: i32) -> (i32, i32) {
    %c0_i32 = arith.constant 0 : i32
    %c0_i32_0 = arith.constant 0 : i32
    %c0_i32_1 = arith.constant 0 : i32
    return %c0_i32, %c0_i32_0 : i32, i32
  }
  func.func @transform_6(%arg0: i32) -> (i32, i32, i32) {
    %c0_i32 = arith.constant 0 : i32
    %c0_i32_0 = arith.constant 0 : i32
    %c0_i32_1 = arith.constant 0 : i32
    %c0_i32_2 = arith.constant 0 : i32
    return %c0_i32, %c0_i32_0, %c0_i32_1 : i32, i32, i32
  }
  func.func @transform_7(%arg0: i32) -> (i32, i32, i32) {
    %c0_i32 = arith.constant 0 : i32
    %c0_i32_0 = arith.constant 0 : i32
    %c0_i32_1 = arith.constant 0 : i32
    %c0_i32_2 = arith.constant 0 : i32
    return %c0_i32, %c0_i32_0, %c0_i32_1 : i32, i32, i32
  }
  func.func @transform_8(%arg0: i32) -> (i32, i32) {
    %c0_i32 = arith.constant 0 : i32
    %c0_i32_0 = arith.constant 0 : i32
    %c0_i32_1 = arith.constant 0 : i32
    return %c0_i32, %c0_i32_0 : i32, i32
  }
  func.func @transform_9(%arg0: i32) -> (i32, i32, i32) {
    %c0_i32 = arith.constant 0 : i32
    %c0_i32_0 = arith.constant 0 : i32
    %c0_i32_1 = arith.constant 0 : i32
    %c0_i32_2 = arith.constant 0 : i32
    return %c0_i32, %c0_i32_0, %c0_i32_1 : i32, i32, i32
  }
  func.func @transform_10(%arg0: i32) -> (i32, i32, i32) {
    %c0_i32 = arith.constant 0 : i32
    %c0_i32_0 = arith.constant 0 : i32
    %c0_i32_1 = arith.constant 0 : i32
    %c0_i32_2 = arith.constant 0 : i32
    return %c0_i32, %c0_i32_0, %c0_i32_1 : i32, i32, i32
  }
  func.func @transform_11(%arg0: i32) -> (i32, i32) {
    %c0_i32 = arith.constant 0 : i32
    %c0_i32_0 = arith.constant 0 : i32
    %c0_i32_1 = arith.constant 0 : i32
    return %c0_i32, %c0_i32_0 : i32, i32
  }
  func.func @transform_12(%arg0: i32) -> (i32, i32, i32) {
    %c0_i32 = arith.constant 0 : i32
    %c0_i32_0 = arith.constant 0 : i32
    %c0_i32_1 = arith.constant 0 : i32
    %c0_i32_2 = arith.constant 0 : i32
    return %c0_i32, %c0_i32_0, %c0_i32_1 : i32, i32, i32
  }
  func.func @transform_13(%arg0: i32) -> (i32, i32) {
    %c0_i32 = arith.constant 0 : i32
    %c0_i32_0 = arith.constant 0 : i32
    %c0_i32_1 = arith.constant 0 : i32
    return %c0_i32, %c0_i32_0 : i32, i32
  }
  func.func @transform_14(%arg0: i32) -> (i32, i32) {
    %c0_i32 = arith.constant 0 : i32
    %c0_i32_0 = arith.constant 0 : i32
    %c0_i32_1 = arith.constant 0 : i32
    return %c0_i32, %c0_i32_0 : i32, i32
  }
  func.func @transform_15(%arg0: i32) -> (i32, i32) {
    %c0_i32 = arith.constant 0 : i32
    %c0_i32_0 = arith.constant 0 : i32
    %c0_i32_1 = arith.constant 0 : i32
    return %c0_i32, %c0_i32_0 : i32, i32
  }
  func.func @transform_16(%arg0: i32) -> (i32, i32) {
    %c0_i32 = arith.constant 0 : i32
    %c0_i32_0 = arith.constant 0 : i32
    %c0_i32_1 = arith.constant 0 : i32
    return %c0_i32, %c0_i32_0 : i32, i32
  }
  func.func @transform_17(%arg0: i32) -> (i32, i32) {
    %c0_i32 = arith.constant 0 : i32
    %c0_i32_0 = arith.constant 0 : i32
    %c0_i32_1 = arith.constant 0 : i32
    return %c0_i32, %c0_i32_0 : i32, i32
  }
  func.func @transform_18(%arg0: i32) -> (i32, i32) {
    %c0_i32 = arith.constant 0 : i32
    %c0_i32_0 = arith.constant 0 : i32
    %c0_i32_1 = arith.constant 0 : i32
    return %c0_i32, %c0_i32_0 : i32, i32
  }
  func.func @transform_19(%arg0: i32) -> (i32, i32, i32) {
    %c0_i32 = arith.constant 0 : i32
    %c0_i32_0 = arith.constant 0 : i32
    %c0_i32_1 = arith.constant 0 : i32
    return %arg0, %c0_i32, %c0_i32_0 : i32, i32, i32
  }
}

</mosaic_0001>

<llo_original>
// kernel: vgg_forward.1
$region0: #{vgg_forward.1}
  #allocation0 [shape = 'u32[]', space=smem, size = 0x4, offset = 0x4, fixed_abs, tag = 'smem constant byte address 0x4 - core index']
  #allocation1 [shape = 'u32[144,128]{1,0:T(1,128)}', space=vmem, size = 0x12000, scoped, tag = 'internal scratch']
  #allocation2 [shape = 'f32[70,120]{1,0:T(8,128)}', space=vmem, size = 0x9000, scoped, tag = 'scratch operand']
  #allocation3 [shape = 'f32[42,56]{1,0:T(8,128)}', space=vmem, size = 0x6000, scoped, tag = 'scratch operand']
  #allocation4 [shape = 'f32[28,48]{1,0:T(8,128)}', space=vmem, size = 0x4000, scoped, tag = 'scratch operand']
  %s0 = inlined_call_operand.vmem [shape: f32[2,126,54], index: 0, kind: input, shape index: {}]
  %s1 = inlined_call_operand.vmem [shape: f32[3,54,128], index: 1, kind: input, shape index: {}]
  %s2 = inlined_call_operand.vmem [shape: f32[1,128], index: 2, kind: input, shape index: {}]
  %s3 = inlined_call_operand.vmem [shape: f32[2,70,124], index: 3, kind: input, shape index: {}]
  %s4 = inlined_call_operand.vmem [shape: f32[3,120,64], index: 4, kind: input, shape index: {}]
  %s5 = inlined_call_operand.vmem [shape: f32[1,64], index: 5, kind: input, shape index: {}]
  %s6 = inlined_call_operand.vmem [shape: f32[2,42,68], index: 6, kind: input, shape index: {}]
  %s7 = inlined_call_operand.vmem [shape: f32[3,56,64], index: 7, kind: input, shape index: {}]
  %s8 = inlined_call_operand.vmem [shape: f32[1,64], index: 8, kind: input, shape index: {}]
  %s9 = inlined_call_operand.vmem [shape: f32[2,28,40], index: 9, kind: input, shape index: {}]
  %s10 = inlined_call_operand.vmem [shape: f32[3,48,32], index: 10, kind: input, shape index: {}]
  %s11 = inlined_call_operand.vmem [shape: f32[1,32], index: 11, kind: input, shape index: {}]
  %s12 = inlined_call_operand.vmem [shape: f32[2,7,26], index: 12, kind: input, shape index: {}]
  %s13 = inlined_call_operand.vmem [shape: f32[16,16], index: 13, kind: input, shape index: {}]
  %s14 = inlined_call_operand.vmem [shape: f32[1,16], index: 14, kind: input, shape index: {}]
  %s15 = inlined_call_operand.vmem [shape: f32[16,16], index: 15, kind: input, shape index: {}]
  %s16 = inlined_call_operand.vmem [shape: f32[1,16], index: 16, kind: input, shape index: {}]
  %s17 = inlined_call_operand.vmem [shape: f32[16,128], index: 17, kind: input, shape index: {}]
  %s18 = inlined_call_operand.vmem [shape: f32[1,128], index: 18, kind: input, shape index: {}]
  %s19 = inlined_call_operand.vmem [shape: f32[2,7,128], index: 19, kind: output, shape index: {}]
  %s20 = sld [smem:[#allocation0]]
  $region109: #{vgg_forward.1} parent=0
    _
  %s22 = ssub.s32 1, %s20
  %s23 = scalar_select 0, %s22, %s20
  loop: start=0, step=1, limit=4
  $region2: #{vgg_forward.1} parent=0 // loop_pre_header
    _
  $region3: #{vgg_forward.1} parent=0 // loop_header
    %s25 = sphi 0, %s29
    %p26 = scmp.ge.s32.totalorder %s25, 4
    %s35 = sphi 0, %s37
    %s38 = sphi 0, %s35
    %s39 = sphi 0, %s38
    %s55 = sphi 0, %s39
    %s59 = sphi 0, %s59
    %s61 = sphi 0, %s59
    %s62 = sphi 0, %s61
    %s76 = sphi 0, %s62
    %s80 = sphi 0, %s80
    %s82 = sphi 0, %s80
    %s83 = sphi 0, %s82
    %s97 = sphi 0, %s83
    %s101 = sphi 0, %s101
    %s103 = sphi 0, %s101
    %s104 = sphi 0, %s103
    %s118 = sphi 0, %s104
    %s122 = sphi 0, %s122
    %s124 = sphi 0, %s122
    %s125 = sphi 0, %s124
    %s139 = sphi 0, %s125
    %s143 = sphi 0, %s143
    %s145 = sphi 0, %s143
    %s146 = sphi 0, %s145
    %s160 = sphi 0, %s146
    %s164 = sphi 0, %s164
    %s166 = sphi 0, %s164
    %s167 = sphi 0, %s166
    %s181 = sphi 0, %s167
    %s185 = sphi 0, %s185
    %s187 = sphi 0, %s185
    %s188 = sphi 0, %s187
    %s202 = sphi 0, %s188
    %s206 = sphi 0, %s206
    %s208 = sphi 0, %s206
    %s209 = sphi 0, %s208
    %s223 = sphi 0, %s209
    %s227 = sphi 0, %s227
    %s229 = sphi 0, %s227
    %s230 = sphi 0, %s229
    %s244 = sphi 0, %s230
    %s248 = sphi 0, %s248
    %s250 = sphi 0, %s248
    %s251 = sphi 0, %s250
    %s265 = sphi 0, %s251
    %s269 = sphi 0, %s269
    %s271 = sphi 0, %s269
    %s272 = sphi 0, %s271
    %s286 = sphi 0, %s272
    %s290 = sphi 0, %s290
    %s292 = sphi 0, %s290
    %s293 = sphi 0, %s292
    %s307 = sphi 0, %s293
    %s311 = sphi 0, %s311
    %s313 = sphi 0, %s311
    %s314 = sphi 0, %s313
    %s328 = sphi 0, %s314
    %s332 = sphi 0, %s332
    %s334 = sphi 0, %s332
    %s335 = sphi 0, %s334
    %s349 = sphi 0, %s335
    %s353 = sphi 0, %s353
    %s355 = sphi 0, %s353
    %s356 = sphi 0, %s355
    %s370 = sphi 0, %s356
    %s374 = sphi 0, %s374
    %s376 = sphi 0, %s374
    %s377 = sphi 0, %s376
    %s391 = sphi 0, %s377
    %s395 = sphi 0, %s395
    %s397 = sphi 0, %s395
    %s398 = sphi 0, %s397
    %s412 = sphi 0, %s398
    %s416 = sphi 0, %s416
    %s418 = sphi 0, %s416
    %s419 = sphi 0, %s418
    %s433 = sphi 0, %s419
    %s439 = sphi 0, %s441
    %s442 = sphi 0, %s439
    %s443 = sphi 0, %s442
    %s459 = sphi 0, %s443
  $region4: #{vgg_forward.1} parent=0 // loop_header_branch
    %28 = sbr.rel (%p26) target = $region8
  $region5: #{vgg_forward.1} parent=0 // loop_body
    %s30 = ssub.s32 %s25, 1
    %s31 = ssub.s32 %s25, 2
    %s32 = sadd.s32 %s25, 1
    %s33 = ssub.s32 %s25, %s32
    %p34 = scmp.eq.s32.totalorder %s33, 0
    %s36 = sadd.s32 %s35, 1
    %s37 = scalar_select %p34, %s35, %s36
    %p40 = pneg %p34
    %p41 = scmp.eq.s32.totalorder %s25, 1
    %p42 = por %p40, %p41
    %p43 = scmp.ne.s32.totalorder %s35, %s38
    %p44 = scmp.eq.s32.totalorder %s25, 0
    %p45 = por %p43, %p44
    %p46 = scmp.ne.s32.totalorder %s35, %s38
    %p47 = scmp.eq.s32.totalorder %s30, 1
    %p48 = por %p46, %p47
    %p49 = scmp.ne.s32.totalorder %s38, %s39
    %p50 = scmp.eq.s32.totalorder %s30, 0
    %p51 = por %p49, %p50
    %p52 = scmp.ne.s32.totalorder %s38, %s39
    %p53 = scmp.eq.s32.totalorder %s31, 1
    %p54 = por %p52, %p53
    %p56 = scmp.ne.s32.totalorder %s39, %s55
    %p57 = scmp.eq.s32.totalorder %s31, 0
    %p58 = por %p56, %p57
    %s60 = sadd.s32 %s59, 1
    %p63 = scmp.eq.s32.totalorder %s25, 1
    %p64 = scmp.ne.s32.totalorder %s59, %s61
    %p65 = scmp.eq.s32.totalorder %s25, 0
    %p66 = por %p64, %p65
    %p67 = scmp.ne.s32.totalorder %s59, %s61
    %p68 = scmp.eq.s32.totalorder %s30, 1
    %p69 = por %p67, %p68
    %p70 = scmp.ne.s32.totalorder %s61, %s62
    %p71 = scmp.eq.s32.totalorder %s30, 0
    %p72 = por %p70, %p71
    %p73 = scmp.ne.s32.totalorder %s61, %s62
    %p74 = scmp.eq.s32.totalorder %s31, 1
    %p75 = por %p73, %p74
    %p77 = scmp.ne.s32.totalorder %s62, %s76
    %p78 = scmp.eq.s32.totalorder %s31, 0
    %p79 = por %p77, %p78
    %s81 = sadd.s32 %s80, 1
    %p84 = scmp.eq.s32.totalorder %s25, 1
    %p85 = scmp.ne.s32.totalorder %s80, %s82
    %p86 = scmp.eq.s32.totalorder %s25, 0
    %p87 = por %p85, %p86
    %p88 = scmp.ne.s32.totalorder %s80, %s82
    %p89 = scmp.eq.s32.totalorder %s30, 1
    %p90 = por %p88, %p89
    %p91 = scmp.ne.s32.totalorder %s82, %s83
    %p92 = scmp.eq.s32.totalorder %s30, 0
    %p93 = por %p91, %p92
    %p94 = scmp.ne.s32.totalorder %s82, %s83
    %p95 = scmp.eq.s32.totalorder %s31, 1
    %p96 = por %p94, %p95
    %p98 = scmp.ne.s32.totalorder %s83, %s97
    %p99 = scmp.eq.s32.totalorder %s31, 0
    %p100 = por %p98, %p99
    %s102 = sadd.s32 %s101, 1
    %p105 = scmp.eq.s32.totalorder %s25, 1
    %p106 = scmp.ne.s32.totalorder %s101, %s103
    %p107 = scmp.eq.s32.totalorder %s25, 0
    %p108 = por %p106, %p107
    %p109 = scmp.ne.s32.totalorder %s101, %s103
    %p110 = scmp.eq.s32.totalorder %s30, 1
    %p111 = por %p109, %p110
    %p112 = scmp.ne.s32.totalorder %s103, %s104
    %p113 = scmp.eq.s32.totalorder %s30, 0
    %p114 = por %p112, %p113
    %p115 = scmp.ne.s32.totalorder %s103, %s104
    %p116 = scmp.eq.s32.totalorder %s31, 1
    %p117 = por %p115, %p116
    %p119 = scmp.ne.s32.totalorder %s104, %s118
    %p120 = scmp.eq.s32.totalorder %s31, 0
    %p121 = por %p119, %p120
    %s123 = sadd.s32 %s122, 1
    %p126 = scmp.eq.s32.totalorder %s25, 1
    %p127 = scmp.ne.s32.totalorder %s122, %s124
    %p128 = scmp.eq.s32.totalorder %s25, 0
    %p129 = por %p127, %p128
    %p130 = scmp.ne.s32.totalorder %s122, %s124
    %p131 = scmp.eq.s32.totalorder %s30, 1
    %p132 = por %p130, %p131
    %p133 = scmp.ne.s32.totalorder %s124, %s125
    %p134 = scmp.eq.s32.totalorder %s30, 0
    %p135 = por %p133, %p134
    %p136 = scmp.ne.s32.totalorder %s124, %s125
    %p137 = scmp.eq.s32.totalorder %s31, 1
    %p138 = por %p136, %p137
    %p140 = scmp.ne.s32.totalorder %s125, %s139
    %p141 = scmp.eq.s32.totalorder %s31, 0
    %p142 = por %p140, %p141
    %s144 = sadd.s32 %s143, 1
    %p147 = scmp.eq.s32.totalorder %s25, 1
    %p148 = scmp.ne.s32.totalorder %s143, %s145
    %p149 = scmp.eq.s32.totalorder %s25, 0
    %p150 = por %p148, %p149
    %p151 = scmp.ne.s32.totalorder %s143, %s145
    %p152 = scmp.eq.s32.totalorder %s30, 1
    %p153 = por %p151, %p152
    %p154 = scmp.ne.s32.totalorder %s145, %s146
    %p155 = scmp.eq.s32.totalorder %s30, 0
    %p156 = por %p154, %p155
    %p157 = scmp.ne.s32.totalorder %s145, %s146
    %p158 = scmp.eq.s32.totalorder %s31, 1
    %p159 = por %p157, %p158
    %p161 = scmp.ne.s32.totalorder %s146, %s160
    %p162 = scmp.eq.s32.totalorder %s31, 0
    %p163 = por %p161, %p162
    %s165 = sadd.s32 %s164, 1
    %p168 = scmp.eq.s32.totalorder %s25, 1
    %p169 = scmp.ne.s32.totalorder %s164, %s166
    %p170 = scmp.eq.s32.totalorder %s25, 0
    %p171 = por %p169, %p170
    %p172 = scmp.ne.s32.totalorder %s164, %s166
    %p173 = scmp.eq.s32.totalorder %s30, 1
    %p174 = por %p172, %p173
    %p175 = scmp.ne.s32.totalorder %s166, %s167
    %p176 = scmp.eq.s32.totalorder %s30, 0
    %p177 = por %p175, %p176
    %p178 = scmp.ne.s32.totalorder %s166, %s167
    %p179 = scmp.eq.s32.totalorder %s31, 1
    %p180 = por %p178, %p179
    %p182 = scmp.ne.s32.totalorder %s167, %s181
    %p183 = scmp.eq.s32.totalorder %s31, 0
    %p184 = por %p182, %p183
    %s186 = sadd.s32 %s185, 1
    %p189 = scmp.eq.s32.totalorder %s25, 1
    %p190 = scmp.ne.s32.totalorder %s185, %s187
    %p191 = scmp.eq.s32.totalorder %s25, 0
    %p192 = por %p190, %p191
    %p193 = scmp.ne.s32.totalorder %s185, %s187
    %p194 = scmp.eq.s32.totalorder %s30, 1
    %p195 = por %p193, %p194
    %p196 = scmp.ne.s32.totalorder %s187, %s188
    %p197 = scmp.eq.s32.totalorder %s30, 0
    %p198 = por %p196, %p197
    %p199 = scmp.ne.s32.totalorder %s187, %s188
    %p200 = scmp.eq.s32.totalorder %s31, 1
    %p201 = por %p199, %p200
    %p203 = scmp.ne.s32.totalorder %s188, %s202
    %p204 = scmp.eq.s32.totalorder %s31, 0
    %p205 = por %p203, %p204
    %s207 = sadd.s32 %s206, 1
    %p210 = scmp.eq.s32.totalorder %s25, 1
    %p211 = scmp.ne.s32.totalorder %s206, %s208
    %p212 = scmp.eq.s32.totalorder %s25, 0
    %p213 = por %p211, %p212
    %p214 = scmp.ne.s32.totalorder %s206, %s208
    %p215 = scmp.eq.s32.totalorder %s30, 1
    %p216 = por %p214, %p215
    %p217 = scmp.ne.s32.totalorder %s208, %s209
    %p218 = scmp.eq.s32.totalorder %s30, 0
    %p219 = por %p217, %p218
    %p220 = scmp.ne.s32.totalorder %s208, %s209
    %p221 = scmp.eq.s32.totalorder %s31, 1
    %p222 = por %p220, %p221
    %p224 = scmp.ne.s32.totalorder %s209, %s223
    %p225 = scmp.eq.s32.totalorder %s31, 0
    %p226 = por %p224, %p225
    %s228 = sadd.s32 %s227, 1
    %p231 = scmp.eq.s32.totalorder %s25, 1
    %p232 = scmp.ne.s32.totalorder %s227, %s229
    %p233 = scmp.eq.s32.totalorder %s25, 0
    %p234 = por %p232, %p233
    %p235 = scmp.ne.s32.totalorder %s227, %s229
    %p236 = scmp.eq.s32.totalorder %s30, 1
    %p237 = por %p235, %p236
    %p238 = scmp.ne.s32.totalorder %s229, %s230
    %p239 = scmp.eq.s32.totalorder %s30, 0
    %p240 = por %p238, %p239
    %p241 = scmp.ne.s32.totalorder %s229, %s230
    %p242 = scmp.eq.s32.totalorder %s31, 1
    %p243 = por %p241, %p242
    %p245 = scmp.ne.s32.totalorder %s230, %s244
    %p246 = scmp.eq.s32.totalorder %s31, 0
    %p247 = por %p245, %p246
    %s249 = sadd.s32 %s248, 1
    %p252 = scmp.eq.s32.totalorder %s25, 1
    %p253 = scmp.ne.s32.totalorder %s248, %s250
    %p254 = scmp.eq.s32.totalorder %s25, 0
    %p255 = por %p253, %p254
    %p256 = scmp.ne.s32.totalorder %s248, %s250
    %p257 = scmp.eq.s32.totalorder %s30, 1
    %p258 = por %p256, %p257
    %p259 = scmp.ne.s32.totalorder %s250, %s251
    %p260 = scmp.eq.s32.totalorder %s30, 0
    %p261 = por %p259, %p260
    %p262 = scmp.ne.s32.totalorder %s250, %s251
    %p263 = scmp.eq.s32.totalorder %s31, 1
    %p264 = por %p262, %p263
    %p266 = scmp.ne.s32.totalorder %s251, %s265
    %p267 = scmp.eq.s32.totalorder %s31, 0
    %p268 = por %p266, %p267
    %s270 = sadd.s32 %s269, 1
    %p273 = scmp.eq.s32.totalorder %s25, 1
    %p274 = scmp.ne.s32.totalorder %s269, %s271
    %p275 = scmp.eq.s32.totalorder %s25, 0
    %p276 = por %p274, %p275
    %p277 = scmp.ne.s32.totalorder %s269, %s271
    %p278 = scmp.eq.s32.totalorder %s30, 1
    %p279 = por %p277, %p278
    %p280 = scmp.ne.s32.totalorder %s271, %s272
    %p281 = scmp.eq.s32.totalorder %s30, 0
    %p282 = por %p280, %p281
    %p283 = scmp.ne.s32.totalorder %s271, %s272
    %p284 = scmp.eq.s32.totalorder %s31, 1
    %p285 = por %p283, %p284
    %p287 = scmp.ne.s32.totalorder %s272, %s286
    %p288 = scmp.eq.s32.totalorder %s31, 0
    %p289 = por %p287, %p288
    %s291 = sadd.s32 %s290, 1
    %p294 = scmp.eq.s32.totalorder %s25, 1
    %p295 = scmp.ne.s32.totalorder %s290, %s292
    %p296 = scmp.eq.s32.totalorder %s25, 0
    %p297 = por %p295, %p296
    %p298 = scmp.ne.s32.totalorder %s290, %s292
    %p299 = scmp.eq.s32.totalorder %s30, 1
    %p300 = por %p298, %p299
    %p301 = scmp.ne.s32.totalorder %s292, %s293
    %p302 = scmp.eq.s32.totalorder %s30, 0
    %p303 = por %p301, %p302
    %p304 = scmp.ne.s32.totalorder %s292, %s293
    %p305 = scmp.eq.s32.totalorder %s31, 1
    %p306 = por %p304, %p305
    %p308 = scmp.ne.s32.totalorder %s293, %s307
    %p309 = scmp.eq.s32.totalorder %s31, 0
    %p310 = por %p308, %p309
    %s312 = sadd.s32 %s311, 1
    %p315 = scmp.eq.s32.totalorder %s25, 1
    %p316 = scmp.ne.s32.totalorder %s311, %s313
    %p317 = scmp.eq.s32.totalorder %s25, 0
    %p318 = por %p316, %p317
    %p319 = scmp.ne.s32.totalorder %s311, %s313
    %p320 = scmp.eq.s32.totalorder %s30, 1
    %p321 = por %p319, %p320
    %p322 = scmp.ne.s32.totalorder %s313, %s314
    %p323 = scmp.eq.s32.totalorder %s30, 0
    %p324 = por %p322, %p323
    %p325 = scmp.ne.s32.totalorder %s313, %s314
    %p326 = scmp.eq.s32.totalorder %s31, 1
    %p327 = por %p325, %p326
    %p329 = scmp.ne.s32.totalorder %s314, %s328
    %p330 = scmp.eq.s32.totalorder %s31, 0
    %p331 = por %p329, %p330
    %s333 = sadd.s32 %s332, 1
    %p336 = scmp.eq.s32.totalorder %s25, 1
    %p337 = scmp.ne.s32.totalorder %s332, %s334
    %p338 = scmp.eq.s32.totalorder %s25, 0
    %p339 = por %p337, %p338
    %p340 = scmp.ne.s32.totalorder %s332, %s334
    %p341 = scmp.eq.s32.totalorder %s30, 1
    %p342 = por %p340, %p341
    %p343 = scmp.ne.s32.totalorder %s334, %s335
    %p344 = scmp.eq.s32.totalorder %s30, 0
    %p345 = por %p343, %p344
    %p346 = scmp.ne.s32.totalorder %s334, %s335
    %p347 = scmp.eq.s32.totalorder %s31, 1
    %p348 = por %p346, %p347
    %p350 = scmp.ne.s32.totalorder %s335, %s349
    %p351 = scmp.eq.s32.totalorder %s31, 0
    %p352 = por %p350, %p351
    %s354 = sadd.s32 %s353, 1
    %p357 = scmp.eq.s32.totalorder %s25, 1
    %p358 = scmp.ne.s32.totalorder %s353, %s355
    %p359 = scmp.eq.s32.totalorder %s25, 0
    %p360 = por %p358, %p359
    %p361 = scmp.ne.s32.totalorder %s353, %s355
    %p362 = scmp.eq.s32.totalorder %s30, 1
    %p363 = por %p361, %p362
    %p364 = scmp.ne.s32.totalorder %s355, %s356
    %p365 = scmp.eq.s32.totalorder %s30, 0
    %p366 = por %p364, %p365
    %p367 = scmp.ne.s32.totalorder %s355, %s356
    %p368 = scmp.eq.s32.totalorder %s31, 1
    %p369 = por %p367, %p368
    %p371 = scmp.ne.s32.totalorder %s356, %s370
    %p372 = scmp.eq.s32.totalorder %s31, 0
    %p373 = por %p371, %p372
    %s375 = sadd.s32 %s374, 1
    %p378 = scmp.eq.s32.totalorder %s25, 1
    %p379 = scmp.ne.s32.totalorder %s374, %s376
    %p380 = scmp.eq.s32.totalorder %s25, 0
    %p381 = por %p379, %p380
    %p382 = scmp.ne.s32.totalorder %s374, %s376
    %p383 = scmp.eq.s32.totalorder %s30, 1
    %p384 = por %p382, %p383
    %p385 = scmp.ne.s32.totalorder %s376, %s377
    %p386 = scmp.eq.s32.totalorder %s30, 0
    %p387 = por %p385, %p386
    %p388 = scmp.ne.s32.totalorder %s376, %s377
    %p389 = scmp.eq.s32.totalorder %s31, 1
    %p390 = por %p388, %p389
    %p392 = scmp.ne.s32.totalorder %s377, %s391
    %p393 = scmp.eq.s32.totalorder %s31, 0
    %p394 = por %p392, %p393
    %s396 = sadd.s32 %s395, 1
    %p399 = scmp.eq.s32.totalorder %s25, 1
    %p400 = scmp.ne.s32.totalorder %s395, %s397
    %p401 = scmp.eq.s32.totalorder %s25, 0
    %p402 = por %p400, %p401
    %p403 = scmp.ne.s32.totalorder %s395, %s397
    %p404 = scmp.eq.s32.totalorder %s30, 1
    %p405 = por %p403, %p404
    %p406 = scmp.ne.s32.totalorder %s397, %s398
    %p407 = scmp.eq.s32.totalorder %s30, 0
    %p408 = por %p406, %p407
    %p409 = scmp.ne.s32.totalorder %s397, %s398
    %p410 = scmp.eq.s32.totalorder %s31, 1
    %p411 = por %p409, %p410
    %p413 = scmp.ne.s32.totalorder %s398, %s412
    %p414 = scmp.eq.s32.totalorder %s31, 0
    %p415 = por %p413, %p414
    %s417 = sadd.s32 %s416, 1
    %p420 = scmp.eq.s32.totalorder %s25, 1
    %p421 = scmp.ne.s32.totalorder %s416, %s418
    %p422 = scmp.eq.s32.totalorder %s25, 0
    %p423 = por %p421, %p422
    %p424 = scmp.ne.s32.totalorder %s416, %s418
    %p425 = scmp.eq.s32.totalorder %s30, 1
    %p426 = por %p424, %p425
    %p427 = scmp.ne.s32.totalorder %s418, %s419
    %p428 = scmp.eq.s32.totalorder %s30, 0
    %p429 = por %p427, %p428
    %p430 = scmp.ne.s32.totalorder %s418, %s419
    %p431 = scmp.eq.s32.totalorder %s31, 1
    %p432 = por %p430, %p431
    %p434 = scmp.ne.s32.totalorder %s419, %s433
    %p435 = scmp.eq.s32.totalorder %s31, 0
    %p436 = por %p434, %p435
    %s437 = ssub.s32 %s25, %s32
    %p438 = scmp.eq.s32.totalorder %s437, 0
    %s440 = sadd.s32 %s439, 1
    %s441 = scalar_select %p438, %s439, %s440
    %p444 = pneg %p438
    %p445 = scmp.eq.s32.totalorder %s25, 1
    %p446 = por %p444, %p445
    %p447 = scmp.ne.s32.totalorder %s439, %s442
    %p448 = scmp.eq.s32.totalorder %s25, 0
    %p449 = por %p447, %p448
    %p450 = scmp.ne.s32.totalorder %s439, %s442
    %p451 = scmp.eq.s32.totalorder %s30, 1
    %p452 = por %p450, %p451
    %p453 = scmp.ne.s32.totalorder %s442, %s443
    %p454 = scmp.eq.s32.totalorder %s30, 0
    %p455 = por %p453, %p454
    %p456 = scmp.ne.s32.totalorder %s442, %s443
    %p457 = scmp.eq.s32.totalorder %s31, 1
    %p458 = por %p456, %p457
    %p460 = scmp.ne.s32.totalorder %s443, %s459
    %p461 = scmp.eq.s32.totalorder %s31, 0
    %p462 = por %p460, %p461
    %p463 = scmp.le.s32.totalorder 1, %s25
    %p464 = scmp.lt.s32.totalorder %s25, 3
    %p465 = pnand %p463, %p464
    %p466 = pneg %p465
    // Predicated region
    $region9: #{vgg_forward.1} parent=5 // pred_check
      _
    $region10: #{vgg_forward.1} parent=5 // pred_check_branch
      %468 = sbr.rel (%p465) target = $region12
    $region11: #{vgg_forward.1} parent=5 // pred_region
      %s469 = ssub.s32 %s25, 1
      // Predicated region
      $region13: #{vgg_forward.1} parent=11 // pred_check
        %p470 = pneg %p72
      $region14: #{vgg_forward.1} parent=11 // pred_check_branch
        %472 = sbr.rel (%p470) target = $region16
      $region15: #{vgg_forward.1} parent=11 // pred_region
        _
      $region16: #{vgg_forward.1} parent=11 // pred_fallthru
        _
      // Predicated region
      $region17: #{vgg_forward.1} parent=11 // pred_check
        %p473 = pneg %p93
      $region18: #{vgg_forward.1} parent=11 // pred_check_branch
        %475 = sbr.rel (%p473) target = $region20
      $region19: #{vgg_forward.1} parent=11 // pred_region
        _
      $region20: #{vgg_forward.1} parent=11 // pred_fallthru
        _
      // Predicated region
      $region21: #{vgg_forward.1} parent=11 // pred_check
        %p476 = pneg %p114
      $region22: #{vgg_forward.1} parent=11 // pred_check_branch
        %478 = sbr.rel (%p476) target = $region24
      $region23: #{vgg_forward.1} parent=11 // pred_region
        _
      $region24: #{vgg_forward.1} parent=11 // pred_fallthru
        _
      // Predicated region
      $region25: #{vgg_forward.1} parent=11 // pred_check
        %p479 = pneg %p135
      $region26: #{vgg_forward.1} parent=11 // pred_check_branch
        %481 = sbr.rel (%p479) target = $region28
      $region27: #{vgg_forward.1} parent=11 // pred_region
        _
      $region28: #{vgg_forward.1} parent=11 // pred_fallthru
        _
      // Predicated region
      $region29: #{vgg_forward.1} parent=11 // pred_check
        %p482 = pneg %p156
      $region30: #{vgg_forward.1} parent=11 // pred_check_branch
        %484 = sbr.rel (%p482) target = $region32
      $region31: #{vgg_forward.1} parent=11 // pred_region
        _
      $region32: #{vgg_forward.1} parent=11 // pred_fallthru
        _
      // Predicated region
      $region33: #{vgg_forward.1} parent=11 // pred_check
        %p485 = pneg %p177
      $region34: #{vgg_forward.1} parent=11 // pred_check_branch
        %487 = sbr.rel (%p485) target = $region36
      $region35: #{vgg_forward.1} parent=11 // pred_region
        _
      $region36: #{vgg_forward.1} parent=11 // pred_fallthru
        _
      // Predicated region
      $region37: #{vgg_forward.1} parent=11 // pred_check
        %p488 = pneg %p198
      $region38: #{vgg_forward.1} parent=11 // pred_check_branch
        %490 = sbr.rel (%p488) target = $region40
      $region39: #{vgg_forward.1} parent=11 // pred_region
        _
      $region40: #{vgg_forward.1} parent=11 // pred_fallthru
        _
      // Predicated region
      $region41: #{vgg_forward.1} parent=11 // pred_check
        %p491 = pneg %p219
      $region42: #{vgg_forward.1} parent=11 // pred_check_branch
        %493 = sbr.rel (%p491) target = $region44
      $region43: #{vgg_forward.1} parent=11 // pred_region
        _
      $region44: #{vgg_forward.1} parent=11 // pred_fallthru
        _
      // Predicated region
      $region45: #{vgg_forward.1} parent=11 // pred_check
        %p494 = pneg %p240
      $region46: #{vgg_forward.1} parent=11 // pred_check_branch
        %496 = sbr.rel (%p494) target = $region48
      $region47: #{vgg_forward.1} parent=11 // pred_region
        _
      $region48: #{vgg_forward.1} parent=11 // pred_fallthru
        _
      // Predicated region
      $region49: #{vgg_forward.1} parent=11 // pred_check
        %p497 = pneg %p261
      $region50: #{vgg_forward.1} parent=11 // pred_check_branch
        %499 = sbr.rel (%p497) target = $region52
      $region51: #{vgg_forward.1} parent=11 // pred_region
        _
      $region52: #{vgg_forward.1} parent=11 // pred_fallthru
        _
      // Predicated region
      $region53: #{vgg_forward.1} parent=11 // pred_check
        %p500 = pneg %p282
      $region54: #{vgg_forward.1} parent=11 // pred_check_branch
        %502 = sbr.rel (%p500) target = $region56
      $region55: #{vgg_forward.1} parent=11 // pred_region
        _
      $region56: #{vgg_forward.1} parent=11 // pred_fallthru
        _
      // Predicated region
      $region57: #{vgg_forward.1} parent=11 // pred_check
        %p503 = pneg %p303
      $region58: #{vgg_forward.1} parent=11 // pred_check_branch
        %505 = sbr.rel (%p503) target = $region60
      $region59: #{vgg_forward.1} parent=11 // pred_region
        _
      $region60: #{vgg_forward.1} parent=11 // pred_fallthru
        _
      // Predicated region
      $region61: #{vgg_forward.1} parent=11 // pred_check
        %p506 = pneg %p324
      $region62: #{vgg_forward.1} parent=11 // pred_check_branch
        %508 = sbr.rel (%p506) target = $region64
      $region63: #{vgg_forward.1} parent=11 // pred_region
        _
      $region64: #{vgg_forward.1} parent=11 // pred_fallthru
        _
      // Predicated region
      $region65: #{vgg_forward.1} parent=11 // pred_check
        %p509 = pneg %p345
      $region66: #{vgg_forward.1} parent=11 // pred_check_branch
        %511 = sbr.rel (%p509) target = $region68
      $region67: #{vgg_forward.1} parent=11 // pred_region
        _
      $region68: #{vgg_forward.1} parent=11 // pred_fallthru
        _
      // Predicated region
      $region69: #{vgg_forward.1} parent=11 // pred_check
        %p512 = pneg %p366
      $region70: #{vgg_forward.1} parent=11 // pred_check_branch
        %514 = sbr.rel (%p512) target = $region72
      $region71: #{vgg_forward.1} parent=11 // pred_region
        _
      $region72: #{vgg_forward.1} parent=11 // pred_fallthru
        _
      // Predicated region
      $region73: #{vgg_forward.1} parent=11 // pred_check
        %p515 = pneg %p387
      $region74: #{vgg_forward.1} parent=11 // pred_check_branch
        %517 = sbr.rel (%p515) target = $region76
      $region75: #{vgg_forward.1} parent=11 // pred_region
        _
      $region76: #{vgg_forward.1} parent=11 // pred_fallthru
        _
      // Predicated region
      $region77: #{vgg_forward.1} parent=11 // pred_check
        %p518 = pneg %p408
      $region78: #{vgg_forward.1} parent=11 // pred_check_branch
        %520 = sbr.rel (%p518) target = $region80
      $region79: #{vgg_forward.1} parent=11 // pred_region
        _
      $region80: #{vgg_forward.1} parent=11 // pred_fallthru
        _
      // Predicated region
      $region81: #{vgg_forward.1} parent=11 // pred_check
        %p521 = pneg %p429
      $region82: #{vgg_forward.1} parent=11 // pred_check_branch
        %523 = sbr.rel (%p521) target = $region84
      $region83: #{vgg_forward.1} parent=11 // pred_region
        _
      $region84: #{vgg_forward.1} parent=11 // pred_fallthru
        _
    $region12: #{vgg_forward.1} parent=5 // pred_fallthru
      _
    %p524 = scmp.lt.s32.totalorder %s25, 2
    // Predicated region
    $region85: #{vgg_forward.1} parent=5 // pred_check
      %p525 = pneg %p524
    $region86: #{vgg_forward.1} parent=5 // pred_check_branch
      %527 = sbr.rel (%p525) target = $region88
    $region87: #{vgg_forward.1} parent=5 // pred_region
      // Predicated region
      $region89: #{vgg_forward.1} parent=87 // pred_check
        %p528 = pneg %p45
      $region90: #{vgg_forward.1} parent=87 // pred_check_branch
        %530 = sbr.rel (%p528) target = $region92
      $region91: #{vgg_forward.1} parent=87 // pred_region
        %p531 = scmp.lt.s32.totalorder %s25, 1
        %s532 = scalar_select %p531, %s25, 1
        %s533 = smul.addr %s532, 16
        %s534 = smul.addr %s533, 8
        %s535 = scalar_lea.vmem %s0, %s534
      $region92: #{vgg_forward.1} parent=87 // pred_fallthru
        _
    $region88: #{vgg_forward.1} parent=5 // pred_fallthru
      _
    %p536 = scmp.le.s32.totalorder 1, %s25
    %p537 = scmp.lt.s32.totalorder %s25, 3
    %p538 = pnand %p536, %p537
    %p539 = pneg %p538
    // Predicated region
    $region93: #{vgg_forward.1} parent=5 // pred_check
      _
    $region94: #{vgg_forward.1} parent=5 // pred_check_branch
      %541 = sbr.rel (%p538) target = $region96
    $region95: #{vgg_forward.1} parent=5 // pred_region
      %s542 = ssub.s32 %s25, 1
      %p543 = scmp.lt.s32.totalorder %s30, 1
      %s544 = scalar_select %p543, %s30, 1
      %s545 = smul.addr %s544, 16
      %s546 = smul.addr %s545, 8
      %s547 = scalar_lea.vmem %s0, %s546
      %p548 = pneg %p51
      %p549 = pneg %p48
      %p550 = pneg %p72
      %p551 = pneg %p69
      %p552 = pneg %p93
      %p553 = pneg %p90
      %p554 = pneg %p114
      %p555 = pneg %p111
      %p556 = pneg %p135
      %p557 = pneg %p132
      %p558 = pneg %p156
      %p559 = pneg %p153
      %p560 = pneg %p177
      %p561 = pneg %p174
      %p562 = pneg %p198
      %p563 = pneg %p195
      %p564 = pneg %p219
      %p565 = pneg %p216
      %p566 = pneg %p240
      %p567 = pneg %p237
      %p568 = pneg %p261
      %p569 = pneg %p258
      %p570 = pneg %p282
      %p571 = pneg %p279
      %p572 = pneg %p303
      %p573 = pneg %p300
      %p574 = pneg %p324
      %p575 = pneg %p321
      %p576 = pneg %p345
      %p577 = pneg %p342
      %p578 = pneg %p366
      %p579 = pneg %p363
      %p580 = pneg %p387
      %p581 = pneg %p384
      %p582 = pneg %p408
      %p583 = pneg %p405
      %p584 = pneg %p429
      %p585 = pneg %p426
      %p586 = pneg %p455
      %p587 = pneg %p452
      %p588 = scmp.lt.s32.totalorder %s30, 1
      %s589 = scalar_select %p588, %s30, 1
      %s590 = smul.addr %s589, 8
      %s591 = scalar_lea.vmem %s19, %s590
      %p592 = scmp.lt.s32.totalorder %s30, 1
      %s593 = scalar_select %p592, %s30, 1
      %s594 = smul.addr %s593, 16
      %s595 = smul.addr %s594, 8
      %s596 = scalar_lea.vmem %s0, %s595
      %p597 = scmp.lt.s32.totalorder %s30, 1
      %s598 = scalar_select %p597, %s30, 1
      %s599 = smul.addr %s598, 8
      %s600 = scalar_lea.vmem %s19, %s599
      %v601 = vld [vmem:[%s596] sm:$0xff]
      %v602 = vld [vmem:[%s596 + $0x8] sm:$0xff]
      %v603 = vld [vmem:[%s596 + $0x10] sm:$0xff]
      %v604 = vld [vmem:[%s596 + $0x18] sm:$0xff]
      %v605 = vld [vmem:[%s596 + $0x20] sm:$0xff]
      %v606 = vld [vmem:[%s596 + $0x28] sm:$0xff]
      %v607 = vld [vmem:[%s596 + $0x30] sm:$0xff]
      %v608 = vld [vmem:[%s596 + $0x38] sm:$0xff]
      %v609 = vld [vmem:[%s596 + $0x40] sm:$0xff]
      %v610 = vld [vmem:[%s596 + $0x48] sm:$0xff]
      %v611 = vld [vmem:[%s596 + $0x50] sm:$0xff]
      %v612 = vld [vmem:[%s596 + $0x58] sm:$0xff]
      %v613 = vld [vmem:[%s596 + $0x60] sm:$0xff]
      %v614 = vld [vmem:[%s596 + $0x68] sm:$0xff]
      %v615 = vld [vmem:[%s596 + $0x70] sm:$0xff]
      %v616 = vld [vmem:[%s596 + $0x78] sm:$0xf]
      %v617 = vld [vmem:[%s1] sm:$0xff]
      %v618 = vld [vmem:[%s1 + $0x8] sm:$0xff]
      %v619 = vld [vmem:[%s1 + $0x10] sm:$0xff]
      %v620 = vld [vmem:[%s1 + $0x18] sm:$0xff]
      %v621 = vld [vmem:[%s1 + $0x20] sm:$0xff]
      %v622 = vld [vmem:[%s1 + $0x28] sm:$0xff]
      %v623 = vld [vmem:[%s1 + $0x30] sm:$0x3f]
      %v624 = vld [vmem:[%s596 + $0x1] sm:$0xff]
      %v625 = vld [vmem:[%s596 + $0x9] sm:$0xff]
      %v626 = vld [vmem:[%s596 + $0x11] sm:$0xff]
      %v627 = vld [vmem:[%s596 + $0x19] sm:$0xff]
      %v628 = vld [vmem:[%s596 + $0x21] sm:$0xff]
      %v629 = vld [vmem:[%s596 + $0x29] sm:$0xff]
      %v630 = vld [vmem:[%s596 + $0x31] sm:$0xff]
      %v631 = vld [vmem:[%s596 + $0x39] sm:$0xff]
      %v632 = vld [vmem:[%s596 + $0x41] sm:$0xff]
      %v633 = vld [vmem:[%s596 + $0x49] sm:$0xff]
      %v634 = vld [vmem:[%s596 + $0x51] sm:$0xff]
      %v635 = vld [vmem:[%s596 + $0x59] sm:$0xff]
      %v636 = vld [vmem:[%s596 + $0x61] sm:$0xff]
      %v637 = vld [vmem:[%s596 + $0x69] sm:$0xff]
      %v638 = vld [vmem:[%s596 + $0x71] sm:$0xff]
      %v639 = vld [vmem:[%s596 + $0x79] sm:$0xf]
      %s640 = scalar_lea.vmem %s1, 56
      %v641 = vld [vmem:[%s640] sm:$0xff]
      %v642 = vld [vmem:[%s640 + $0x8] sm:$0xff]
      %v643 = vld [vmem:[%s640 + $0x10] sm:$0xff]
      %v644 = vld [vmem:[%s640 + $0x18] sm:$0xff]
      %v645 = vld [vmem:[%s640 + $0x20] sm:$0xff]
      %v646 = vld [vmem:[%s640 + $0x28] sm:$0xff]
      %v647 = vld [vmem:[%s640 + $0x30] sm:$0x3f]
      %vm648 = vcmask 441344
      %v650 = vsel %vm648, %v624, 0
      %v653 = vsel %vm648, %v625, 0
      %v656 = vsel %vm648, %v626, 0
      %v659 = vsel %vm648, %v627, 0
      %v662 = vsel %vm648, %v628, 0
      %v665 = vsel %vm648, %v629, 0
      %v668 = vsel %vm648, %v630, 0
      %v671 = vsel %vm648, %v631, 0
      %v674 = vsel %vm648, %v632, 0
      %v677 = vsel %vm648, %v633, 0
      %v680 = vsel %vm648, %v634, 0
      %v683 = vsel %vm648, %v635, 0
      %v686 = vsel %vm648, %v636, 0
      %v689 = vsel %vm648, %v637, 0
      %v692 = vsel %vm648, %v638, 0
      %v695 = vsel %vm648, %v639, 0
      %vm697 = vcmask 1045504
      %v699 = vsel %vm697, %v647, 0
      %701 = vmatprep.subr.mxu0 0.0
      %702 = vmatpush1.msra.mxu0 %v641
      %703 = vmatprep.subr.mxu0 0.0
      %704 = vmatpush1.msra.mxu0 %v642
      %705 = vmatprep.subr.mxu0 0.0
      %706 = vmatpush1.msra.mxu0 %v643
      %707 = vmatprep.subr.mxu0 0.0
      %708 = vmatpush1.msra.mxu0 %v644
      %709 = vmatprep.subr.mxu0 0.0
      %710 = vmatpush1.msra.mxu0 %v645
      %711 = vmatprep.subr.mxu0 0.0
      %712 = vmatpush1.msra.mxu0 %v646
      %713 = vmatprep.subr.mxu0 0.0
      %714 = vmatpush1.msra.mxu0 %v699
      %715 = vmatprep.subr.mxu0 0.0
      %716 = vmatpush1.msra.mxu0 0.0
      %717 = vmatprep.subr.mxu0 0.0
      %718 = vmatpush1.msra.mxu0 0.0
      %719 = vmatprep.subr.mxu0 0.0
      %720 = vmatpush1.msra.mxu0 0.0
      %721 = vmatprep.subr.mxu0 0.0
      %722 = vmatpush1.msra.mxu0 0.0
      %723 = vmatprep.subr.mxu0 0.0
      %724 = vmatpush1.msra.mxu0 0.0
      %725 = vmatprep.subr.mxu0 0.0
      %726 = vmatpush1.msra.mxu0 0.0
      %727 = vmatprep.subr.mxu0 0.0
      %728 = vmatpush1.msra.mxu0 0.0
      %729 = vmatprep.subr.mxu0 0.0
      %730 = vmatpush1.msra.mxu0 0.0
      %731 = vmatprep.subr.mxu0 0.0
      %732 = vmatpush1.msra.mxu0 0.0
      %733 = vmatprep.subr.mxu0 0.0
      %734 = vmatpush1.msra.mxu0 0.0
      %735 = vmatprep.subr.mxu0 0.0
      %736 = vmatpush1.msra.mxu0 0.0
      %737 = vmatprep.subr.mxu0 0.0
      %738 = vmatpush1.msra.mxu0 0.0
      %739 = vmatprep.subr.mxu0 0.0
      %740 = vmatpush1.msra.mxu0 0.0
      %741 = vmatprep.subr.mxu0 0.0
      %742 = vmatpush1.msra.mxu0 0.0
      %743 = vmatprep.subr.mxu0 0.0
      %744 = vmatpush1.msra.mxu0 0.0
      %745 = vmatprep.subr.mxu0 0.0
      %746 = vmatpush1.msra.mxu0 0.0
      %747 = vmatprep.subr.mxu0 0.0
      %748 = vmatpush1.msra.mxu0 0.0
      %749 = vmatprep.subr.mxu0 0.0
      %750 = vmatpush1.msra.mxu0 0.0
      %751 = vmatprep.subr.mxu0 0.0
      %752 = vmatpush1.msra.mxu0 0.0
      %753 = vmatprep.subr.mxu0 0.0
      %754 = vmatpush1.msra.mxu0 0.0
      %755 = vmatprep.subr.mxu0 0.0
      %756 = vmatpush1.msra.mxu0 0.0
      %757 = vmatprep.subr.mxu0 0.0
      %758 = vmatpush1.msra.mxu0 0.0
      %759 = vmatprep.subr.mxu0 0.0
      %760 = vmatpush1.msra.mxu0 0.0
      %761 = vmatprep.subr.mxu0 0.0
      %762 = vmatpush1.msra.mxu0 0.0
      %763 = vmatprep.subr.mxu0 0.0
      %764 = vmatpush1.msra.mxu0 0.0
      %765 = vmatprep.mubr.f32.mxu0 0.0
      %766 = vmatmul.mubr.f32.gmra.mrb[0].mxu0 %v650
      %v767 = vpop.f32.mrb[0].mxu0
      %v768 = vadd.f32 0.0, %v767
      %v769 = vpop.f32.mrb[0].mxu0
      %770 = vmatprep.mubr.f32.mxu0 0.0
      %771 = vmatmul.mubr.f32.gmra.mrb[0].mxu0 %v653
      %v772 = vpop.f32.mrb[0].mxu0
      %v773 = vadd.f32 0.0, %v772
      %v774 = vpop.f32.mrb[0].mxu0
      %775 = vmatprep.mubr.f32.mxu0 0.0
      %776 = vmatmul.mubr.f32.gmra.mrb[0].mxu0 %v656
      %v777 = vpop.f32.mrb[0].mxu0
      %v778 = vadd.f32 0.0, %v777
      %v779 = vpop.f32.mrb[0].mxu0
      %780 = vmatprep.mubr.f32.mxu0 0.0
      %781 = vmatmul.mubr.f32.gmra.mrb[0].mxu0 %v659
      %v782 = vpop.f32.mrb[0].mxu0
      %v783 = vadd.f32 0.0, %v782
      %v784 = vpop.f32.mrb[0].mxu0
      %785 = vmatprep.mubr.f32.mxu0 0.0
      %786 = vmatmul.mubr.f32.gmra.mrb[0].mxu0 %v662
      %v787 = vpop.f32.mrb[0].mxu0
      %v788 = vadd.f32 0.0, %v787
      %v789 = vpop.f32.mrb[0].mxu0
      %790 = vmatprep.mubr.f32.mxu0 0.0
      %791 = vmatmul.mubr.f32.gmra.mrb[0].mxu0 %v665
      %v792 = vpop.f32.mrb[0].mxu0
      %v793 = vadd.f32 0.0, %v792
      %v794 = vpop.f32.mrb[0].mxu0
      %795 = vmatprep.mubr.f32.mxu0 0.0
      %796 = vmatmul.mubr.f32.gmra.mrb[0].mxu0 %v668
      %v797 = vpop.f32.mrb[0].mxu0
      %v798 = vadd.f32 0.0, %v797
      %v799 = vpop.f32.mrb[0].mxu0
      %800 = vmatprep.mubr.f32.mxu0 0.0
      %801 = vmatmul.mubr.f32.gmra.mrb[0].mxu0 %v671
      %v802 = vpop.f32.mrb[0].mxu0
      %v803 = vadd.f32 0.0, %v802
      %v804 = vpop.f32.mrb[0].mxu0
      %805 = vmatprep.mubr.f32.mxu0 0.0
      %806 = vmatmul.mubr.f32.gmra.mrb[0].mxu0 %v674
      %v807 = vpop.f32.mrb[0].mxu0
      %v808 = vadd.f32 0.0, %v807
      %v809 = vpop.f32.mrb[0].mxu0
      %810 = vmatprep.mubr.f32.mxu0 0.0
      %811 = vmatmul.mubr.f32.gmra.mrb[0].mxu0 %v677
      %v812 = vpop.f32.mrb[0].mxu0
      %v813 = vadd.f32 0.0, %v812
      %v814 = vpop.f32.mrb[0].mxu0
      %815 = vmatprep.mubr.f32.mxu0 0.0
      %816 = vmatmul.mubr.f32.gmra.mrb[0].mxu0 %v680
      %v817 = vpop.f32.mrb[0].mxu0
      %v818 = vadd.f32 0.0, %v817
      %v819 = vpop.f32.mrb[0].mxu0
      %820 = vmatprep.mubr.f32.mxu0 0.0
      %821 = vmatmul.mubr.f32.gmra.mrb[0].mxu0 %v683
      %v822 = vpop.f32.mrb[0].mxu0
      %v823 = vadd.f32 0.0, %v822
      %v824 = vpop.f32.mrb[0].mxu0
      %825 = vmatprep.mubr.f32.mxu0 0.0
      %826 = vmatmul.mubr.f32.gmra.mrb[0].mxu0 %v686
      %v827 = vpop.f32.mrb[0].mxu0
      %v828 = vadd.f32 0.0, %v827
      %v829 = vpop.f32.mrb[0].mxu0
      %830 = vmatprep.mubr.f32.mxu0 0.0
      %831 = vmatmul.mubr.f32.gmra.mrb[0].mxu0 %v689
      %v832 = vpop.f32.mrb[0].mxu0
      %v833 = vadd.f32 0.0, %v832
      %v834 = vpop.f32.mrb[0].mxu0
      %835 = vmatprep.mubr.f32.mxu0 0.0
      %836 = vmatmul.mubr.f32.gmra.mrb[0].mxu0 %v692
      %v837 = vpop.f32.mrb[0].mxu0
      %v838 = vadd.f32 0.0, %v837
      %v839 = vpop.f32.mrb[0].mxu0
      %840 = vmatprep.mubr.f32.mxu0 0.0
      %841 = vmatmul.mubr.f32.gmra.mrb[0].mxu0 %v695
      %v842 = vpop.f32.mrb[0].mxu0
      %v843 = vadd.f32 0.0, %v842
      %v844 = vpop.f32.mrb[0].mxu0
      %845 = vdwg.mxu0
      %v847 = vsel %vm648, %v601, 0
      %v850 = vsel %vm648, %v602, 0
      %v853 = vsel %vm648, %v603, 0
      %v856 = vsel %vm648, %v604, 0
      %v859 = vsel %vm648, %v605, 0
      %v862 = vsel %vm648, %v606, 0
      %v865 = vsel %vm648, %v607, 0
      %v868 = vsel %vm648, %v608, 0
      %v871 = vsel %vm648, %v609, 0
      %v874 = vsel %vm648, %v610, 0
      %v877 = vsel %vm648, %v611, 0
      %v880 = vsel %vm648, %v612, 0
      %v883 = vsel %vm648, %v613, 0
      %v886 = vsel %vm648, %v614, 0
      %v889 = vsel %vm648, %v615, 0
      %v892 = vsel %vm648, %v616, 0
      %v895 = vsel %vm697, %v623, 0
      %897 = vmatprep.subr.mxu0 0.0
      %898 = vmatpush1.msra.mxu0 %v617
      %899 = vmatprep.subr.mxu0 0.0
      %900 = vmatpush1.msra.mxu0 %v618
      %901 = vmatprep.subr.mxu0 0.0
      %902 = vmatpush1.msra.mxu0 %v619
      %903 = vmatprep.subr.mxu0 0.0
      %904 = vmatpush1.msra.mxu0 %v620
      %905 = vmatprep.subr.mxu0 0.0
      %906 = vmatpush1.msra.mxu0 %v621
      %907 = vmatprep.subr.mxu0 0.0
      %908 = vmatpush1.msra.mxu0 %v622
      %909 = vmatprep.subr.mxu0 0.0
      %910 = vmatpush1.msra.mxu0 %v895
      %911 = vmatprep.subr.mxu0 0.0
      %912 = vmatpush1.msra.mxu0 0.0
      %913 = vmatprep.subr.mxu0 0.0
      %914 = vmatpush1.msra.mxu0 0.0
      %915 = vmatprep.subr.mxu0 0.0
      %916 = vmatpush1.msra.mxu0 0.0
      %917 = vmatprep.subr.mxu0 0.0
      %918 = vmatpush1.msra.mxu0 0.0
      %919 = vmatprep.subr.mxu0 0.0
      %920 = vmatpush1.msra.mxu0 0.0
      %921 = vmatprep.subr.mxu0 0.0
      %922 = vmatpush1.msra.mxu0 0.0
      %923 = vmatprep.subr.mxu0 0.0
      %924 = vmatpush1.msra.mxu0 0.0
      %925 = vmatprep.subr.mxu0 0.0
      %926 = vmatpush1.msra.mxu0 0.0
      %927 = vmatprep.subr.mxu0 0.0
      %928 = vmatpush1.msra.mxu0 0.0
      %929 = vmatprep.subr.mxu0 0.0
      %930 = vmatpush1.msra.mxu0 0.0
      %931 = vmatprep.subr.mxu0 0.0
      %932 = vmatpush1.msra.mxu0 0.0
      %933 = vmatprep.subr.mxu0 0.0
      %934 = vmatpush1.msra.mxu0 0.0
      %935 = vmatprep.subr.mxu0 0.0
      %936 = vmatpush1.msra.mxu0 0.0
      %937 = vmatprep.subr.mxu0 0.0
      %938 = vmatpush1.msra.mxu0 0.0
      %939 = vmatprep.subr.mxu0 0.0
      %940 = vmatpush1.msra.mxu0 0.0
      %941 = vmatprep.subr.mxu0 0.0
      %942 = vmatpush1.msra.mxu0 0.0
      %943 = vmatprep.subr.mxu0 0.0
      %944 = vmatpush1.msra.mxu0 0.0
      %945 = vmatprep.subr.mxu0 0.0
      %946 = vmatpush1.msra.mxu0 0.0
      %947 = vmatprep.subr.mxu0 0.0
      %948 = vmatpush1.msra.mxu0 0.0
      %949 = vmatprep.subr.mxu0 0.0
      %950 = vmatpush1.msra.mxu0 0.0
      %951 = vmatprep.subr.mxu0 0.0
      %952 = vmatpush1.msra.mxu0 0.0
      %953 = vmatprep.subr.mxu0 0.0
      %954 = vmatpush1.msra.mxu0 0.0
      %955 = vmatprep.subr.mxu0 0.0
      %956 = vmatpush1.msra.mxu0 0.0
      %957 = vmatprep.subr.mxu0 0.0
      %958 = vmatpush1.msra.mxu0 0.0
      %959 = vmatprep.subr.mxu0 0.0
      %960 = vmatpush1.msra.mxu0 0.0
      %961 = vmatprep.mubr.f32.mxu0 0.0
      %962 = vmatmul.mubr.f32.gmra.mrb[0].mxu0 %v847
      %v963 = vpop.f32.mrb[0].mxu0
      %v964 = vadd.f32 %v768, %v963
      %v965 = vpop.f32.mrb[0].mxu0
      %966 = vmatprep.mubr.f32.mxu0 0.0
      %967 = vmatmul.mubr.f32.gmra.mrb[0].mxu0 %v850
      %v968 = vpop.f32.mrb[0].mxu0
      %v969 = vadd.f32 %v773, %v968
      %v970 = vpop.f32.mrb[0].mxu0
      %971 = vmatprep.mubr.f32.mxu0 0.0
      %972 = vmatmul.mubr.f32.gmra.mrb[0].mxu0 %v853
      %v973 = vpop.f32.mrb[0].mxu0
      %v974 = vadd.f32 %v778, %v973
      %v975 = vpop.f32.mrb[0].mxu0
      %976 = vmatprep.mubr.f32.mxu0 0.0
      %977 = vmatmul.mubr.f32.gmra.mrb[0].mxu0 %v856
      %v978 = vpop.f32.mrb[0].mxu0
      %v979 = vadd.f32 %v783, %v978
      %v980 = vpop.f32.mrb[0].mxu0
      %981 = vmatprep.mubr.f32.mxu0 0.0
      %982 = vmatmul.mubr.f32.gmra.mrb[0].mxu0 %v859
      %v983 = vpop.f32.mrb[0].mxu0
      %v984 = vadd.f32 %v788, %v983
      %v985 = vpop.f32.mrb[0].mxu0
      %986 = vmatprep.mubr.f32.mxu0 0.0
      %987 = vmatmul.mubr.f32.gmra.mrb[0].mxu0 %v862
      %v988 = vpop.f32.mrb[0].mxu0
      %v989 = vadd.f32 %v793, %v988
      %v990 = vpop.f32.mrb[0].mxu0
      %991 = vmatprep.mubr.f32.mxu0 0.0
      %992 = vmatmul.mubr.f32.gmra.mrb[0].mxu0 %v865
      %v993 = vpop.f32.mrb[0].mxu0
      %v994 = vadd.f32 %v798, %v993
      %v995 = vpop.f32.mrb[0].mxu0
      %996 = vmatprep.mubr.f32.mxu0 0.0
      %997 = vmatmul.mubr.f32.gmra.mrb[0].mxu0 %v868
      %v998 = vpop.f32.mrb[0].mxu0
      %v999 = vadd.f32 %v803, %v998
      %v1000 = vpop.f32.mrb[0].mxu0
      %1001 = vmatprep.mubr.f32.mxu0 0.0
      %1002 = vmatmul.mubr.f32.gmra.mrb[0].mxu0 %v871
      %v1003 = vpop.f32.mrb[0].mxu0
      %v1004 = vadd.f32 %v808, %v1003
      %v1005 = vpop.f32.mrb[0].mxu0
      %1006 = vmatprep.mubr.f32.mxu0 0.0
      %1007 = vmatmul.mubr.f32.gmra.mrb[0].mxu0 %v874
      %v1008 = vpop.f32.mrb[0].mxu0
      %v1009 = vadd.f32 %v813, %v1008
      %v1010 = vpop.f32.mrb[0].mxu0
      %1011 = vmatprep.mubr.f32.mxu0 0.0
      %1012 = vmatmul.mubr.f32.gmra.mrb[0].mxu0 %v877
      %v1013 = vpop.f32.mrb[0].mxu0
      %v1014 = vadd.f32 %v818, %v1013
      %v1015 = vpop.f32.mrb[0].mxu0
      %1016 = vmatprep.mubr.f32.mxu0 0.0
      %1017 = vmatmul.mubr.f32.gmra.mrb[0].mxu0 %v880
      %v1018 = vpop.f32.mrb[0].mxu0
      %v1019 = vadd.f32 %v823, %v1018
      %v1020 = vpop.f32.mrb[0].mxu0
      %1021 = vmatprep.mubr.f32.mxu0 0.0
      %1022 = vmatmul.mubr.f32.gmra.mrb[0].mxu0 %v883
      %v1023 = vpop.f32.mrb[0].mxu0
      %v1024 = vadd.f32 %v828, %v1023
      %v1025 = vpop.f32.mrb[0].mxu0
      %1026 = vmatprep.mubr.f32.mxu0 0.0
      %1027 = vmatmul.mubr.f32.gmra.mrb[0].mxu0 %v886
      %v1028 = vpop.f32.mrb[0].mxu0
      %v1029 = vadd.f32 %v833, %v1028
      %v1030 = vpop.f32.mrb[0].mxu0
      %1031 = vmatprep.mubr.f32.mxu0 0.0
      %1032 = vmatmul.mubr.f32.gmra.mrb[0].mxu0 %v889
      %v1033 = vpop.f32.mrb[0].mxu0
      %v1034 = vadd.f32 %v838, %v1033
      %v1035 = vpop.f32.mrb[0].mxu0
      %1036 = vmatprep.mubr.f32.mxu0 0.0
      %1037 = vmatmul.mubr.f32.gmra.mrb[0].mxu0 %v892
      %v1038 = vpop.f32.mrb[0].mxu0
      %v1039 = vadd.f32 %v843, %v1038
      %v1040 = vpop.f32.mrb[0].mxu0
      %1041 = vdwg.mxu0
      %v1042 = vld [vmem:[%s596 + $0x2] sm:$0xff]
      %v1043 = vld [vmem:[%s596 + $0xa] sm:$0xff]
      %v1044 = vld [vmem:[%s596 + $0x12] sm:$0xff]
      %v1045 = vld [vmem:[%s596 + $0x1a] sm:$0xff]
      %v1046 = vld [vmem:[%s596 + $0x22] sm:$0xff]
      %v1047 = vld [vmem:[%s596 + $0x2a] sm:$0xff]
      %v1048 = vld [vmem:[%s596 + $0x32] sm:$0xff]
      %v1049 = vld [vmem:[%s596 + $0x3a] sm:$0xff]
      %v1050 = vld [vmem:[%s596 + $0x42] sm:$0xff]
      %v1051 = vld [vmem:[%s596 + $0x4a] sm:$0xff]
      %v1052 = vld [vmem:[%s596 + $0x52] sm:$0xff]
      %v1053 = vld [vmem:[%s596 + $0x5a] sm:$0xff]
      %v1054 = vld [vmem:[%s596 + $0x62] sm:$0xff]
      %v1055 = vld [vmem:[%s596 + $0x6a] sm:$0xff]
      %v1056 = vld [vmem:[%s596 + $0x72] sm:$0xff]
      %v1057 = vld [vmem:[%s596 + $0x7a] sm:$0xf]
      %s1058 = scalar_lea.vmem %s1, 112
      %v1059 = vld [vmem:[%s1058] sm:$0xff]
      %v1060 = vld [vmem:[%s1058 + $0x8] sm:$0xff]
      %v1061 = vld [vmem:[%s1058 + $0x10] sm:$0xff]
      %v1062 = vld [vmem:[%s1058 + $0x18] sm:$0xff]
      %v1063 = vld [vmem:[%s1058 + $0x20] sm:$0xff]
      %v1064 = vld [vmem:[%s1058 + $0x28] sm:$0xff]
      %v1065 = vld [vmem:[%s1058 + $0x30] sm:$0x3f]
      %v1067 = vsel %vm648, %v1042, 0
      %v1070 = vsel %vm648, %v1043, 0
      %v1073 = vsel %vm648, %v1044, 0
      %v1076 = vsel %vm648, %v1045, 0
      %v1079 = vsel %vm648, %v1046, 0
      %v1082 = vsel %vm648, %v1047, 0
      %v1085 = vsel %vm648, %v1048, 0
      %v1088 = vsel %vm648, %v1049, 0
      %v1091 = vsel %vm648, %v1050, 0
      %v1094 = vsel %vm648, %v1051, 0
      %v1097 = vsel %vm648, %v1052, 0
      %v1100 = vsel %vm648, %v1053, 0
      %v1103 = vsel %vm648, %v1054, 0
      %v1106 = vsel %vm648, %v1055, 0
      %v1109 = vsel %vm648, %v1056, 0
      %v1112 = vsel %vm648, %v1057, 0
      %v1115 = vsel %vm697, %v1065, 0
      %1117 = vmatprep.subr.mxu0 0.0
      %1118 = vmatpush1.msra.mxu0 %v1059
      %1119 = vmatprep.subr.mxu0 0.0
      %1120 = vmatpush1.msra.mxu0 %v1060
      %1121 = vmatprep.subr.mxu0 0.0
      %1122 = vmatpush1.msra.mxu0 %v1061
      %1123 = vmatprep.subr.mxu0 0.0
      %1124 = vmatpush1.msra.mxu0 %v1062
      %1125 = vmatprep.subr.mxu0 0.0
      %1126 = vmatpush1.msra.mxu0 %v1063
      %1127 = vmatprep.subr.mxu0 0.0
      %1128 = vmatpush1.msra.mxu0 %v1064
      %1129 = vmatprep.subr.mxu0 0.0
      %1130 = vmatpush1.msra.mxu0 %v1115
      %1131 = vmatprep.subr.mxu0 0.0
      %1132 = vmatpush1.msra.mxu0 0.0
      %1133 = vmatprep.subr.mxu0 0.0
      %1134 = vmatpush1.msra.mxu0 0.0
      %1135 = vmatprep.subr.mxu0 0.0
      %1136 = vmatpush1.msra.mxu0 0.0
      %1137 = vmatprep.subr.mxu0 0.0
      %1138 = vmatpush1.msra.mxu0 0.0
      %1139 = vmatprep.subr.mxu0 0.0
      %1140 = vmatpush1.msra.mxu0 0.0
      %1141 = vmatprep.subr.mxu0 0.0
      %1142 = vmatpush1.msra.mxu0 0.0
      %1143 = vmatprep.subr.mxu0 0.0
      %1144 = vmatpush1.msra.mxu0 0.0
      %1145 = vmatprep.subr.mxu0 0.0
      %1146 = vmatpush1.msra.mxu0 0.0
      %1147 = vmatprep.subr.mxu0 0.0
      %1148 = vmatpush1.msra.mxu0 0.0
      %1149 = vmatprep.subr.mxu0 0.0
      %1150 = vmatpush1.msra.mxu0 0.0
      %1151 = vmatprep.subr.mxu0 0.0
      %1152 = vmatpush1.msra.mxu0 0.0
      %1153 = vmatprep.subr.mxu0 0.0
      %1154 = vmatpush1.msra.mxu0 0.0
      %1155 = vmatprep.subr.mxu0 0.0
      %1156 = vmatpush1.msra.mxu0 0.0
      %1157 = vmatprep.subr.mxu0 0.0
      %1158 = vmatpush1.msra.mxu0 0.0
      %1159 = vmatprep.subr.mxu0 0.0
      %1160 = vmatpush1.msra.mxu0 0.0
      %1161 = vmatprep.subr.mxu0 0.0
      %1162 = vmatpush1.msra.mxu0 0.0
      %1163 = vmatprep.subr.mxu0 0.0
      %1164 = vmatpush1.msra.mxu0 0.0
      %1165 = vmatprep.subr.mxu0 0.0
      %1166 = vmatpush1.msra.mxu0 0.0
      %1167 = vmatprep.subr.mxu0 0.0
      %1168 = vmatpush1.msra.mxu0 0.0
      %1169 = vmatprep.subr.mxu0 0.0
      %1170 = vmatpush1.msra.mxu0 0.0
      %1171 = vmatprep.subr.mxu0 0.0
      %1172 = vmatpush1.msra.mxu0 0.0
      %1173 = vmatprep.subr.mxu0 0.0
      %1174 = vmatpush1.msra.mxu0 0.0
      %1175 = vmatprep.subr.mxu0 0.0
      %1176 = vmatpush1.msra.mxu0 0.0
      %1177 = vmatprep.subr.mxu0 0.0
      %1178 = vmatpush1.msra.mxu0 0.0
      %1179 = vmatprep.subr.mxu0 0.0
      %1180 = vmatpush1.msra.mxu0 0.0
      %1181 = vmatprep.mubr.f32.mxu0 0.0
      %1182 = vmatmul.mubr.f32.gmra.mrb[0].mxu0 %v1067
      %v1183 = vpop.f32.mrb[0].mxu0
      %v1184 = vadd.f32 0.0, %v1183
      %v1185 = vpop.f32.mrb[0].mxu0
      %1186 = vmatprep.mubr.f32.mxu0 0.0
      %1187 = vmatmul.mubr.f32.gmra.mrb[0].mxu0 %v1070
      %v1188 = vpop.f32.mrb[0].mxu0
      %v1189 = vadd.f32 0.0, %v1188
      %v1190 = vpop.f32.mrb[0].mxu0
      %1191 = vmatprep.mubr.f32.mxu0 0.0
      %1192 = vmatmul.mubr.f32.gmra.mrb[0].mxu0 %v1073
      %v1193 = vpop.f32.mrb[0].mxu0
      %v1194 = vadd.f32 0.0, %v1193
      %v1195 = vpop.f32.mrb[0].mxu0
      %1196 = vmatprep.mubr.f32.mxu0 0.0
      %1197 = vmatmul.mubr.f32.gmra.mrb[0].mxu0 %v1076
      %v1198 = vpop.f32.mrb[0].mxu0
      %v1199 = vadd.f32 0.0, %v1198
      %v1200 = vpop.f32.mrb[0].mxu0
      %1201 = vmatprep.mubr.f32.mxu0 0.0
      %1202 = vmatmul.mubr.f32.gmra.mrb[0].mxu0 %v1079
      %v1203 = vpop.f32.mrb[0].mxu0
      %v1204 = vadd.f32 0.0, %v1203
      %v1205 = vpop.f32.mrb[0].mxu0
      %1206 = vmatprep.mubr.f32.mxu0 0.0
      %1207 = vmatmul.mubr.f32.gmra.mrb[0].mxu0 %v1082
      %v1208 = vpop.f32.mrb[0].mxu0
      %v1209 = vadd.f32 0.0, %v1208
      %v1210 = vpop.f32.mrb[0].mxu0
      %1211 = vmatprep.mubr.f32.mxu0 0.0
      %1212 = vmatmul.mubr.f32.gmra.mrb[0].mxu0 %v1085
      %v1213 = vpop.f32.mrb[0].mxu0
      %v1214 = vadd.f32 0.0, %v1213
      %v1215 = vpop.f32.mrb[0].mxu0
      %1216 = vmatprep.mubr.f32.mxu0 0.0
      %1217 = vmatmul.mubr.f32.gmra.mrb[0].mxu0 %v1088
      %v1218 = vpop.f32.mrb[0].mxu0
      %v1219 = vadd.f32 0.0, %v1218
      %v1220 = vpop.f32.mrb[0].mxu0
      %1221 = vmatprep.mubr.f32.mxu0 0.0
      %1222 = vmatmul.mubr.f32.gmra.mrb[0].mxu0 %v1091
      %v1223 = vpop.f32.mrb[0].mxu0
      %v1224 = vadd.f32 0.0, %v1223
      %v1225 = vpop.f32.mrb[0].mxu0
      %1226 = vmatprep.mubr.f32.mxu0 0.0
      %1227 = vmatmul.mubr.f32.gmra.mrb[0].mxu0 %v1094
      %v1228 = vpop.f32.mrb[0].mxu0
      %v1229 = vadd.f32 0.0, %v1228
      %v1230 = vpop.f32.mrb[0].mxu0
      %1231 = vmatprep.mubr.f32.mxu0 0.0
      %1232 = vmatmul.mubr.f32.gmra.mrb[0].mxu0 %v1097
      %v1233 = vpop.f32.mrb[0].mxu0
      %v1234 = vadd.f32 0.0, %v1233
      %v1235 = vpop.f32.mrb[0].mxu0
      %1236 = vmatprep.mubr.f32.mxu0 0.0
      %1237 = vmatmul.mubr.f32.gmra.mrb[0].mxu0 %v1100
      %v1238 = vpop.f32.mrb[0].mxu0
      %v1239 = vadd.f32 0.0, %v1238
      %v1240 = vpop.f32.mrb[0].mxu0
      %1241 = vmatprep.mubr.f32.mxu0 0.0
      %1242 = vmatmul.mubr.f32.gmra.mrb[0].mxu0 %v1103
      %v1243 = vpop.f32.mrb[0].mxu0
      %v1244 = vadd.f32 0.0, %v1243
      %v1245 = vpop.f32.mrb[0].mxu0
      %1246 = vmatprep.mubr.f32.mxu0 0.0
      %1247 = vmatmul.mubr.f32.gmra.mrb[0].mxu0 %v1106
      %v1248 = vpop.f32.mrb[0].mxu0
      %v1249 = vadd.f32 0.0, %v1248
      %v1250 = vpop.f32.mrb[0].mxu0
      %1251 = vmatprep.mubr.f32.mxu0 0.0
      %1252 = vmatmul.mubr.f32.gmra.mrb[0].mxu0 %v1109
      %v1253 = vpop.f32.mrb[0].mxu0
      %v1254 = vadd.f32 0.0, %v1253
      %v1255 = vpop.f32.mrb[0].mxu0
      %1256 = vmatprep.mubr.f32.mxu0 0.0
      %1257 = vmatmul.mubr.f32.gmra.mrb[0].mxu0 %v1112
      %v1258 = vpop.f32.mrb[0].mxu0
      %v1259 = vadd.f32 0.0, %v1258
      %v1260 = vpop.f32.mrb[0].mxu0
      %1261 = vdwg.mxu0
      %v1262 = vadd.f32 %v964, %v1184
      %v1263 = vadd.f32 %v969, %v1189
      %v1264 = vadd.f32 %v974, %v1194
      %v1265 = vadd.f32 %v979, %v1199
      %v1266 = vadd.f32 %v984, %v1204
      %v1267 = vadd.f32 %v989, %v1209
      %v1268 = vadd.f32 %v994, %v1214
      %v1269 = vadd.f32 %v999, %v1219
      %v1270 = vadd.f32 %v1004, %v1224
      %v1271 = vadd.f32 %v1009, %v1229
      %v1272 = vadd.f32 %v1014, %v1234
      %v1273 = vadd.f32 %v1019, %v1239
      %v1274 = vadd.f32 %v1024, %v1244
      %v1275 = vadd.f32 %v1029, %v1249
      %v1276 = vadd.f32 %v1034, %v1254
      %v1277 = vadd.f32 %v1039, %v1259
      %v1278 = vld [vmem:[%s2] sm:$0x1]
      %v1280 = vlaneseq
      %v1281 = vshrl.u32 %v1280, 7
      %v1282 = vsub.s32 0, %v1281
      %v1283 = vrot.slane %v1278, %v1282
      %v1285 = vadd.f32 %v1262, %v1283
      %v1286 = vadd.f32 %v1263, %v1283
      %v1287 = vadd.f32 %v1264, %v1283
      %v1288 = vadd.f32 %v1265, %v1283
      %v1289 = vadd.f32 %v1266, %v1283
      %v1290 = vadd.f32 %v1267, %v1283
      %v1291 = vadd.f32 %v1268, %v1283
      %v1292 = vadd.f32 %v1269, %v1283
      %v1293 = vadd.f32 %v1270, %v1283
      %v1294 = vadd.f32 %v1271, %v1283
      %v1295 = vadd.f32 %v1272, %v1283
      %v1296 = vadd.f32 %v1273, %v1283
      %v1297 = vadd.f32 %v1274, %v1283
      %v1298 = vadd.f32 %v1275, %v1283
      %v1299 = vadd.f32 %v1276, %v1283
      %v1300 = vadd.f32 %v1277, %v1283
      %v1301 = vmax.f32 %v1285, 0.0
      %v1302 = vmax.f32 %v1286, 0.0
      %v1303 = vmax.f32 %v1287, 0.0
      %v1304 = vmax.f32 %v1288, 0.0
      %v1305 = vmax.f32 %v1289, 0.0
      %v1306 = vmax.f32 %v1290, 0.0
      %v1307 = vmax.f32 %v1291, 0.0
      %v1308 = vmax.f32 %v1292, 0.0
      %v1309 = vmax.f32 %v1293, 0.0
      %v1310 = vmax.f32 %v1294, 0.0
      %v1311 = vmax.f32 %v1295, 0.0
      %v1312 = vmax.f32 %v1296, 0.0
      %v1313 = vmax.f32 %v1297, 0.0
      %v1314 = vmax.f32 %v1298, 0.0
      %v1315 = vmax.f32 %v1299, 0.0
      %v1316 = vmax.f32 %v1300, 0.0
      %1333 = vrot.lane.b32.xlu0 %v1301, 120
      %v1334 = vpop.permute.xlu0 %1333
      %1335 = vrot.lane.b32.xlu0 %v1302, 120
      %v1336 = vpop.permute.xlu0 %1335
      %1337 = vrot.lane.b32.xlu0 %v1303, 120
      %v1338 = vpop.permute.xlu0 %1337
      %1339 = vrot.lane.b32.xlu0 %v1304, 120
      %v1340 = vpop.permute.xlu0 %1339
      %1341 = vrot.lane.b32.xlu0 %v1305, 120
      %v1342 = vpop.permute.xlu0 %1341
      %1343 = vrot.lane.b32.xlu0 %v1306, 120
      %v1344 = vpop.permute.xlu0 %1343
      %1345 = vrot.lane.b32.xlu0 %v1307, 120
      %v1346 = vpop.permute.xlu0 %1345
      %1347 = vrot.lane.b32.xlu0 %v1308, 120
      %v1348 = vpop.permute.xlu0 %1347
      %1349 = vrot.lane.b32.xlu0 %v1309, 120
      %v1350 = vpop.permute.xlu0 %1349
      %1351 = vrot.lane.b32.xlu0 %v1310, 120
      %v1352 = vpop.permute.xlu0 %1351
      %1353 = vrot.lane.b32.xlu0 %v1311, 120
      %v1354 = vpop.permute.xlu0 %1353
      %1355 = vrot.lane.b32.xlu0 %v1312, 120
      %v1356 = vpop.permute.xlu0 %1355
      %1357 = vrot.lane.b32.xlu0 %v1313, 120
      %v1358 = vpop.permute.xlu0 %1357
      %1359 = vrot.lane.b32.xlu0 %v1314, 120
      %v1360 = vpop.permute.xlu0 %1359
      %1361 = vrot.lane.b32.xlu0 %v1315, 120
      %v1362 = vpop.permute.xlu0 %1361
      %1363 = vrot.lane.b32.xlu0 %v1316, 120
      %v1364 = vpop.permute.xlu0 %1363
      %v1381 = vmax.f32 %v1301, %v1334
      %v1382 = vmax.f32 %v1302, %v1336
      %v1383 = vmax.f32 %v1303, %v1338
      %v1384 = vmax.f32 %v1304, %v1340
      %v1385 = vmax.f32 %v1305, %v1342
      %v1386 = vmax.f32 %v1306, %v1344
      %v1387 = vmax.f32 %v1307, %v1346
      %v1388 = vmax.f32 %v1308, %v1348
      %v1389 = vmax.f32 %v1309, %v1350
      %v1390 = vmax.f32 %v1310, %v1352
      %v1391 = vmax.f32 %v1311, %v1354
      %v1392 = vmax.f32 %v1312, %v1356
      %v1393 = vmax.f32 %v1313, %v1358
      %v1394 = vmax.f32 %v1314, %v1360
      %v1395 = vmax.f32 %v1315, %v1362
      %v1396 = vmax.f32 %v1316, %v1364
      %v1397 = vld [vmem:[%s3] sm:$0xff]
      %v1398 = vld [vmem:[%s3 + $0x8] sm:$0xff]
      %v1399 = vld [vmem:[%s3 + $0x10] sm:$0xff]
      %v1400 = vld [vmem:[%s3 + $0x18] sm:$0xff]
      %v1401 = vld [vmem:[%s3 + $0x20] sm:$0xff]
      %v1402 = vld [vmem:[%s3 + $0x28] sm:$0xff]
      %v1403 = vld [vmem:[%s3 + $0x30] sm:$0xff]
      %v1404 = vld [vmem:[%s3 + $0x38] sm:$0xff]
      %v1405 = vld [vmem:[%s3 + $0x40] sm:$0x3f]
      %vm1406 = vcmask 1014784
      %v1408 = vsel %vm1406, %v1397, 0
      %v1411 = vsel %vm1406, %v1398, 0
      %v1414 = vsel %vm1406, %v1399, 0
      %v1417 = vsel %vm1406, %v1400, 0
      %v1420 = vsel %vm1406, %v1401, 0
      %v1423 = vsel %vm1406, %v1402, 0
      %v1426 = vsel %vm1406, %v1403, 0
      %v1429 = vsel %vm1406, %v1404, 0
      %v1432 = vsel %vm1406, %v1405, 0
      %vm1434 = vcmask 1043456
      %v1436 = vsel %vm1434, %v1396, 0
      %1438 = vmatprep.subr.mxu0 0.0
      %1439 = vmatpush1.msra.mxu0 %v1381
      %1440 = vmatprep.subr.mxu0 0.0
      %1441 = vmatpush1.msra.mxu0 %v1382
      %1442 = vmatprep.subr.mxu0 0.0
      %1443 = vmatpush1.msra.mxu0 %v1383
      %1444 = vmatprep.subr.mxu0 0.0
      %1445 = vmatpush1.msra.mxu0 %v1384
      %1446 = vmatprep.subr.mxu0 0.0
      %1447 = vmatpush1.msra.mxu0 %v1385
      %1448 = vmatprep.subr.mxu0 0.0
      %1449 = vmatpush1.msra.mxu0 %v1386
      %1450 = vmatprep.subr.mxu0 0.0
      %1451 = vmatpush1.msra.mxu0 %v1387
      %1452 = vmatprep.subr.mxu0 0.0
      %1453 = vmatpush1.msra.mxu0 %v1388
      %1454 = vmatprep.subr.mxu0 0.0
      %1455 = vmatpush1.msra.mxu0 %v1389
      %1456 = vmatprep.subr.mxu0 0.0
      %1457 = vmatpush1.msra.mxu0 %v1390
      %1458 = vmatprep.subr.mxu0 0.0
      %1459 = vmatpush1.msra.mxu0 %v1391
      %1460 = vmatprep.subr.mxu0 0.0
      %1461 = vmatpush1.msra.mxu0 %v1392
      %1462 = vmatprep.subr.mxu0 0.0
      %1463 = vmatpush1.msra.mxu0 %v1393
      %1464 = vmatprep.subr.mxu0 0.0
      %1465 = vmatpush1.msra.mxu0 %v1394
      %1466 = vmatprep.subr.mxu0 0.0
      %1467 = vmatpush1.msra.mxu0 %v1395
      %1468 = vmatprep.subr.mxu0 0.0
      %1469 = vmatpush1.msra.mxu0 %v1436
      %1470 = vmatprep.subr.mxu0 0.0
      %1471 = vmatpush1.msra.mxu0 0.0
      %1472 = vmatprep.subr.mxu0 0.0
      %1473 = vmatpush1.msra.mxu0 0.0
      %1474 = vmatprep.subr.mxu0 0.0
      %1475 = vmatpush1.msra.mxu0 0.0
      %1476 = vmatprep.subr.mxu0 0.0
      %1477 = vmatpush1.msra.mxu0 0.0
      %1478 = vmatprep.subr.mxu0 0.0
      %1479 = vmatpush1.msra.mxu0 0.0
      %1480 = vmatprep.subr.mxu0 0.0
      %1481 = vmatpush1.msra.mxu0 0.0
      %1482 = vmatprep.subr.mxu0 0.0
      %1483 = vmatpush1.msra.mxu0 0.0
      %1484 = vmatprep.subr.mxu0 0.0
      %1485 = vmatpush1.msra.mxu0 0.0
      %1486 = vmatprep.subr.mxu0 0.0
      %1487 = vmatpush1.msra.mxu0 0.0
      %1488 = vmatprep.subr.mxu0 0.0
      %1489 = vmatpush1.msra.mxu0 0.0
      %1490 = vmatprep.subr.mxu0 0.0
      %1491 = vmatpush1.msra.mxu0 0.0
      %1492 = vmatprep.subr.mxu0 0.0
      %1493 = vmatpush1.msra.mxu0 0.0
      %1494 = vmatprep.subr.mxu0 0.0
      %1495 = vmatpush1.msra.mxu0 0.0
      %1496 = vmatprep.subr.mxu0 0.0
      %1497 = vmatpush1.msra.mxu0 0.0
      %1498 = vmatprep.subr.mxu0 0.0
      %1499 = vmatpush1.msra.mxu0 0.0
      %1500 = vmatprep.subr.mxu0 0.0
      %1501 = vmatpush1.msra.mxu0 0.0
      %1502 = vmatprep.mubr.f32.mxu0 0.0
      %1503 = vmatmul.mubr.f32.gmra.mrb[0].mxu0 %v1408
      %v1504 = vpop.f32.mrb[0].mxu0
      %v1505 = vadd.f32 0.0, %v1504
      %v1506 = vpop.f32.mrb[0].mxu0
      %1507 = vmatprep.mubr.f32.mxu0 0.0
      %1508 = vmatmul.mubr.f32.gmra.mrb[0].mxu0 %v1411
      %v1509 = vpop.f32.mrb[0].mxu0
      %v1510 = vadd.f32 0.0, %v1509
      %v1511 = vpop.f32.mrb[0].mxu0
      %1512 = vmatprep.mubr.f32.mxu0 0.0
      %1513 = vmatmul.mubr.f32.gmra.mrb[0].mxu0 %v1414
      %v1514 = vpop.f32.mrb[0].mxu0
      %v1515 = vadd.f32 0.0, %v1514
      %v1516 = vpop.f32.mrb[0].mxu0
      %1517 = vmatprep.mubr.f32.mxu0 0.0
      %1518 = vmatmul.mubr.f32.gmra.mrb[0].mxu0 %v1417
      %v1519 = vpop.f32.mrb[0].mxu0
      %v1520 = vadd.f32 0.0, %v1519
      %v1521 = vpop.f32.mrb[0].mxu0
      %1522 = vmatprep.mubr.f32.mxu0 0.0
      %1523 = vmatmul.mubr.f32.gmra.mrb[0].mxu0 %v1420
      %v1524 = vpop.f32.mrb[0].mxu0
      %v1525 = vadd.f32 0.0, %v1524
      %v1526 = vpop.f32.mrb[0].mxu0
      %1527 = vmatprep.mubr.f32.mxu0 0.0
      %1528 = vmatmul.mubr.f32.gmra.mrb[0].mxu0 %v1423
      %v1529 = vpop.f32.mrb[0].mxu0
      %v1530 = vadd.f32 0.0, %v1529
      %v1531 = vpop.f32.mrb[0].mxu0
      %1532 = vmatprep.mubr.f32.mxu0 0.0
      %1533 = vmatmul.mubr.f32.gmra.mrb[0].mxu0 %v1426
      %v1534 = vpop.f32.mrb[0].mxu0
      %v1535 = vadd.f32 0.0, %v1534
      %v1536 = vpop.f32.mrb[0].mxu0
      %1537 = vmatprep.mubr.f32.mxu0 0.0
      %1538 = vmatmul.mubr.f32.gmra.mrb[0].mxu0 %v1429
      %v1539 = vpop.f32.mrb[0].mxu0
      %v1540 = vadd.f32 0.0, %v1539
      %v1541 = vpop.f32.mrb[0].mxu0
      %1542 = vmatprep.mubr.f32.mxu0 0.0
      %1543 = vmatmul.mubr.f32.gmra.mrb[0].mxu0 %v1432
      %v1544 = vpop.f32.mrb[0].mxu0
      %v1545 = vadd.f32 0.0, %v1544
      %v1546 = vpop.f32.mrb[0].mxu0
      %1547 = vdwg.mxu0
      %s1548 = scalar_lea.vmem %s3, 72
      %v1549 = vld [vmem:[%s1548] sm:$0xff]
      %v1550 = vld [vmem:[%s1548 + $0x8] sm:$0xff]
      %v1551 = vld [vmem:[%s1548 + $0x10] sm:$0xff]
      %v1552 = vld [vmem:[%s1548 + $0x18] sm:$0xff]
      %v1553 = vld [vmem:[%s1548 + $0x20] sm:$0xff]
      %v1554 = vld [vmem:[%s1548 + $0x28] sm:$0xff]
      %v1555 = vld [vmem:[%s1548 + $0x30] sm:$0xff]
      %v1556 = vld [vmem:[%s1548 + $0x38] sm:$0xff]
      %v1557 = vld [vmem:[%s1548 + $0x40] sm:$0x3f]
      %v1559 = vsel %vm1406, %v1549, 0
      %v1562 = vsel %vm1406, %v1550, 0
      %v1565 = vsel %vm1406, %v1551, 0
      %v1568 = vsel %vm1406, %v1552, 0
      %v1571 = vsel %vm1406, %v1553, 0
      %v1574 = vsel %vm1406, %v1554, 0
      %v1577 = vsel %vm1406, %v1555, 0
      %v1580 = vsel %vm1406, %v1556, 0
      %v1583 = vsel %vm1406, %v1557, 0
      %1585 = vmatprep.subr.mxu0 0.0
      %1586 = vmatpush1.msra.mxu0 %v1381
      %1587 = vmatprep.subr.mxu0 0.0
      %1588 = vmatpush1.msra.mxu0 %v1382
      %1589 = vmatprep.subr.mxu0 0.0
      %1590 = vmatpush1.msra.mxu0 %v1383
      %1591 = vmatprep.subr.mxu0 0.0
      %1592 = vmatpush1.msra.mxu0 %v1384
      %1593 = vmatprep.subr.mxu0 0.0
      %1594 = vmatpush1.msra.mxu0 %v1385
      %1595 = vmatprep.subr.mxu0 0.0
      %1596 = vmatpush1.msra.mxu0 %v1386
      %1597 = vmatprep.subr.mxu0 0.0
      %1598 = vmatpush1.msra.mxu0 %v1387
      %1599 = vmatprep.subr.mxu0 0.0
      %1600 = vmatpush1.msra.mxu0 %v1388
      %1601 = vmatprep.subr.mxu0 0.0
      %1602 = vmatpush1.msra.mxu0 %v1389
      %1603 = vmatprep.subr.mxu0 0.0
      %1604 = vmatpush1.msra.mxu0 %v1390
      %1605 = vmatprep.subr.mxu0 0.0
      %1606 = vmatpush1.msra.mxu0 %v1391
      %1607 = vmatprep.subr.mxu0 0.0
      %1608 = vmatpush1.msra.mxu0 %v1392
      %1609 = vmatprep.subr.mxu0 0.0
      %1610 = vmatpush1.msra.mxu0 %v1393
      %1611 = vmatprep.subr.mxu0 0.0
      %1612 = vmatpush1.msra.mxu0 %v1394
      %1613 = vmatprep.subr.mxu0 0.0
      %1614 = vmatpush1.msra.mxu0 %v1395
      %1615 = vmatprep.subr.mxu0 0.0
      %1616 = vmatpush1.msra.mxu0 %v1436
      %1617 = vmatprep.subr.mxu0 0.0
      %1618 = vmatpush1.msra.mxu0 0.0
      %1619 = vmatprep.subr.mxu0 0.0
      %1620 = vmatpush1.msra.mxu0 0.0
      %1621 = vmatprep.subr.mxu0 0.0
      %1622 = vmatpush1.msra.mxu0 0.0
      %1623 = vmatprep.subr.mxu0 0.0
      %1624 = vmatpush1.msra.mxu0 0.0
      %1625 = vmatprep.subr.mxu0 0.0
      %1626 = vmatpush1.msra.mxu0 0.0
      %1627 = vmatprep.subr.mxu0 0.0
      %1628 = vmatpush1.msra.mxu0 0.0
      %1629 = vmatprep.subr.mxu0 0.0
      %1630 = vmatpush1.msra.mxu0 0.0
      %1631 = vmatprep.subr.mxu0 0.0
      %1632 = vmatpush1.msra.mxu0 0.0
      %1633 = vmatprep.subr.mxu0 0.0
      %1634 = vmatpush1.msra.mxu0 0.0
      %1635 = vmatprep.subr.mxu0 0.0
      %1636 = vmatpush1.msra.mxu0 0.0
      %1637 = vmatprep.subr.mxu0 0.0
      %1638 = vmatpush1.msra.mxu0 0.0
      %1639 = vmatprep.subr.mxu0 0.0
      %1640 = vmatpush1.msra.mxu0 0.0
      %1641 = vmatprep.subr.mxu0 0.0
      %1642 = vmatpush1.msra.mxu0 0.0
      %1643 = vmatprep.subr.mxu0 0.0
      %1644 = vmatpush1.msra.mxu0 0.0
      %1645 = vmatprep.subr.mxu0 0.0
      %1646 = vmatpush1.msra.mxu0 0.0
      %1647 = vmatprep.subr.mxu0 0.0
      %1648 = vmatpush1.msra.mxu0 0.0
      %1649 = vmatprep.mubr.f32.mxu0 0.0
      %1650 = vmatmul.mubr.f32.gmra.mrb[0].mxu0 %v1559
      %v1651 = vpop.f32.mrb[0].mxu0
      %v1652 = vadd.f32 0.0, %v1651
      %v1653 = vpop.f32.mrb[0].mxu0
      %1654 = vmatprep.mubr.f32.mxu0 0.0
      %1655 = vmatmul.mubr.f32.gmra.mrb[0].mxu0 %v1562
      %v1656 = vpop.f32.mrb[0].mxu0
      %v1657 = vadd.f32 0.0, %v1656
      %v1658 = vpop.f32.mrb[0].mxu0
      %1659 = vmatprep.mubr.f32.mxu0 0.0
      %1660 = vmatmul.mubr.f32.gmra.mrb[0].mxu0 %v1565
      %v1661 = vpop.f32.mrb[0].mxu0
      %v1662 = vadd.f32 0.0, %v1661
      %v1663 = vpop.f32.mrb[0].mxu0
      %1664 = vmatprep.mubr.f32.mxu0 0.0
      %1665 = vmatmul.mubr.f32.gmra.mrb[0].mxu0 %v1568
      %v1666 = vpop.f32.mrb[0].mxu0
      %v1667 = vadd.f32 0.0, %v1666
      %v1668 = vpop.f32.mrb[0].mxu0
      %1669 = vmatprep.mubr.f32.mxu0 0.0
      %1670 = vmatmul.mubr.f32.gmra.mrb[0].mxu0 %v1571
      %v1671 = vpop.f32.mrb[0].mxu0
      %v1672 = vadd.f32 0.0, %v1671
      %v1673 = vpop.f32.mrb[0].mxu0
      %1674 = vmatprep.mubr.f32.mxu0 0.0
      %1675 = vmatmul.mubr.f32.gmra.mrb[0].mxu0 %v1574
      %v1676 = vpop.f32.mrb[0].mxu0
      %v1677 = vadd.f32 0.0, %v1676
      %v1678 = vpop.f32.mrb[0].mxu0
      %1679 = vmatprep.mubr.f32.mxu0 0.0
      %1680 = vmatmul.mubr.f32.gmra.mrb[0].mxu0 %v1577
      %v1681 = vpop.f32.mrb[0].mxu0
      %v1682 = vadd.f32 0.0, %v1681
      %v1683 = vpop.f32.mrb[0].mxu0
      %1684 = vmatprep.mubr.f32.mxu0 0.0
      %1685 = vmatmul.mubr.f32.gmra.mrb[0].mxu0 %v1580
      %v1686 = vpop.f32.mrb[0].mxu0
      %v1687 = vadd.f32 0.0, %v1686
      %v1688 = vpop.f32.mrb[0].mxu0
      %1689 = vmatprep.mubr.f32.mxu0 0.0
      %1690 = vmatmul.mubr.f32.gmra.mrb[0].mxu0 %v1583
      %v1691 = vpop.f32.mrb[0].mxu0
      %v1692 = vadd.f32 0.0, %v1691
      %v1693 = vpop.f32.mrb[0].mxu0
      %1694 = vdwg.mxu0
      %v1695 = vmax.f32 %v1505, %v1652
      %v1696 = vmax.f32 %v1510, %v1657
      %v1697 = vmax.f32 %v1515, %v1662
      %v1698 = vmax.f32 %v1520, %v1667
      %v1699 = vmax.f32 %v1525, %v1672
      %v1700 = vmax.f32 %v1530, %v1677
      %v1701 = vmax.f32 %v1535, %v1682
      %v1702 = vmax.f32 %v1540, %v1687
      %v1703 = vmax.f32 %v1545, %v1692
      %vm1704 = vcmask 982016
      %1705 = vst.msk [vmem:[#allocation2] sm:$0xff] %vm1704, %v1695
      %1706 = vst.msk [vmem:[#allocation2 + $0x8] sm:$0xff] %vm1704, %v1696
      %1707 = vst.msk [vmem:[#allocation2 + $0x10] sm:$0xff] %vm1704, %v1697
      %1708 = vst.msk [vmem:[#allocation2 + $0x18] sm:$0xff] %vm1704, %v1698
      %1709 = vst.msk [vmem:[#allocation2 + $0x20] sm:$0xff] %vm1704, %v1699
      %1710 = vst.msk [vmem:[#allocation2 + $0x28] sm:$0xff] %vm1704, %v1700
      %1711 = vst.msk [vmem:[#allocation2 + $0x30] sm:$0xff] %vm1704, %v1701
      %1712 = vst.msk [vmem:[#allocation2 + $0x38] sm:$0xff] %vm1704, %v1702
      %vm1713 = vcmask 979968
      %1714 = vst.msk [vmem:[#allocation2 + $0x40] sm:$0x3f] %vm1713, %v1703
      %v1715 = vld [vmem:[#allocation2] sm:$0xff]
      %v1716 = vld [vmem:[#allocation2 + $0x8] sm:$0xff]
      %v1717 = vld [vmem:[#allocation2 + $0x10] sm:$0xff]
      %v1718 = vld [vmem:[#allocation2 + $0x18] sm:$0xff]
      %v1719 = vld [vmem:[#allocation2 + $0x20] sm:$0xff]
      %v1720 = vld [vmem:[#allocation2 + $0x28] sm:$0xff]
      %v1721 = vld [vmem:[#allocation2 + $0x30] sm:$0xff]
      %v1722 = vld [vmem:[#allocation2 + $0x38] sm:$0xff]
      %v1723 = vld [vmem:[#allocation2 + $0x40] sm:$0xf]
      %v1724 = vld [vmem:[%s4] sm:$0xff]
      %v1725 = vld [vmem:[%s4 + $0x8] sm:$0xff]
      %v1726 = vld [vmem:[%s4 + $0x10] sm:$0xff]
      %v1727 = vld [vmem:[%s4 + $0x18] sm:$0xff]
      %v1728 = vld [vmem:[%s4 + $0x20] sm:$0xff]
      %v1729 = vld [vmem:[%s4 + $0x28] sm:$0xff]
      %v1730 = vld [vmem:[%s4 + $0x30] sm:$0xff]
      %v1731 = vld [vmem:[%s4 + $0x38] sm:$0xff]
      %v1732 = vld [vmem:[%s4 + $0x40] sm:$0xff]
      %v1733 = vld [vmem:[%s4 + $0x48] sm:$0xff]
      %v1734 = vld [vmem:[%s4 + $0x50] sm:$0xff]
      %v1735 = vld [vmem:[%s4 + $0x58] sm:$0xff]
      %v1736 = vld [vmem:[%s4 + $0x60] sm:$0xff]
      %v1737 = vld [vmem:[%s4 + $0x68] sm:$0xff]
      %v1738 = vld [vmem:[%s4 + $0x70] sm:$0xff]
      %v1739 = vld [vmem:[#allocation2 + $0x1] sm:$0xff]
      %v1740 = vld [vmem:[#allocation2 + $0x9] sm:$0xff]
      %v1741 = vld [vmem:[#allocation2 + $0x11] sm:$0xff]
      %v1742 = vld [vmem:[#allocation2 + $0x19] sm:$0xff]
      %v1743 = vld [vmem:[#allocation2 + $0x21] sm:$0xff]
      %v1744 = vld [vmem:[#allocation2 + $0x29] sm:$0xff]
      %v1745 = vld [vmem:[#allocation2 + $0x31] sm:$0xff]
      %v1746 = vld [vmem:[#allocation2 + $0x39] sm:$0xff]
      %v1747 = vld [vmem:[#allocation2 + $0x41] sm:$0xf]
      %s1748 = scalar_lea.vmem %s4, 120
      %v1749 = vld [vmem:[%s1748] sm:$0xff]
      %v1750 = vld [vmem:[%s1748 + $0x8] sm:$0xff]
      %v1751 = vld [vmem:[%s1748 + $0x10] sm:$0xff]
      %v1752 = vld [vmem:[%s1748 + $0x18] sm:$0xff]
      %v1753 = vld [vmem:[%s1748 + $0x20] sm:$0xff]
      %v1754 = vld [vmem:[%s1748 + $0x28] sm:$0xff]
      %v1755 = vld [vmem:[%s1748 + $0x30] sm:$0xff]
      %v1756 = vld [vmem:[%s1748 + $0x38] sm:$0xff]
      %v1757 = vld [vmem:[%s1748 + $0x40] sm:$0xff]
      %v1758 = vld [vmem:[%s1748 + $0x48] sm:$0xff]
      %v1759 = vld [vmem:[%s1748 + $0x50] sm:$0xff]
      %v1760 = vld [vmem:[%s1748 + $0x58] sm:$0xff]
      %v1761 = vld [vmem:[%s1748 + $0x60] sm:$0xff]
      %v1762 = vld [vmem:[%s1748 + $0x68] sm:$0xff]
      %v1763 = vld [vmem:[%s1748 + $0x70] sm:$0xff]
      %v1765 = vsel %vm1704, %v1739, 0
      %v1768 = vsel %vm1704, %v1740, 0
      %v1771 = vsel %vm1704, %v1741, 0
      %v1774 = vsel %vm1704, %v1742, 0
      %v1777 = vsel %vm1704, %v1743, 0
      %v1780 = vsel %vm1704, %v1744, 0
      %v1783 = vsel %vm1704, %v1745, 0
      %v1786 = vsel %vm1704, %v1746, 0
      %v1789 = vsel %vm1704, %v1747, 0
      %1791 = vmatprep.subr.mxu0 0.0
      %1792 = vmatpush1.msra.mxu0 %v1749
      %1793 = vmatprep.subr.mxu0 0.0
      %1794 = vmatpush1.msra.mxu0 %v1750
      %1795 = vmatprep.subr.mxu0 0.0
      %1796 = vmatpush1.msra.mxu0 %v1751
      %1797 = vmatprep.subr.mxu0 0.0
      %1798 = vmatpush1.msra.mxu0 %v1752
      %1799 = vmatprep.subr.mxu0 0.0
      %1800 = vmatpush1.msra.mxu0 %v1753
      %1801 = vmatprep.subr.mxu0 0.0
      %1802 = vmatpush1.msra.mxu0 %v1754
      %1803 = vmatprep.subr.mxu0 0.0
      %1804 = vmatpush1.msra.mxu0 %v1755
      %1805 = vmatprep.subr.mxu0 0.0
      %1806 = vmatpush1.msra.mxu0 %v1756
      %1807 = vmatprep.subr.mxu0 0.0
      %1808 = vmatpush1.msra.mxu0 %v1757
      %1809 = vmatprep.subr.mxu0 0.0
      %1810 = vmatpush1.msra.mxu0 %v1758
      %1811 = vmatprep.subr.mxu0 0.0
      %1812 = vmatpush1.msra.mxu0 %v1759
      %1813 = vmatprep.subr.mxu0 0.0
      %1814 = vmatpush1.msra.mxu0 %v1760
      %1815 = vmatprep.subr.mxu0 0.0
      %1816 = vmatpush1.msra.mxu0 %v1761
      %1817 = vmatprep.subr.mxu0 0.0
      %1818 = vmatpush1.msra.mxu0 %v1762
      %1819 = vmatprep.subr.mxu0 0.0
      %1820 = vmatpush1.msra.mxu0 %v1763
      %1821 = vmatprep.subr.mxu0 0.0
      %1822 = vmatpush1.msra.mxu0 0.0
      %1823 = vmatprep.subr.mxu0 0.0
      %1824 = vmatpush1.msra.mxu0 0.0
      %1825 = vmatprep.subr.mxu0 0.0
      %1826 = vmatpush1.msra.mxu0 0.0
      %1827 = vmatprep.subr.mxu0 0.0
      %1828 = vmatpush1.msra.mxu0 0.0
      %1829 = vmatprep.subr.mxu0 0.0
      %1830 = vmatpush1.msra.mxu0 0.0
      %1831 = vmatprep.subr.mxu0 0.0
      %1832 = vmatpush1.msra.mxu0 0.0
      %1833 = vmatprep.subr.mxu0 0.0
      %1834 = vmatpush1.msra.mxu0 0.0
      %1835 = vmatprep.subr.mxu0 0.0
      %1836 = vmatpush1.msra.mxu0 0.0
      %1837 = vmatprep.subr.mxu0 0.0
      %1838 = vmatpush1.msra.mxu0 0.0
      %1839 = vmatprep.subr.mxu0 0.0
      %1840 = vmatpush1.msra.mxu0 0.0
      %1841 = vmatprep.subr.mxu0 0.0
      %1842 = vmatpush1.msra.mxu0 0.0
      %1843 = vmatprep.subr.mxu0 0.0
      %1844 = vmatpush1.msra.mxu0 0.0
      %1845 = vmatprep.subr.mxu0 0.0
      %1846 = vmatpush1.msra.mxu0 0.0
      %1847 = vmatprep.subr.mxu0 0.0
      %1848 = vmatpush1.msra.mxu0 0.0
      %1849 = vmatprep.subr.mxu0 0.0
      %1850 = vmatpush1.msra.mxu0 0.0
      %1851 = vmatprep.subr.mxu0 0.0
      %1852 = vmatpush1.msra.mxu0 0.0
      %1853 = vmatprep.subr.mxu0 0.0
      %1854 = vmatpush1.msra.mxu0 0.0
      %1855 = vmatprep.mubr.f32.mxu0 0.0
      %1856 = vmatmul.mubr.f32.gmra.mrb[0].mxu0 %v1765
      %v1857 = vpop.f32.mrb[0].mxu0
      %v1858 = vadd.f32 0.0, %v1857
      %v1859 = vpop.f32.mrb[0].mxu0
      %1860 = vmatprep.mubr.f32.mxu0 0.0
      %1861 = vmatmul.mubr.f32.gmra.mrb[0].mxu0 %v1768
      %v1862 = vpop.f32.mrb[0].mxu0
      %v1863 = vadd.f32 0.0, %v1862
      %v1864 = vpop.f32.mrb[0].mxu0
      %1865 = vmatprep.mubr.f32.mxu0 0.0
      %1866 = vmatmul.mubr.f32.gmra.mrb[0].mxu0 %v1771
      %v1867 = vpop.f32.mrb[0].mxu0
      %v1868 = vadd.f32 0.0, %v1867
      %v1869 = vpop.f32.mrb[0].mxu0
      %1870 = vmatprep.mubr.f32.mxu0 0.0
      %1871 = vmatmul.mubr.f32.gmra.mrb[0].mxu0 %v1774
      %v1872 = vpop.f32.mrb[0].mxu0
      %v1873 = vadd.f32 0.0, %v1872
      %v1874 = vpop.f32.mrb[0].mxu0
      %1875 = vmatprep.mubr.f32.mxu0 0.0
      %1876 = vmatmul.mubr.f32.gmra.mrb[0].mxu0 %v1777
      %v1877 = vpop.f32.mrb[0].mxu0
      %v1878 = vadd.f32 0.0, %v1877
      %v1879 = vpop.f32.mrb[0].mxu0
      %1880 = vmatprep.mubr.f32.mxu0 0.0
      %1881 = vmatmul.mubr.f32.gmra.mrb[0].mxu0 %v1780
      %v1882 = vpop.f32.mrb[0].mxu0
      %v1883 = vadd.f32 0.0, %v1882
      %v1884 = vpop.f32.mrb[0].mxu0
      %1885 = vmatprep.mubr.f32.mxu0 0.0
      %1886 = vmatmul.mubr.f32.gmra.mrb[0].mxu0 %v1783
      %v1887 = vpop.f32.mrb[0].mxu0
      %v1888 = vadd.f32 0.0, %v1887
      %v1889 = vpop.f32.mrb[0].mxu0
      %1890 = vmatprep.mubr.f32.mxu0 0.0
      %1891 = vmatmul.mubr.f32.gmra.mrb[0].mxu0 %v1786
      %v1892 = vpop.f32.mrb[0].mxu0
      %v1893 = vadd.f32 0.0, %v1892
      %v1894 = vpop.f32.mrb[0].mxu0
      %1895 = vmatprep.mubr.f32.mxu0 0.0
      %1896 = vmatmul.mubr.f32.gmra.mrb[0].mxu0 %v1789
      %v1897 = vpop.f32.mrb[0].mxu0
      %v1898 = vadd.f32 0.0, %v1897
      %v1899 = vpop.f32.mrb[0].mxu0
      %1900 = vdwg.mxu0
      %v1902 = vsel %vm1704, %v1715, 0
      %v1905 = vsel %vm1704, %v1716, 0
      %v1908 = vsel %vm1704, %v1717, 0
      %v1911 = vsel %vm1704, %v1718, 0
      %v1914 = vsel %vm1704, %v1719, 0
      %v1917 = vsel %vm1704, %v1720, 0
      %v1920 = vsel %vm1704, %v1721, 0
      %v1923 = vsel %vm1704, %v1722, 0
      %v1926 = vsel %vm1704, %v1723, 0
      %1928 = vmatprep.subr.mxu0 0.0
      %1929 = vmatpush1.msra.mxu0 %v1724
      %1930 = vmatprep.subr.mxu0 0.0
      %1931 = vmatpush1.msra.mxu0 %v1725
      %1932 = vmatprep.subr.mxu0 0.0
      %1933 = vmatpush1.msra.mxu0 %v1726
      %1934 = vmatprep.subr.mxu0 0.0
      %1935 = vmatpush1.msra.mxu0 %v1727
      %1936 = vmatprep.subr.mxu0 0.0
      %1937 = vmatpush1.msra.mxu0 %v1728
      %1938 = vmatprep.subr.mxu0 0.0
      %1939 = vmatpush1.msra.mxu0 %v1729
      %1940 = vmatprep.subr.mxu0 0.0
      %1941 = vmatpush1.msra.mxu0 %v1730
      %1942 = vmatprep.subr.mxu0 0.0
      %1943 = vmatpush1.msra.mxu0 %v1731
      %1944 = vmatprep.subr.mxu0 0.0
      %1945 = vmatpush1.msra.mxu0 %v1732
      %1946 = vmatprep.subr.mxu0 0.0
      %1947 = vmatpush1.msra.mxu0 %v1733
      %1948 = vmatprep.subr.mxu0 0.0
      %1949 = vmatpush1.msra.mxu0 %v1734
      %1950 = vmatprep.subr.mxu0 0.0
      %1951 = vmatpush1.msra.mxu0 %v1735
      %1952 = vmatprep.subr.mxu0 0.0
      %1953 = vmatpush1.msra.mxu0 %v1736
      %1954 = vmatprep.subr.mxu0 0.0
      %1955 = vmatpush1.msra.mxu0 %v1737
      %1956 = vmatprep.subr.mxu0 0.0
      %1957 = vmatpush1.msra.mxu0 %v1738
      %1958 = vmatprep.subr.mxu0 0.0
      %1959 = vmatpush1.msra.mxu0 0.0
      %1960 = vmatprep.subr.mxu0 0.0
      %1961 = vmatpush1.msra.mxu0 0.0
      %1962 = vmatprep.subr.mxu0 0.0
      %1963 = vmatpush1.msra.mxu0 0.0
      %1964 = vmatprep.subr.mxu0 0.0
      %1965 = vmatpush1.msra.mxu0 0.0
      %1966 = vmatprep.subr.mxu0 0.0
      %1967 = vmatpush1.msra.mxu0 0.0
      %1968 = vmatprep.subr.mxu0 0.0
      %1969 = vmatpush1.msra.mxu0 0.0
      %1970 = vmatprep.subr.mxu0 0.0
      %1971 = vmatpush1.msra.mxu0 0.0
      %1972 = vmatprep.subr.mxu0 0.0
      %1973 = vmatpush1.msra.mxu0 0.0
      %1974 = vmatprep.subr.mxu0 0.0
      %1975 = vmatpush1.msra.mxu0 0.0
      %1976 = vmatprep.subr.mxu0 0.0
      %1977 = vmatpush1.msra.mxu0 0.0
      %1978 = vmatprep.subr.mxu0 0.0
      %1979 = vmatpush1.msra.mxu0 0.0
      %1980 = vmatprep.subr.mxu0 0.0
      %1981 = vmatpush1.msra.mxu0 0.0
      %1982 = vmatprep.subr.mxu0 0.0
      %1983 = vmatpush1.msra.mxu0 0.0
      %1984 = vmatprep.subr.mxu0 0.0
      %1985 = vmatpush1.msra.mxu0 0.0
      %1986 = vmatprep.subr.mxu0 0.0
      %1987 = vmatpush1.msra.mxu0 0.0
      %1988 = vmatprep.subr.mxu0 0.0
      %1989 = vmatpush1.msra.mxu0 0.0
      %1990 = vmatprep.subr.mxu0 0.0
      %1991 = vmatpush1.msra.mxu0 0.0
      %1992 = vmatprep.mubr.f32.mxu0 0.0
      %1993 = vmatmul.mubr.f32.gmra.mrb[0].mxu0 %v1902
      %v1994 = vpop.f32.mrb[0].mxu0
      %v1995 = vadd.f32 %v1858, %v1994
      %v1996 = vpop.f32.mrb[0].mxu0
      %1997 = vmatprep.mubr.f32.mxu0 0.0
      %1998 = vmatmul.mubr.f32.gmra.mrb[0].mxu0 %v1905
      %v1999 = vpop.f32.mrb[0].mxu0
      %v2000 = vadd.f32 %v1863, %v1999
      %v2001 = vpop.f32.mrb[0].mxu0
      %2002 = vmatprep.mubr.f32.mxu0 0.0
      %2003 = vmatmul.mubr.f32.gmra.mrb[0].mxu0 %v1908
      %v2004 = vpop.f32.mrb[0].mxu0
      %v2005 = vadd.f32 %v1868, %v2004
      %v2006 = vpop.f32.mrb[0].mxu0
      %2007 = vmatprep.mubr.f32.mxu0 0.0
      %2008 = vmatmul.mubr.f32.gmra.mrb[0].mxu0 %v1911
      %v2009 = vpop.f32.mrb[0].mxu0
      %v2010 = vadd.f32 %v1873, %v2009
      %v2011 = vpop.f32.mrb[0].mxu0
      %2012 = vmatprep.mubr.f32.mxu0 0.0
      %2013 = vmatmul.mubr.f32.gmra.mrb[0].mxu0 %v1914
      %v2014 = vpop.f32.mrb[0].mxu0
      %v2015 = vadd.f32 %v1878, %v2014
      %v2016 = vpop.f32.mrb[0].mxu0
      %2017 = vmatprep.mubr.f32.mxu0 0.0
      %2018 = vmatmul.mubr.f32.gmra.mrb[0].mxu0 %v1917
      %v2019 = vpop.f32.mrb[0].mxu0
      %v2020 = vadd.f32 %v1883, %v2019
      %v2021 = vpop.f32.mrb[0].mxu0
      %2022 = vmatprep.mubr.f32.mxu0 0.0
      %2023 = vmatmul.mubr.f32.gmra.mrb[0].mxu0 %v1920
      %v2024 = vpop.f32.mrb[0].mxu0
      %v2025 = vadd.f32 %v1888, %v2024
      %v2026 = vpop.f32.mrb[0].mxu0
      %2027 = vmatprep.mubr.f32.mxu0 0.0
      %2028 = vmatmul.mubr.f32.gmra.mrb[0].mxu0 %v1923
      %v2029 = vpop.f32.mrb[0].mxu0
      %v2030 = vadd.f32 %v1893, %v2029
      %v2031 = vpop.f32.mrb[0].mxu0
      %2032 = vmatprep.mubr.f32.mxu0 0.0
      %2033 = vmatmul.mubr.f32.gmra.mrb[0].mxu0 %v1926
      %v2034 = vpop.f32.mrb[0].mxu0
      %v2035 = vadd.f32 %v1898, %v2034
      %v2036 = vpop.f32.mrb[0].mxu0
      %2037 = vdwg.mxu0
      %v2038 = vld [vmem:[#allocation2 + $0x2] sm:$0xff]
      %v2039 = vld [vmem:[#allocation2 + $0xa] sm:$0xff]
      %v2040 = vld [vmem:[#allocation2 + $0x12] sm:$0xff]
      %v2041 = vld [vmem:[#allocation2 + $0x1a] sm:$0xff]
      %v2042 = vld [vmem:[#allocation2 + $0x22] sm:$0xff]
      %v2043 = vld [vmem:[#allocation2 + $0x2a] sm:$0xff]
      %v2044 = vld [vmem:[#allocation2 + $0x32] sm:$0xff]
      %v2045 = vld [vmem:[#allocation2 + $0x3a] sm:$0xff]
      %v2046 = vld [vmem:[#allocation2 + $0x42] sm:$0xf]
      %s2047 = scalar_lea.vmem %s4, 240
      %v2048 = vld [vmem:[%s2047] sm:$0xff]
      %v2049 = vld [vmem:[%s2047 + $0x8] sm:$0xff]
      %v2050 = vld [vmem:[%s2047 + $0x10] sm:$0xff]
      %v2051 = vld [vmem:[%s2047 + $0x18] sm:$0xff]
      %v2052 = vld [vmem:[%s2047 + $0x20] sm:$0xff]
      %v2053 = vld [vmem:[%s2047 + $0x28] sm:$0xff]
      %v2054 = vld [vmem:[%s2047 + $0x30] sm:$0xff]
      %v2055 = vld [vmem:[%s2047 + $0x38] sm:$0xff]
      %v2056 = vld [vmem:[%s2047 + $0x40] sm:$0xff]
      %v2057 = vld [vmem:[%s2047 + $0x48] sm:$0xff]
      %v2058 = vld [vmem:[%s2047 + $0x50] sm:$0xff]
      %v2059 = vld [vmem:[%s2047 + $0x58] sm:$0xff]
      %v2060 = vld [vmem:[%s2047 + $0x60] sm:$0xff]
      %v2061 = vld [vmem:[%s2047 + $0x68] sm:$0xff]
      %v2062 = vld [vmem:[%s2047 + $0x70] sm:$0xff]
      %v2064 = vsel %vm1704, %v2038, 0
      %v2067 = vsel %vm1704, %v2039, 0
      %v2070 = vsel %vm1704, %v2040, 0
      %v2073 = vsel %vm1704, %v2041, 0
      %v2076 = vsel %vm1704, %v2042, 0
      %v2079 = vsel %vm1704, %v2043, 0
      %v2082 = vsel %vm1704, %v2044, 0
      %v2085 = vsel %vm1704, %v2045, 0
      %v2088 = vsel %vm1704, %v2046, 0
      %2090 = vmatprep.subr.mxu0 0.0
      %2091 = vmatpush1.msra.mxu0 %v2048
      %2092 = vmatprep.subr.mxu0 0.0
      %2093 = vmatpush1.msra.mxu0 %v2049
      %2094 = vmatprep.subr.mxu0 0.0
      %2095 = vmatpush1.msra.mxu0 %v2050
      %2096 = vmatprep.subr.mxu0 0.0
      %2097 = vmatpush1.msra.mxu0 %v2051
      %2098 = vmatprep.subr.mxu0 0.0
      %2099 = vmatpush1.msra.mxu0 %v2052
      %2100 = vmatprep.subr.mxu0 0.0
      %2101 = vmatpush1.msra.mxu0 %v2053
      %2102 = vmatprep.subr.mxu0 0.0
      %2103 = vmatpush1.msra.mxu0 %v2054
      %2104 = vmatprep.subr.mxu0 0.0
      %2105 = vmatpush1.msra.mxu0 %v2055
      %2106 = vmatprep.subr.mxu0 0.0
      %2107 = vmatpush1.msra.mxu0 %v2056
      %2108 = vmatprep.subr.mxu0 0.0
      %2109 = vmatpush1.msra.mxu0 %v2057
      %2110 = vmatprep.subr.mxu0 0.0
      %2111 = vmatpush1.msra.mxu0 %v2058
      %2112 = vmatprep.subr.mxu0 0.0
      %2113 = vmatpush1.msra.mxu0 %v2059
      %2114 = vmatprep.subr.mxu0 0.0
      %2115 = vmatpush1.msra.mxu0 %v2060
      %2116 = vmatprep.subr.mxu0 0.0
      %2117 = vmatpush1.msra.mxu0 %v2061
      %2118 = vmatprep.subr.mxu0 0.0
      %2119 = vmatpush1.msra.mxu0 %v2062
      %2120 = vmatprep.subr.mxu0 0.0
      %2121 = vmatpush1.msra.mxu0 0.0
      %2122 = vmatprep.subr.mxu0 0.0
      %2123 = vmatpush1.msra.mxu0 0.0
      %2124 = vmatprep.subr.mxu0 0.0
      %2125 = vmatpush1.msra.mxu0 0.0
      %2126 = vmatprep.subr.mxu0 0.0
      %2127 = vmatpush1.msra.mxu0 0.0
      %2128 = vmatprep.subr.mxu0 0.0
      %2129 = vmatpush1.msra.mxu0 0.0
      %2130 = vmatprep.subr.mxu0 0.0
      %2131 = vmatpush1.msra.mxu0 0.0
      %2132 = vmatprep.subr.mxu0 0.0
      %2133 = vmatpush1.msra.mxu0 0.0
      %2134 = vmatprep.subr.mxu0 0.0
      %2135 = vmatpush1.msra.mxu0 0.0
      %2136 = vmatprep.subr.mxu0 0.0
      %2137 = vmatpush1.msra.mxu0 0.0
      %2138 = vmatprep.subr.mxu0 0.0
      %2139 = vmatpush1.msra.mxu0 0.0
      %2140 = vmatprep.subr.mxu0 0.0
      %2141 = vmatpush1.msra.mxu0 0.0
      %2142 = vmatprep.subr.mxu0 0.0
      %2143 = vmatpush1.msra.mxu0 0.0
      %2144 = vmatprep.subr.mxu0 0.0
      %2145 = vmatpush1.msra.mxu0 0.0
      %2146 = vmatprep.subr.mxu0 0.0
      %2147 = vmatpush1.msra.mxu0 0.0
      %2148 = vmatprep.subr.mxu0 0.0
      %2149 = vmatpush1.msra.mxu0 0.0
      %2150 = vmatprep.subr.mxu0 0.0
      %2151 = vmatpush1.msra.mxu0 0.0
      %2152 = vmatprep.subr.mxu0 0.0
      %2153 = vmatpush1.msra.mxu0 0.0
      %2154 = vmatprep.mubr.f32.mxu0 0.0
      %2155 = vmatmul.mubr.f32.gmra.mrb[0].mxu0 %v2064
      %v2156 = vpop.f32.mrb[0].mxu0
      %v2157 = vadd.f32 0.0, %v2156
      %v2158 = vpop.f32.mrb[0].mxu0
      %2159 = vmatprep.mubr.f32.mxu0 0.0
      %2160 = vmatmul.mubr.f32.gmra.mrb[0].mxu0 %v2067
      %v2161 = vpop.f32.mrb[0].mxu0
      %v2162 = vadd.f32 0.0, %v2161
      %v2163 = vpop.f32.mrb[0].mxu0
      %2164 = vmatprep.mubr.f32.mxu0 0.0
      %2165 = vmatmul.mubr.f32.gmra.mrb[0].mxu0 %v2070
      %v2166 = vpop.f32.mrb[0].mxu0
      %v2167 = vadd.f32 0.0, %v2166
      %v2168 = vpop.f32.mrb[0].mxu0
      %2169 = vmatprep.mubr.f32.mxu0 0.0
      %2170 = vmatmul.mubr.f32.gmra.mrb[0].mxu0 %v2073
      %v2171 = vpop.f32.mrb[0].mxu0
      %v2172 = vadd.f32 0.0, %v2171
      %v2173 = vpop.f32.mrb[0].mxu0
      %2174 = vmatprep.mubr.f32.mxu0 0.0
      %2175 = vmatmul.mubr.f32.gmra.mrb[0].mxu0 %v2076
      %v2176 = vpop.f32.mrb[0].mxu0
      %v2177 = vadd.f32 0.0, %v2176
      %v2178 = vpop.f32.mrb[0].mxu0
      %2179 = vmatprep.mubr.f32.mxu0 0.0
      %2180 = vmatmul.mubr.f32.gmra.mrb[0].mxu0 %v2079
      %v2181 = vpop.f32.mrb[0].mxu0
      %v2182 = vadd.f32 0.0, %v2181
      %v2183 = vpop.f32.mrb[0].mxu0
      %2184 = vmatprep.mubr.f32.mxu0 0.0
      %2185 = vmatmul.mubr.f32.gmra.mrb[0].mxu0 %v2082
      %v2186 = vpop.f32.mrb[0].mxu0
      %v2187 = vadd.f32 0.0, %v2186
      %v2188 = vpop.f32.mrb[0].mxu0
      %2189 = vmatprep.mubr.f32.mxu0 0.0
      %2190 = vmatmul.mubr.f32.gmra.mrb[0].mxu0 %v2085
      %v2191 = vpop.f32.mrb[0].mxu0
      %v2192 = vadd.f32 0.0, %v2191
      %v2193 = vpop.f32.mrb[0].mxu0
      %2194 = vmatprep.mubr.f32.mxu0 0.0
      %2195 = vmatmul.mubr.f32.gmra.mrb[0].mxu0 %v2088
      %v2196 = vpop.f32.mrb[0].mxu0
      %v2197 = vadd.f32 0.0, %v2196
      %v2198 = vpop.f32.mrb[0].mxu0
      %2199 = vdwg.mxu0
      %v2200 = vadd.f32 %v1995, %v2157
      %v2201 = vadd.f32 %v2000, %v2162
      %v2202 = vadd.f32 %v2005, %v2167
      %v2203 = vadd.f32 %v2010, %v2172
      %v2204 = vadd.f32 %v2015, %v2177
      %v2205 = vadd.f32 %v2020, %v2182
      %v2206 = vadd.f32 %v2025, %v2187
      %v2207 = vadd.f32 %v2030, %v2192
      %v2208 = vadd.f32 %v2035, %v2197
      %v2209 = vld [vmem:[%s5] sm:$0x1]
      %v2211 = vlaneseq
      %v2212 = vshrl.u32 %v2211, 7
      %v2213 = vsub.s32 0, %v2212
      %v2214 = vrot.slane %v2209, %v2213
      %v2216 = vadd.f32 %v2200, %v2214
      %v2217 = vadd.f32 %v2201, %v2214
      %v2218 = vadd.f32 %v2202, %v2214
      %v2219 = vadd.f32 %v2203, %v2214
      %v2220 = vadd.f32 %v2204, %v2214
      %v2221 = vadd.f32 %v2205, %v2214
      %v2222 = vadd.f32 %v2206, %v2214
      %v2223 = vadd.f32 %v2207, %v2214
      %v2224 = vadd.f32 %v2208, %v2214
      %v2225 = vmax.f32 %v2216, 0.0
      %v2226 = vmax.f32 %v2217, 0.0
      %v2227 = vmax.f32 %v2218, 0.0
      %v2228 = vmax.f32 %v2219, 0.0
      %v2229 = vmax.f32 %v2220, 0.0
      %v2230 = vmax.f32 %v2221, 0.0
      %v2231 = vmax.f32 %v2222, 0.0
      %v2232 = vmax.f32 %v2223, 0.0
      %v2233 = vmax.f32 %v2224, 0.0
      %2243 = vrot.lane.b32.xlu0 %v2225, 120
      %v2244 = vpop.permute.xlu0 %2243
      %2245 = vrot.lane.b32.xlu0 %v2226, 120
      %v2246 = vpop.permute.xlu0 %2245
      %2247 = vrot.lane.b32.xlu0 %v2227, 120
      %v2248 = vpop.permute.xlu0 %2247
      %2249 = vrot.lane.b32.xlu0 %v2228, 120
      %v2250 = vpop.permute.xlu0 %2249
      %2251 = vrot.lane.b32.xlu0 %v2229, 120
      %v2252 = vpop.permute.xlu0 %2251
      %2253 = vrot.lane.b32.xlu0 %v2230, 120
      %v2254 = vpop.permute.xlu0 %2253
      %2255 = vrot.lane.b32.xlu0 %v2231, 120
      %v2256 = vpop.permute.xlu0 %2255
      %2257 = vrot.lane.b32.xlu0 %v2232, 120
      %v2258 = vpop.permute.xlu0 %2257
      %2259 = vrot.lane.b32.xlu0 %v2233, 120
      %v2260 = vpop.permute.xlu0 %2259
      %v2270 = vmax.f32 %v2225, %v2244
      %v2271 = vmax.f32 %v2226, %v2246
      %v2272 = vmax.f32 %v2227, %v2248
      %v2273 = vmax.f32 %v2228, %v2250
      %v2274 = vmax.f32 %v2229, %v2252
      %v2275 = vmax.f32 %v2230, %v2254
      %v2276 = vmax.f32 %v2231, %v2256
      %v2277 = vmax.f32 %v2232, %v2258
      %v2278 = vmax.f32 %v2233, %v2260
      %v2279 = vld [vmem:[%s6] sm:$0xff]
      %v2280 = vld [vmem:[%s6 + $0x8] sm:$0xff]
      %v2281 = vld [vmem:[%s6 + $0x10] sm:$0xff]
      %v2282 = vld [vmem:[%s6 + $0x18] sm:$0xff]
      %v2283 = vld [vmem:[%s6 + $0x20] sm:$0xff]
      %v2284 = vld [vmem:[%s6 + $0x28] sm:$0x3]
      %vm2285 = vcmask 556032
      %v2287 = vsel %vm2285, %v2279, 0
      %v2290 = vsel %vm2285, %v2280, 0
      %v2293 = vsel %vm2285, %v2281, 0
      %v2296 = vsel %vm2285, %v2282, 0
      %v2299 = vsel %vm2285, %v2283, 0
      %v2302 = vsel %vm2285, %v2284, 0
      %v2305 = vsel %vm1434, %v2278, 0
      %2307 = vmatprep.subr.mxu0 0.0
      %2308 = vmatpush1.msra.mxu0 %v2270
      %2309 = vmatprep.subr.mxu0 0.0
      %2310 = vmatpush1.msra.mxu0 %v2271
      %2311 = vmatprep.subr.mxu0 0.0
      %2312 = vmatpush1.msra.mxu0 %v2272
      %2313 = vmatprep.subr.mxu0 0.0
      %2314 = vmatpush1.msra.mxu0 %v2273
      %2315 = vmatprep.subr.mxu0 0.0
      %2316 = vmatpush1.msra.mxu0 %v2274
      %2317 = vmatprep.subr.mxu0 0.0
      %2318 = vmatpush1.msra.mxu0 %v2275
      %2319 = vmatprep.subr.mxu0 0.0
      %2320 = vmatpush1.msra.mxu0 %v2276
      %2321 = vmatprep.subr.mxu0 0.0
      %2322 = vmatpush1.msra.mxu0 %v2277
      %2323 = vmatprep.subr.mxu0 0.0
      %2324 = vmatpush1.msra.mxu0 %v2305
      %2325 = vmatprep.subr.mxu0 0.0
      %2326 = vmatpush1.msra.mxu0 0.0
      %2327 = vmatprep.subr.mxu0 0.0
      %2328 = vmatpush1.msra.mxu0 0.0
      %2329 = vmatprep.subr.mxu0 0.0
      %2330 = vmatpush1.msra.mxu0 0.0
      %2331 = vmatprep.subr.mxu0 0.0
      %2332 = vmatpush1.msra.mxu0 0.0
      %2333 = vmatprep.subr.mxu0 0.0
      %2334 = vmatpush1.msra.mxu0 0.0
      %2335 = vmatprep.subr.mxu0 0.0
      %2336 = vmatpush1.msra.mxu0 0.0
      %2337 = vmatprep.subr.mxu0 0.0
      %2338 = vmatpush1.msra.mxu0 0.0
      %2339 = vmatprep.subr.mxu0 0.0
      %2340 = vmatpush1.msra.mxu0 0.0
      %2341 = vmatprep.subr.mxu0 0.0
      %2342 = vmatpush1.msra.mxu0 0.0
      %2343 = vmatprep.subr.mxu0 0.0
      %2344 = vmatpush1.msra.mxu0 0.0
      %2345 = vmatprep.subr.mxu0 0.0
      %2346 = vmatpush1.msra.mxu0 0.0
      %2347 = vmatprep.subr.mxu0 0.0
      %2348 = vmatpush1.msra.mxu0 0.0
      %2349 = vmatprep.subr.mxu0 0.0
      %2350 = vmatpush1.msra.mxu0 0.0
      %2351 = vmatprep.subr.mxu0 0.0
      %2352 = vmatpush1.msra.mxu0 0.0
      %2353 = vmatprep.subr.mxu0 0.0
      %2354 = vmatpush1.msra.mxu0 0.0
      %2355 = vmatprep.subr.mxu0 0.0
      %2356 = vmatpush1.msra.mxu0 0.0
      %2357 = vmatprep.subr.mxu0 0.0
      %2358 = vmatpush1.msra.mxu0 0.0
      %2359 = vmatprep.subr.mxu0 0.0
      %2360 = vmatpush1.msra.mxu0 0.0
      %2361 = vmatprep.subr.mxu0 0.0
      %2362 = vmatpush1.msra.mxu0 0.0
      %2363 = vmatprep.subr.mxu0 0.0
      %2364 = vmatpush1.msra.mxu0 0.0
      %2365 = vmatprep.subr.mxu0 0.0
      %2366 = vmatpush1.msra.mxu0 0.0
      %2367 = vmatprep.subr.mxu0 0.0
      %2368 = vmatpush1.msra.mxu0 0.0
      %2369 = vmatprep.subr.mxu0 0.0
      %2370 = vmatpush1.msra.mxu0 0.0
      %2371 = vmatprep.mubr.f32.mxu0 0.0
      %2372 = vmatmul.mubr.f32.gmra.mrb[0].mxu0 %v2287
      %v2373 = vpop.f32.mrb[0].mxu0
      %v2374 = vadd.f32 0.0, %v2373
      %v2375 = vpop.f32.mrb[0].mxu0
      %2376 = vmatprep.mubr.f32.mxu0 0.0
      %2377 = vmatmul.mubr.f32.gmra.mrb[0].mxu0 %v2290
      %v2378 = vpop.f32.mrb[0].mxu0
      %v2379 = vadd.f32 0.0, %v2378
      %v2380 = vpop.f32.mrb[0].mxu0
      %2381 = vmatprep.mubr.f32.mxu0 0.0
      %2382 = vmatmul.mubr.f32.gmra.mrb[0].mxu0 %v2293
      %v2383 = vpop.f32.mrb[0].mxu0
      %v2384 = vadd.f32 0.0, %v2383
      %v2385 = vpop.f32.mrb[0].mxu0
      %2386 = vmatprep.mubr.f32.mxu0 0.0
      %2387 = vmatmul.mubr.f32.gmra.mrb[0].mxu0 %v2296
      %v2388 = vpop.f32.mrb[0].mxu0
      %v2389 = vadd.f32 0.0, %v2388
      %v2390 = vpop.f32.mrb[0].mxu0
      %2391 = vmatprep.mubr.f32.mxu0 0.0
      %2392 = vmatmul.mubr.f32.gmra.mrb[0].mxu0 %v2299
      %v2393 = vpop.f32.mrb[0].mxu0
      %v2394 = vadd.f32 0.0, %v2393
      %v2395 = vpop.f32.mrb[0].mxu0
      %2396 = vmatprep.mubr.f32.mxu0 0.0
      %2397 = vmatmul.mubr.f32.gmra.mrb[0].mxu0 %v2302
      %v2398 = vpop.f32.mrb[0].mxu0
      %v2399 = vadd.f32 0.0, %v2398
      %v2400 = vpop.f32.mrb[0].mxu0
      %2401 = vdwg.mxu0
      %s2402 = scalar_lea.vmem %s6, 48
      %v2403 = vld [vmem:[%s2402] sm:$0xff]
      %v2404 = vld [vmem:[%s2402 + $0x8] sm:$0xff]
      %v2405 = vld [vmem:[%s2402 + $0x10] sm:$0xff]
      %v2406 = vld [vmem:[%s2402 + $0x18] sm:$0xff]
      %v2407 = vld [vmem:[%s2402 + $0x20] sm:$0xff]
      %v2408 = vld [vmem:[%s2402 + $0x28] sm:$0x3]
      %v2410 = vsel %vm2285, %v2403, 0
      %v2413 = vsel %vm2285, %v2404, 0
      %v2416 = vsel %vm2285, %v2405, 0
      %v2419 = vsel %vm2285, %v2406, 0
      %v2422 = vsel %vm2285, %v2407, 0
      %v2425 = vsel %vm2285, %v2408, 0
      %2427 = vmatprep.subr.mxu0 0.0
      %2428 = vmatpush1.msra.mxu0 %v2270
      %2429 = vmatprep.subr.mxu0 0.0
      %2430 = vmatpush1.msra.mxu0 %v2271
      %2431 = vmatprep.subr.mxu0 0.0
      %2432 = vmatpush1.msra.mxu0 %v2272
      %2433 = vmatprep.subr.mxu0 0.0
      %2434 = vmatpush1.msra.mxu0 %v2273
      %2435 = vmatprep.subr.mxu0 0.0
      %2436 = vmatpush1.msra.mxu0 %v2274
      %2437 = vmatprep.subr.mxu0 0.0
      %2438 = vmatpush1.msra.mxu0 %v2275
      %2439 = vmatprep.subr.mxu0 0.0
      %2440 = vmatpush1.msra.mxu0 %v2276
      %2441 = vmatprep.subr.mxu0 0.0
      %2442 = vmatpush1.msra.mxu0 %v2277
      %2443 = vmatprep.subr.mxu0 0.0
      %2444 = vmatpush1.msra.mxu0 %v2305
      %2445 = vmatprep.subr.mxu0 0.0
      %2446 = vmatpush1.msra.mxu0 0.0
      %2447 = vmatprep.subr.mxu0 0.0
      %2448 = vmatpush1.msra.mxu0 0.0
      %2449 = vmatprep.subr.mxu0 0.0
      %2450 = vmatpush1.msra.mxu0 0.0
      %2451 = vmatprep.subr.mxu0 0.0
      %2452 = vmatpush1.msra.mxu0 0.0
      %2453 = vmatprep.subr.mxu0 0.0
      %2454 = vmatpush1.msra.mxu0 0.0
      %2455 = vmatprep.subr.mxu0 0.0
      %2456 = vmatpush1.msra.mxu0 0.0
      %2457 = vmatprep.subr.mxu0 0.0
      %2458 = vmatpush1.msra.mxu0 0.0
      %2459 = vmatprep.subr.mxu0 0.0
      %2460 = vmatpush1.msra.mxu0 0.0
      %2461 = vmatprep.subr.mxu0 0.0
      %2462 = vmatpush1.msra.mxu0 0.0
      %2463 = vmatprep.subr.mxu0 0.0
      %2464 = vmatpush1.msra.mxu0 0.0
      %2465 = vmatprep.subr.mxu0 0.0
      %2466 = vmatpush1.msra.mxu0 0.0
      %2467 = vmatprep.subr.mxu0 0.0
      %2468 = vmatpush1.msra.mxu0 0.0
      %2469 = vmatprep.subr.mxu0 0.0
      %2470 = vmatpush1.msra.mxu0 0.0
      %2471 = vmatprep.subr.mxu0 0.0
      %2472 = vmatpush1.msra.mxu0 0.0
      %2473 = vmatprep.subr.mxu0 0.0
      %2474 = vmatpush1.msra.mxu0 0.0
      %2475 = vmatprep.subr.mxu0 0.0
      %2476 = vmatpush1.msra.mxu0 0.0
      %2477 = vmatprep.subr.mxu0 0.0
      %2478 = vmatpush1.msra.mxu0 0.0
      %2479 = vmatprep.subr.mxu0 0.0
      %2480 = vmatpush1.msra.mxu0 0.0
      %2481 = vmatprep.subr.mxu0 0.0
      %2482 = vmatpush1.msra.mxu0 0.0
      %2483 = vmatprep.subr.mxu0 0.0
      %2484 = vmatpush1.msra.mxu0 0.0
      %2485 = vmatprep.subr.mxu0 0.0
      %2486 = vmatpush1.msra.mxu0 0.0
      %2487 = vmatprep.subr.mxu0 0.0
      %2488 = vmatpush1.msra.mxu0 0.0
      %2489 = vmatprep.subr.mxu0 0.0
      %2490 = vmatpush1.msra.mxu0 0.0
      %2491 = vmatprep.mubr.f32.mxu0 0.0
      %2492 = vmatmul.mubr.f32.gmra.mrb[0].mxu0 %v2410
      %v2493 = vpop.f32.mrb[0].mxu0
      %v2494 = vadd.f32 0.0, %v2493
      %v2495 = vpop.f32.mrb[0].mxu0
      %2496 = vmatprep.mubr.f32.mxu0 0.0
      %2497 = vmatmul.mubr.f32.gmra.mrb[0].mxu0 %v2413
      %v2498 = vpop.f32.mrb[0].mxu0
      %v2499 = vadd.f32 0.0, %v2498
      %v2500 = vpop.f32.mrb[0].mxu0
      %2501 = vmatprep.mubr.f32.mxu0 0.0
      %2502 = vmatmul.mubr.f32.gmra.mrb[0].mxu0 %v2416
      %v2503 = vpop.f32.mrb[0].mxu0
      %v2504 = vadd.f32 0.0, %v2503
      %v2505 = vpop.f32.mrb[0].mxu0
      %2506 = vmatprep.mubr.f32.mxu0 0.0
      %2507 = vmatmul.mubr.f32.gmra.mrb[0].mxu0 %v2419
      %v2508 = vpop.f32.mrb[0].mxu0
      %v2509 = vadd.f32 0.0, %v2508
      %v2510 = vpop.f32.mrb[0].mxu0
      %2511 = vmatprep.mubr.f32.mxu0 0.0
      %2512 = vmatmul.mubr.f32.gmra.mrb[0].mxu0 %v2422
      %v2513 = vpop.f32.mrb[0].mxu0
      %v2514 = vadd.f32 0.0, %v2513
      %v2515 = vpop.f32.mrb[0].mxu0
      %2516 = vmatprep.mubr.f32.mxu0 0.0
      %2517 = vmatmul.mubr.f32.gmra.mrb[0].mxu0 %v2425
      %v2518 = vpop.f32.mrb[0].mxu0
      %v2519 = vadd.f32 0.0, %v2518
      %v2520 = vpop.f32.mrb[0].mxu0
      %2521 = vdwg.mxu0
      %v2522 = vmax.f32 %v2374, %v2494
      %v2523 = vmax.f32 %v2379, %v2499
      %v2524 = vmax.f32 %v2384, %v2504
      %v2525 = vmax.f32 %v2389, %v2509
      %v2526 = vmax.f32 %v2394, %v2514
      %v2527 = vmax.f32 %v2399, %v2519
      %vm2528 = vcmask 457728
      %2529 = vst.msk [vmem:[#allocation3] sm:$0xff] %vm2528, %v2522
      %2530 = vst.msk [vmem:[#allocation3 + $0x8] sm:$0xff] %vm2528, %v2523
      %2531 = vst.msk [vmem:[#allocation3 + $0x10] sm:$0xff] %vm2528, %v2524
      %2532 = vst.msk [vmem:[#allocation3 + $0x18] sm:$0xff] %vm2528, %v2525
      %2533 = vst.msk [vmem:[#allocation3 + $0x20] sm:$0xff] %vm2528, %v2526
      %vm2534 = vcmask 451584
      %2535 = vst.msk [vmem:[#allocation3 + $0x28] sm:$0x3] %vm2534, %v2527
      %v2536 = vld [vmem:[#allocation3] sm:$0xff]
      %v2537 = vld [vmem:[#allocation3 + $0x8] sm:$0xff]
      %v2538 = vld [vmem:[#allocation3 + $0x10] sm:$0xff]
      %v2539 = vld [vmem:[#allocation3 + $0x18] sm:$0xff]
      %v2540 = vld [vmem:[#allocation3 + $0x20] sm:$0xff]
      %v2541 = vld [vmem:[%s7] sm:$0xff]
      %v2542 = vld [vmem:[%s7 + $0x8] sm:$0xff]
      %v2543 = vld [vmem:[%s7 + $0x10] sm:$0xff]
      %v2544 = vld [vmem:[%s7 + $0x18] sm:$0xff]
      %v2545 = vld [vmem:[%s7 + $0x20] sm:$0xff]
      %v2546 = vld [vmem:[%s7 + $0x28] sm:$0xff]
      %v2547 = vld [vmem:[%s7 + $0x30] sm:$0xff]
      %v2548 = vld [vmem:[#allocation3 + $0x1] sm:$0xff]
      %v2549 = vld [vmem:[#allocation3 + $0x9] sm:$0xff]
      %v2550 = vld [vmem:[#allocation3 + $0x11] sm:$0xff]
      %v2551 = vld [vmem:[#allocation3 + $0x19] sm:$0xff]
      %v2552 = vld [vmem:[#allocation3 + $0x21] sm:$0xff]
      %s2553 = scalar_lea.vmem %s7, 56
      %v2554 = vld [vmem:[%s2553] sm:$0xff]
      %v2555 = vld [vmem:[%s2553 + $0x8] sm:$0xff]
      %v2556 = vld [vmem:[%s2553 + $0x10] sm:$0xff]
      %v2557 = vld [vmem:[%s2553 + $0x18] sm:$0xff]
      %v2558 = vld [vmem:[%s2553 + $0x20] sm:$0xff]
      %v2559 = vld [vmem:[%s2553 + $0x28] sm:$0xff]
      %v2560 = vld [vmem:[%s2553 + $0x30] sm:$0xff]
      %v2562 = vsel %vm2528, %v2548, 0
      %v2565 = vsel %vm2528, %v2549, 0
      %v2568 = vsel %vm2528, %v2550, 0
      %v2571 = vsel %vm2528, %v2551, 0
      %v2574 = vsel %vm2528, %v2552, 0
      %2576 = vmatprep.subr.mxu0 0.0
      %2577 = vmatpush1.msra.mxu0 %v2554
      %2578 = vmatprep.subr.mxu0 0.0
      %2579 = vmatpush1.msra.mxu0 %v2555
      %2580 = vmatprep.subr.mxu0 0.0
      %2581 = vmatpush1.msra.mxu0 %v2556
      %2582 = vmatprep.subr.mxu0 0.0
      %2583 = vmatpush1.msra.mxu0 %v2557
      %2584 = vmatprep.subr.mxu0 0.0
      %2585 = vmatpush1.msra.mxu0 %v2558
      %2586 = vmatprep.subr.mxu0 0.0
      %2587 = vmatpush1.msra.mxu0 %v2559
      %2588 = vmatprep.subr.mxu0 0.0
      %2589 = vmatpush1.msra.mxu0 %v2560
      %2590 = vmatprep.subr.mxu0 0.0
      %2591 = vmatpush1.msra.mxu0 0.0
      %2592 = vmatprep.subr.mxu0 0.0
      %2593 = vmatpush1.msra.mxu0 0.0
      %2594 = vmatprep.subr.mxu0 0.0
      %2595 = vmatpush1.msra.mxu0 0.0
      %2596 = vmatprep.subr.mxu0 0.0
      %2597 = vmatpush1.msra.mxu0 0.0
      %2598 = vmatprep.subr.mxu0 0.0
      %2599 = vmatpush1.msra.mxu0 0.0
      %2600 = vmatprep.subr.mxu0 0.0
      %2601 = vmatpush1.msra.mxu0 0.0
      %2602 = vmatprep.subr.mxu0 0.0
      %2603 = vmatpush1.msra.mxu0 0.0
      %2604 = vmatprep.subr.mxu0 0.0
      %2605 = vmatpush1.msra.mxu0 0.0
      %2606 = vmatprep.subr.mxu0 0.0
      %2607 = vmatpush1.msra.mxu0 0.0
      %2608 = vmatprep.subr.mxu0 0.0
      %2609 = vmatpush1.msra.mxu0 0.0
      %2610 = vmatprep.subr.mxu0 0.0
      %2611 = vmatpush1.msra.mxu0 0.0
      %2612 = vmatprep.subr.mxu0 0.0
      %2613 = vmatpush1.msra.mxu0 0.0
      %2614 = vmatprep.subr.mxu0 0.0
      %2615 = vmatpush1.msra.mxu0 0.0
      %2616 = vmatprep.subr.mxu0 0.0
      %2617 = vmatpush1.msra.mxu0 0.0
      %2618 = vmatprep.subr.mxu0 0.0
      %2619 = vmatpush1.msra.mxu0 0.0
      %2620 = vmatprep.subr.mxu0 0.0
      %2621 = vmatpush1.msra.mxu0 0.0
      %2622 = vmatprep.subr.mxu0 0.0
      %2623 = vmatpush1.msra.mxu0 0.0
      %2624 = vmatprep.subr.mxu0 0.0
      %2625 = vmatpush1.msra.mxu0 0.0
      %2626 = vmatprep.subr.mxu0 0.0
      %2627 = vmatpush1.msra.mxu0 0.0
      %2628 = vmatprep.subr.mxu0 0.0
      %2629 = vmatpush1.msra.mxu0 0.0
      %2630 = vmatprep.subr.mxu0 0.0
      %2631 = vmatpush1.msra.mxu0 0.0
      %2632 = vmatprep.subr.mxu0 0.0
      %2633 = vmatpush1.msra.mxu0 0.0
      %2634 = vmatprep.subr.mxu0 0.0
      %2635 = vmatpush1.msra.mxu0 0.0
      %2636 = vmatprep.subr.mxu0 0.0
      %2637 = vmatpush1.msra.mxu0 0.0
      %2638 = vmatprep.subr.mxu0 0.0
      %2639 = vmatpush1.msra.mxu0 0.0
      %2640 = vmatprep.mubr.f32.mxu0 0.0
      %2641 = vmatmul.mubr.f32.gmra.mrb[0].mxu0 %v2562
      %v2642 = vpop.f32.mrb[0].mxu0
      %v2643 = vadd.f32 0.0, %v2642
      %v2644 = vpop.f32.mrb[0].mxu0
      %2645 = vmatprep.mubr.f32.mxu0 0.0
      %2646 = vmatmul.mubr.f32.gmra.mrb[0].mxu0 %v2565
      %v2647 = vpop.f32.mrb[0].mxu0
      %v2648 = vadd.f32 0.0, %v2647
      %v2649 = vpop.f32.mrb[0].mxu0
      %2650 = vmatprep.mubr.f32.mxu0 0.0
      %2651 = vmatmul.mubr.f32.gmra.mrb[0].mxu0 %v2568
      %v2652 = vpop.f32.mrb[0].mxu0
      %v2653 = vadd.f32 0.0, %v2652
      %v2654 = vpop.f32.mrb[0].mxu0
      %2655 = vmatprep.mubr.f32.mxu0 0.0
      %2656 = vmatmul.mubr.f32.gmra.mrb[0].mxu0 %v2571
      %v2657 = vpop.f32.mrb[0].mxu0
      %v2658 = vadd.f32 0.0, %v2657
      %v2659 = vpop.f32.mrb[0].mxu0
      %2660 = vmatprep.mubr.f32.mxu0 0.0
      %2661 = vmatmul.mubr.f32.gmra.mrb[0].mxu0 %v2574
      %v2662 = vpop.f32.mrb[0].mxu0
      %v2663 = vadd.f32 0.0, %v2662
      %v2664 = vpop.f32.mrb[0].mxu0
      %2665 = vdwg.mxu0
      %v2667 = vsel %vm2528, %v2536, 0
      %v2670 = vsel %vm2528, %v2537, 0
      %v2673 = vsel %vm2528, %v2538, 0
      %v2676 = vsel %vm2528, %v2539, 0
      %v2679 = vsel %vm2528, %v2540, 0
      %2681 = vmatprep.subr.mxu0 0.0
      %2682 = vmatpush1.msra.mxu0 %v2541
      %2683 = vmatprep.subr.mxu0 0.0
      %2684 = vmatpush1.msra.mxu0 %v2542
      %2685 = vmatprep.subr.mxu0 0.0
      %2686 = vmatpush1.msra.mxu0 %v2543
      %2687 = vmatprep.subr.mxu0 0.0
      %2688 = vmatpush1.msra.mxu0 %v2544
      %2689 = vmatprep.subr.mxu0 0.0
      %2690 = vmatpush1.msra.mxu0 %v2545
      %2691 = vmatprep.subr.mxu0 0.0
      %2692 = vmatpush1.msra.mxu0 %v2546
      %2693 = vmatprep.subr.mxu0 0.0
      %2694 = vmatpush1.msra.mxu0 %v2547
      %2695 = vmatprep.subr.mxu0 0.0
      %2696 = vmatpush1.msra.mxu0 0.0
      %2697 = vmatprep.subr.mxu0 0.0
      %2698 = vmatpush1.msra.mxu0 0.0
      %2699 = vmatprep.subr.mxu0 0.0
      %2700 = vmatpush1.msra.mxu0 0.0
      %2701 = vmatprep.subr.mxu0 0.0
      %2702 = vmatpush1.msra.mxu0 0.0
      %2703 = vmatprep.subr.mxu0 0.0
      %2704 = vmatpush1.msra.mxu0 0.0
      %2705 = vmatprep.subr.mxu0 0.0
      %2706 = vmatpush1.msra.mxu0 0.0
      %2707 = vmatprep.subr.mxu0 0.0
      %2708 = vmatpush1.msra.mxu0 0.0
      %2709 = vmatprep.subr.mxu0 0.0
      %2710 = vmatpush1.msra.mxu0 0.0
      %2711 = vmatprep.subr.mxu0 0.0
      %2712 = vmatpush1.msra.mxu0 0.0
      %2713 = vmatprep.subr.mxu0 0.0
      %2714 = vmatpush1.msra.mxu0 0.0
      %2715 = vmatprep.subr.mxu0 0.0
      %2716 = vmatpush1.msra.mxu0 0.0
      %2717 = vmatprep.subr.mxu0 0.0
      %2718 = vmatpush1.msra.mxu0 0.0
      %2719 = vmatprep.subr.mxu0 0.0
      %2720 = vmatpush1.msra.mxu0 0.0
      %2721 = vmatprep.subr.mxu0 0.0
      %2722 = vmatpush1.msra.mxu0 0.0
      %2723 = vmatprep.subr.mxu0 0.0
      %2724 = vmatpush1.msra.mxu0 0.0
      %2725 = vmatprep.subr.mxu0 0.0
      %2726 = vmatpush1.msra.mxu0 0.0
      %2727 = vmatprep.subr.mxu0 0.0
      %2728 = vmatpush1.msra.mxu0 0.0
      %2729 = vmatprep.subr.mxu0 0.0
      %2730 = vmatpush1.msra.mxu0 0.0
      %2731 = vmatprep.subr.mxu0 0.0
      %2732 = vmatpush1.msra.mxu0 0.0
      %2733 = vmatprep.subr.mxu0 0.0
      %2734 = vmatpush1.msra.mxu0 0.0
      %2735 = vmatprep.subr.mxu0 0.0
      %2736 = vmatpush1.msra.mxu0 0.0
      %2737 = vmatprep.subr.mxu0 0.0
      %2738 = vmatpush1.msra.mxu0 0.0
      %2739 = vmatprep.subr.mxu0 0.0
      %2740 = vmatpush1.msra.mxu0 0.0
      %2741 = vmatprep.subr.mxu0 0.0
      %2742 = vmatpush1.msra.mxu0 0.0
      %2743 = vmatprep.subr.mxu0 0.0
      %2744 = vmatpush1.msra.mxu0 0.0
      %2745 = vmatprep.mubr.f32.mxu0 0.0
      %2746 = vmatmul.mubr.f32.gmra.mrb[0].mxu0 %v2667
      %v2747 = vpop.f32.mrb[0].mxu0
      %v2748 = vadd.f32 %v2643, %v2747
      %v2749 = vpop.f32.mrb[0].mxu0
      %2750 = vmatprep.mubr.f32.mxu0 0.0
      %2751 = vmatmul.mubr.f32.gmra.mrb[0].mxu0 %v2670
      %v2752 = vpop.f32.mrb[0].mxu0
      %v2753 = vadd.f32 %v2648, %v2752
      %v2754 = vpop.f32.mrb[0].mxu0
      %2755 = vmatprep.mubr.f32.mxu0 0.0
      %2756 = vmatmul.mubr.f32.gmra.mrb[0].mxu0 %v2673
      %v2757 = vpop.f32.mrb[0].mxu0
      %v2758 = vadd.f32 %v2653, %v2757
      %v2759 = vpop.f32.mrb[0].mxu0
      %2760 = vmatprep.mubr.f32.mxu0 0.0
      %2761 = vmatmul.mubr.f32.gmra.mrb[0].mxu0 %v2676
      %v2762 = vpop.f32.mrb[0].mxu0
      %v2763 = vadd.f32 %v2658, %v2762
      %v2764 = vpop.f32.mrb[0].mxu0
      %2765 = vmatprep.mubr.f32.mxu0 0.0
      %2766 = vmatmul.mubr.f32.gmra.mrb[0].mxu0 %v2679
      %v2767 = vpop.f32.mrb[0].mxu0
      %v2768 = vadd.f32 %v2663, %v2767
      %v2769 = vpop.f32.mrb[0].mxu0
      %2770 = vdwg.mxu0
      %v2771 = vld [vmem:[#allocation3 + $0x2] sm:$0xff]
      %v2772 = vld [vmem:[#allocation3 + $0xa] sm:$0xff]
      %v2773 = vld [vmem:[#allocation3 + $0x12] sm:$0xff]
      %v2774 = vld [vmem:[#allocation3 + $0x1a] sm:$0xff]
      %v2775 = vld [vmem:[#allocation3 + $0x22] sm:$0xff]
      %s2776 = scalar_lea.vmem %s7, 112
      %v2777 = vld [vmem:[%s2776] sm:$0xff]
      %v2778 = vld [vmem:[%s2776 + $0x8] sm:$0xff]
      %v2779 = vld [vmem:[%s2776 + $0x10] sm:$0xff]
      %v2780 = vld [vmem:[%s2776 + $0x18] sm:$0xff]
      %v2781 = vld [vmem:[%s2776 + $0x20] sm:$0xff]
      %v2782 = vld [vmem:[%s2776 + $0x28] sm:$0xff]
      %v2783 = vld [vmem:[%s2776 + $0x30] sm:$0xff]
      %v2785 = vsel %vm2528, %v2771, 0
      %v2788 = vsel %vm2528, %v2772, 0
      %v2791 = vsel %vm2528, %v2773, 0
      %v2794 = vsel %vm2528, %v2774, 0
      %v2797 = vsel %vm2528, %v2775, 0
      %2799 = vmatprep.subr.mxu0 0.0
      %2800 = vmatpush1.msra.mxu0 %v2777
      %2801 = vmatprep.subr.mxu0 0.0
      %2802 = vmatpush1.msra.mxu0 %v2778
      %2803 = vmatprep.subr.mxu0 0.0
      %2804 = vmatpush1.msra.mxu0 %v2779
      %2805 = vmatprep.subr.mxu0 0.0
      %2806 = vmatpush1.msra.mxu0 %v2780
      %2807 = vmatprep.subr.mxu0 0.0
      %2808 = vmatpush1.msra.mxu0 %v2781
      %2809 = vmatprep.subr.mxu0 0.0
      %2810 = vmatpush1.msra.mxu0 %v2782
      %2811 = vmatprep.subr.mxu0 0.0
      %2812 = vmatpush1.msra.mxu0 %v2783
      %2813 = vmatprep.subr.mxu0 0.0
      %2814 = vmatpush1.msra.mxu0 0.0
      %2815 = vmatprep.subr.mxu0 0.0
      %2816 = vmatpush1.msra.mxu0 0.0
      %2817 = vmatprep.subr.mxu0 0.0
      %2818 = vmatpush1.msra.mxu0 0.0
      %2819 = vmatprep.subr.mxu0 0.0
      %2820 = vmatpush1.msra.mxu0 0.0
      %2821 = vmatprep.subr.mxu0 0.0
      %2822 = vmatpush1.msra.mxu0 0.0
      %2823 = vmatprep.subr.mxu0 0.0
      %2824 = vmatpush1.msra.mxu0 0.0
      %2825 = vmatprep.subr.mxu0 0.0
      %2826 = vmatpush1.msra.mxu0 0.0
      %2827 = vmatprep.subr.mxu0 0.0
      %2828 = vmatpush1.msra.mxu0 0.0
      %2829 = vmatprep.subr.mxu0 0.0
      %2830 = vmatpush1.msra.mxu0 0.0
      %2831 = vmatprep.subr.mxu0 0.0
      %2832 = vmatpush1.msra.mxu0 0.0
      %2833 = vmatprep.subr.mxu0 0.0
      %2834 = vmatpush1.msra.mxu0 0.0
      %2835 = vmatprep.subr.mxu0 0.0
      %2836 = vmatpush1.msra.mxu0 0.0
      %2837 = vmatprep.subr.mxu0 0.0
      %2838 = vmatpush1.msra.mxu0 0.0
      %2839 = vmatprep.subr.mxu0 0.0
      %2840 = vmatpush1.msra.mxu0 0.0
      %2841 = vmatprep.subr.mxu0 0.0
      %2842 = vmatpush1.msra.mxu0 0.0
      %2843 = vmatprep.subr.mxu0 0.0
      %2844 = vmatpush1.msra.mxu0 0.0
      %2845 = vmatprep.subr.mxu0 0.0
      %2846 = vmatpush1.msra.mxu0 0.0
      %2847 = vmatprep.subr.mxu0 0.0
      %2848 = vmatpush1.msra.mxu0 0.0
      %2849 = vmatprep.subr.mxu0 0.0
      %2850 = vmatpush1.msra.mxu0 0.0
      %2851 = vmatprep.subr.mxu0 0.0
      %2852 = vmatpush1.msra.mxu0 0.0
      %2853 = vmatprep.subr.mxu0 0.0
      %2854 = vmatpush1.msra.mxu0 0.0
      %2855 = vmatprep.subr.mxu0 0.0
      %2856 = vmatpush1.msra.mxu0 0.0
      %2857 = vmatprep.subr.mxu0 0.0
      %2858 = vmatpush1.msra.mxu0 0.0
      %2859 = vmatprep.subr.mxu0 0.0
      %2860 = vmatpush1.msra.mxu0 0.0
      %2861 = vmatprep.subr.mxu0 0.0
      %2862 = vmatpush1.msra.mxu0 0.0
      %2863 = vmatprep.mubr.f32.mxu0 0.0
      %2864 = vmatmul.mubr.f32.gmra.mrb[0].mxu0 %v2785
      %v2865 = vpop.f32.mrb[0].mxu0
      %v2866 = vadd.f32 0.0, %v2865
      %v2867 = vpop.f32.mrb[0].mxu0
      %2868 = vmatprep.mubr.f32.mxu0 0.0
      %2869 = vmatmul.mubr.f32.gmra.mrb[0].mxu0 %v2788
      %v2870 = vpop.f32.mrb[0].mxu0
      %v2871 = vadd.f32 0.0, %v2870
      %v2872 = vpop.f32.mrb[0].mxu0
      %2873 = vmatprep.mubr.f32.mxu0 0.0
      %2874 = vmatmul.mubr.f32.gmra.mrb[0].mxu0 %v2791
      %v2875 = vpop.f32.mrb[0].mxu0
      %v2876 = vadd.f32 0.0, %v2875
      %v2877 = vpop.f32.mrb[0].mxu0
      %2878 = vmatprep.mubr.f32.mxu0 0.0
      %2879 = vmatmul.mubr.f32.gmra.mrb[0].mxu0 %v2794
      %v2880 = vpop.f32.mrb[0].mxu0
      %v2881 = vadd.f32 0.0, %v2880
      %v2882 = vpop.f32.mrb[0].mxu0
      %2883 = vmatprep.mubr.f32.mxu0 0.0
      %2884 = vmatmul.mubr.f32.gmra.mrb[0].mxu0 %v2797
      %v2885 = vpop.f32.mrb[0].mxu0
      %v2886 = vadd.f32 0.0, %v2885
      %v2887 = vpop.f32.mrb[0].mxu0
      %2888 = vdwg.mxu0
      %v2889 = vadd.f32 %v2748, %v2866
      %v2890 = vadd.f32 %v2753, %v2871
      %v2891 = vadd.f32 %v2758, %v2876
      %v2892 = vadd.f32 %v2763, %v2881
      %v2893 = vadd.f32 %v2768, %v2886
      %v2894 = vld [vmem:[%s8] sm:$0x1]
      %v2896 = vlaneseq
      %v2897 = vshrl.u32 %v2896, 7
      %v2898 = vsub.s32 0, %v2897
      %v2899 = vrot.slane %v2894, %v2898
      %v2901 = vadd.f32 %v2889, %v2899
      %v2902 = vadd.f32 %v2890, %v2899
      %v2903 = vadd.f32 %v2891, %v2899
      %v2904 = vadd.f32 %v2892, %v2899
      %v2905 = vadd.f32 %v2893, %v2899
      %v2906 = vmax.f32 %v2901, 0.0
      %v2907 = vmax.f32 %v2902, 0.0
      %v2908 = vmax.f32 %v2903, 0.0
      %v2909 = vmax.f32 %v2904, 0.0
      %v2910 = vmax.f32 %v2905, 0.0
      %2916 = vrot.lane.b32.xlu0 %v2906, 112
      %v2917 = vpop.permute.xlu0 %2916
      %2918 = vrot.lane.b32.xlu0 %v2907, 112
      %v2919 = vpop.permute.xlu0 %2918
      %2920 = vrot.lane.b32.xlu0 %v2908, 112
      %v2921 = vpop.permute.xlu0 %2920
      %2922 = vrot.lane.b32.xlu0 %v2909, 112
      %v2923 = vpop.permute.xlu0 %2922
      %2924 = vrot.lane.b32.xlu0 %v2910, 112
      %v2925 = vpop.permute.xlu0 %2924
      %v2931 = vmax.f32 %v2906, %v2917
      %v2932 = vmax.f32 %v2907, %v2919
      %v2933 = vmax.f32 %v2908, %v2921
      %v2934 = vmax.f32 %v2909, %v2923
      %v2935 = vmax.f32 %v2910, %v2925
      %v2936 = vld [vmem:[%s9] sm:$0xff]
      %v2937 = vld [vmem:[%s9 + $0x8] sm:$0xff]
      %v2938 = vld [vmem:[%s9 + $0x10] sm:$0xff]
      %v2939 = vld [vmem:[%s9 + $0x18] sm:$0xf]
      %vm2940 = vcmask 326656
      %v2942 = vsel %vm2940, %v2936, 0
      %v2945 = vsel %vm2940, %v2937, 0
      %v2948 = vsel %vm2940, %v2938, 0
      %v2951 = vsel %vm2940, %v2939, 0
      %2953 = vmatprep.subr.mxu0 0.0
      %2954 = vmatpush1.msra.mxu0 %v2931
      %2955 = vmatprep.subr.mxu0 0.0
      %2956 = vmatpush1.msra.mxu0 %v2932
      %2957 = vmatprep.subr.mxu0 0.0
      %2958 = vmatpush1.msra.mxu0 %v2933
      %2959 = vmatprep.subr.mxu0 0.0
      %2960 = vmatpush1.msra.mxu0 %v2934
      %2961 = vmatprep.subr.mxu0 0.0
      %2962 = vmatpush1.msra.mxu0 %v2935
      %2963 = vmatprep.subr.mxu0 0.0
      %2964 = vmatpush1.msra.mxu0 0.0
      %2965 = vmatprep.subr.mxu0 0.0
      %2966 = vmatpush1.msra.mxu0 0.0
      %2967 = vmatprep.subr.mxu0 0.0
      %2968 = vmatpush1.msra.mxu0 0.0
      %2969 = vmatprep.subr.mxu0 0.0
      %2970 = vmatpush1.msra.mxu0 0.0
      %2971 = vmatprep.subr.mxu0 0.0
      %2972 = vmatpush1.msra.mxu0 0.0
      %2973 = vmatprep.subr.mxu0 0.0
      %2974 = vmatpush1.msra.mxu0 0.0
      %2975 = vmatprep.subr.mxu0 0.0
      %2976 = vmatpush1.msra.mxu0 0.0
      %2977 = vmatprep.subr.mxu0 0.0
      %2978 = vmatpush1.msra.mxu0 0.0
      %2979 = vmatprep.subr.mxu0 0.0
      %2980 = vmatpush1.msra.mxu0 0.0
      %2981 = vmatprep.subr.mxu0 0.0
      %2982 = vmatpush1.msra.mxu0 0.0
      %2983 = vmatprep.subr.mxu0 0.0
      %2984 = vmatpush1.msra.mxu0 0.0
      %2985 = vmatprep.subr.mxu0 0.0
      %2986 = vmatpush1.msra.mxu0 0.0
      %2987 = vmatprep.subr.mxu0 0.0
      %2988 = vmatpush1.msra.mxu0 0.0
      %2989 = vmatprep.subr.mxu0 0.0
      %2990 = vmatpush1.msra.mxu0 0.0
      %2991 = vmatprep.subr.mxu0 0.0
      %2992 = vmatpush1.msra.mxu0 0.0
      %2993 = vmatprep.subr.mxu0 0.0
      %2994 = vmatpush1.msra.mxu0 0.0
      %2995 = vmatprep.subr.mxu0 0.0
      %2996 = vmatpush1.msra.mxu0 0.0
      %2997 = vmatprep.subr.mxu0 0.0
      %2998 = vmatpush1.msra.mxu0 0.0
      %2999 = vmatprep.subr.mxu0 0.0
      %3000 = vmatpush1.msra.mxu0 0.0
      %3001 = vmatprep.subr.mxu0 0.0
      %3002 = vmatpush1.msra.mxu0 0.0
      %3003 = vmatprep.subr.mxu0 0.0
      %3004 = vmatpush1.msra.mxu0 0.0
      %3005 = vmatprep.subr.mxu0 0.0
      %3006 = vmatpush1.msra.mxu0 0.0
      %3007 = vmatprep.subr.mxu0 0.0
      %3008 = vmatpush1.msra.mxu0 0.0
      %3009 = vmatprep.subr.mxu0 0.0
      %3010 = vmatpush1.msra.mxu0 0.0
      %3011 = vmatprep.subr.mxu0 0.0
      %3012 = vmatpush1.msra.mxu0 0.0
      %3013 = vmatprep.subr.mxu0 0.0
      %3014 = vmatpush1.msra.mxu0 0.0
      %3015 = vmatprep.subr.mxu0 0.0
      %3016 = vmatpush1.msra.mxu0 0.0
      %3017 = vmatprep.mubr.f32.mxu0 0.0
      %3018 = vmatmul.mubr.f32.gmra.mrb[0].mxu0 %v2942
      %v3019 = vpop.f32.mrb[0].mxu0
      %v3020 = vadd.f32 0.0, %v3019
      %v3021 = vpop.f32.mrb[0].mxu0
      %3022 = vmatprep.mubr.f32.mxu0 0.0
      %3023 = vmatmul.mubr.f32.gmra.mrb[0].mxu0 %v2945
      %v3024 = vpop.f32.mrb[0].mxu0
      %v3025 = vadd.f32 0.0, %v3024
      %v3026 = vpop.f32.mrb[0].mxu0
      %3027 = vmatprep.mubr.f32.mxu0 0.0
      %3028 = vmatmul.mubr.f32.gmra.mrb[0].mxu0 %v2948
      %v3029 = vpop.f32.mrb[0].mxu0
      %v3030 = vadd.f32 0.0, %v3029
      %v3031 = vpop.f32.mrb[0].mxu0
      %3032 = vmatprep.mubr.f32.mxu0 0.0
      %3033 = vmatmul.mubr.f32.gmra.mrb[0].mxu0 %v2951
      %v3034 = vpop.f32.mrb[0].mxu0
      %v3035 = vadd.f32 0.0, %v3034
      %v3036 = vpop.f32.mrb[0].mxu0
      %3037 = vdwg.mxu0
      %s3038 = scalar_lea.vmem %s9, 32
      %v3039 = vld [vmem:[%s3038] sm:$0xff]
      %v3040 = vld [vmem:[%s3038 + $0x8] sm:$0xff]
      %v3041 = vld [vmem:[%s3038 + $0x10] sm:$0xff]
      %v3042 = vld [vmem:[%s3038 + $0x18] sm:$0xf]
      %v3044 = vsel %vm2940, %v3039, 0
      %v3047 = vsel %vm2940, %v3040, 0
      %v3050 = vsel %vm2940, %v3041, 0
      %v3053 = vsel %vm2940, %v3042, 0
      %3055 = vmatprep.subr.mxu0 0.0
      %3056 = vmatpush1.msra.mxu0 %v2931
      %3057 = vmatprep.subr.mxu0 0.0
      %3058 = vmatpush1.msra.mxu0 %v2932
      %3059 = vmatprep.subr.mxu0 0.0
      %3060 = vmatpush1.msra.mxu0 %v2933
      %3061 = vmatprep.subr.mxu0 0.0
      %3062 = vmatpush1.msra.mxu0 %v2934
      %3063 = vmatprep.subr.mxu0 0.0
      %3064 = vmatpush1.msra.mxu0 %v2935
      %3065 = vmatprep.subr.mxu0 0.0
      %3066 = vmatpush1.msra.mxu0 0.0
      %3067 = vmatprep.subr.mxu0 0.0
      %3068 = vmatpush1.msra.mxu0 0.0
      %3069 = vmatprep.subr.mxu0 0.0
      %3070 = vmatpush1.msra.mxu0 0.0
      %3071 = vmatprep.subr.mxu0 0.0
      %3072 = vmatpush1.msra.mxu0 0.0
      %3073 = vmatprep.subr.mxu0 0.0
      %3074 = vmatpush1.msra.mxu0 0.0
      %3075 = vmatprep.subr.mxu0 0.0
      %3076 = vmatpush1.msra.mxu0 0.0
      %3077 = vmatprep.subr.mxu0 0.0
      %3078 = vmatpush1.msra.mxu0 0.0
      %3079 = vmatprep.subr.mxu0 0.0
      %3080 = vmatpush1.msra.mxu0 0.0
      %3081 = vmatprep.subr.mxu0 0.0
      %3082 = vmatpush1.msra.mxu0 0.0
      %3083 = vmatprep.subr.mxu0 0.0
      %3084 = vmatpush1.msra.mxu0 0.0
      %3085 = vmatprep.subr.mxu0 0.0
      %3086 = vmatpush1.msra.mxu0 0.0
      %3087 = vmatprep.subr.mxu0 0.0
      %3088 = vmatpush1.msra.mxu0 0.0
      %3089 = vmatprep.subr.mxu0 0.0
      %3090 = vmatpush1.msra.mxu0 0.0
      %3091 = vmatprep.subr.mxu0 0.0
      %3092 = vmatpush1.msra.mxu0 0.0
      %3093 = vmatprep.subr.mxu0 0.0
      %3094 = vmatpush1.msra.mxu0 0.0
      %3095 = vmatprep.subr.mxu0 0.0
      %3096 = vmatpush1.msra.mxu0 0.0
      %3097 = vmatprep.subr.mxu0 0.0
      %3098 = vmatpush1.msra.mxu0 0.0
      %3099 = vmatprep.subr.mxu0 0.0
      %3100 = vmatpush1.msra.mxu0 0.0
      %3101 = vmatprep.subr.mxu0 0.0
      %3102 = vmatpush1.msra.mxu0 0.0
      %3103 = vmatprep.subr.mxu0 0.0
      %3104 = vmatpush1.msra.mxu0 0.0
      %3105 = vmatprep.subr.mxu0 0.0
      %3106 = vmatpush1.msra.mxu0 0.0
      %3107 = vmatprep.subr.mxu0 0.0
      %3108 = vmatpush1.msra.mxu0 0.0
      %3109 = vmatprep.subr.mxu0 0.0
      %3110 = vmatpush1.msra.mxu0 0.0
      %3111 = vmatprep.subr.mxu0 0.0
      %3112 = vmatpush1.msra.mxu0 0.0
      %3113 = vmatprep.subr.mxu0 0.0
      %3114 = vmatpush1.msra.mxu0 0.0
      %3115 = vmatprep.subr.mxu0 0.0
      %3116 = vmatpush1.msra.mxu0 0.0
      %3117 = vmatprep.subr.mxu0 0.0
      %3118 = vmatpush1.msra.mxu0 0.0
      %3119 = vmatprep.mubr.f32.mxu0 0.0
      %3120 = vmatmul.mubr.f32.gmra.mrb[0].mxu0 %v3044
      %v3121 = vpop.f32.mrb[0].mxu0
      %v3122 = vadd.f32 0.0, %v3121
      %v3123 = vpop.f32.mrb[0].mxu0
      %3124 = vmatprep.mubr.f32.mxu0 0.0
      %3125 = vmatmul.mubr.f32.gmra.mrb[0].mxu0 %v3047
      %v3126 = vpop.f32.mrb[0].mxu0
      %v3127 = vadd.f32 0.0, %v3126
      %v3128 = vpop.f32.mrb[0].mxu0
      %3129 = vmatprep.mubr.f32.mxu0 0.0
      %3130 = vmatmul.mubr.f32.gmra.mrb[0].mxu0 %v3050
      %v3131 = vpop.f32.mrb[0].mxu0
      %v3132 = vadd.f32 0.0, %v3131
      %v3133 = vpop.f32.mrb[0].mxu0
      %3134 = vmatprep.mubr.f32.mxu0 0.0
      %3135 = vmatmul.mubr.f32.gmra.mrb[0].mxu0 %v3053
      %v3136 = vpop.f32.mrb[0].mxu0
      %v3137 = vadd.f32 0.0, %v3136
      %v3138 = vpop.f32.mrb[0].mxu0
      %3139 = vdwg.mxu0
      %v3140 = vmax.f32 %v3020, %v3122
      %v3141 = vmax.f32 %v3025, %v3127
      %v3142 = vmax.f32 %v3030, %v3132
      %v3143 = vmax.f32 %v3035, %v3137
      %vm3144 = vcmask 392192
      %3145 = vst.msk [vmem:[#allocation4] sm:$0xff] %vm3144, %v3140
      %3146 = vst.msk [vmem:[#allocation4 + $0x8] sm:$0xff] %vm3144, %v3141
      %3147 = vst.msk [vmem:[#allocation4 + $0x10] sm:$0xff] %vm3144, %v3142
      %vm3148 = vcmask 388096
      %3149 = vst.msk [vmem:[#allocation4 + $0x18] sm:$0xf] %vm3148, %v3143
      %v3150 = vld [vmem:[#allocation4] sm:$0xff]
      %v3151 = vld [vmem:[#allocation4 + $0x8] sm:$0xff]
      %v3152 = vld [vmem:[#allocation4 + $0x10] sm:$0xff]
      %v3153 = vld [vmem:[#allocation4 + $0x18] sm:$0x3]
      %v3154 = vld [vmem:[%s10] sm:$0xff]
      %v3155 = vld [vmem:[%s10 + $0x8] sm:$0xff]
      %v3156 = vld [vmem:[%s10 + $0x10] sm:$0xff]
      %v3157 = vld [vmem:[%s10 + $0x18] sm:$0xff]
      %v3158 = vld [vmem:[%s10 + $0x20] sm:$0xff]
      %v3159 = vld [vmem:[%s10 + $0x28] sm:$0xff]
      %v3160 = vld [vmem:[#allocation4 + $0x1] sm:$0xff]
      %v3161 = vld [vmem:[#allocation4 + $0x9] sm:$0xff]
      %v3162 = vld [vmem:[#allocation4 + $0x11] sm:$0xff]
      %v3163 = vld [vmem:[#allocation4 + $0x19] sm:$0x3]
      %s3164 = scalar_lea.vmem %s10, 48
      %v3165 = vld [vmem:[%s3164] sm:$0xff]
      %v3166 = vld [vmem:[%s3164 + $0x8] sm:$0xff]
      %v3167 = vld [vmem:[%s3164 + $0x10] sm:$0xff]
      %v3168 = vld [vmem:[%s3164 + $0x18] sm:$0xff]
      %v3169 = vld [vmem:[%s3164 + $0x20] sm:$0xff]
      %v3170 = vld [vmem:[%s3164 + $0x28] sm:$0xff]
      %v3172 = vsel %vm3144, %v3160, 0
      %v3175 = vsel %vm3144, %v3161, 0
      %v3178 = vsel %vm3144, %v3162, 0
      %v3181 = vsel %vm3144, %v3163, 0
      %3183 = vmatprep.subr.mxu0 0.0
      %3184 = vmatpush1.msra.mxu0 %v3165
      %3185 = vmatprep.subr.mxu0 0.0
      %3186 = vmatpush1.msra.mxu0 %v3166
      %3187 = vmatprep.subr.mxu0 0.0
      %3188 = vmatpush1.msra.mxu0 %v3167
      %3189 = vmatprep.subr.mxu0 0.0
      %3190 = vmatpush1.msra.mxu0 %v3168
      %3191 = vmatprep.subr.mxu0 0.0
      %3192 = vmatpush1.msra.mxu0 %v3169
      %3193 = vmatprep.subr.mxu0 0.0
      %3194 = vmatpush1.msra.mxu0 %v3170
      %3195 = vmatprep.subr.mxu0 0.0
      %3196 = vmatpush1.msra.mxu0 0.0
      %3197 = vmatprep.subr.mxu0 0.0
      %3198 = vmatpush1.msra.mxu0 0.0
      %3199 = vmatprep.subr.mxu0 0.0
      %3200 = vmatpush1.msra.mxu0 0.0
      %3201 = vmatprep.subr.mxu0 0.0
      %3202 = vmatpush1.msra.mxu0 0.0
      %3203 = vmatprep.subr.mxu0 0.0
      %3204 = vmatpush1.msra.mxu0 0.0
      %3205 = vmatprep.subr.mxu0 0.0
      %3206 = vmatpush1.msra.mxu0 0.0
      %3207 = vmatprep.subr.mxu0 0.0
      %3208 = vmatpush1.msra.mxu0 0.0
      %3209 = vmatprep.subr.mxu0 0.0
      %3210 = vmatpush1.msra.mxu0 0.0
      %3211 = vmatprep.subr.mxu0 0.0
      %3212 = vmatpush1.msra.mxu0 0.0
      %3213 = vmatprep.subr.mxu0 0.0
      %3214 = vmatpush1.msra.mxu0 0.0
      %3215 = vmatprep.subr.mxu0 0.0
      %3216 = vmatpush1.msra.mxu0 0.0
      %3217 = vmatprep.subr.mxu0 0.0
      %3218 = vmatpush1.msra.mxu0 0.0
      %3219 = vmatprep.subr.mxu0 0.0
      %3220 = vmatpush1.msra.mxu0 0.0
      %3221 = vmatprep.subr.mxu0 0.0
      %3222 = vmatpush1.msra.mxu0 0.0
      %3223 = vmatprep.subr.mxu0 0.0
      %3224 = vmatpush1.msra.mxu0 0.0
      %3225 = vmatprep.subr.mxu0 0.0
      %3226 = vmatpush1.msra.mxu0 0.0
      %3227 = vmatprep.subr.mxu0 0.0
      %3228 = vmatpush1.msra.mxu0 0.0
      %3229 = vmatprep.subr.mxu0 0.0
      %3230 = vmatpush1.msra.mxu0 0.0
      %3231 = vmatprep.subr.mxu0 0.0
      %3232 = vmatpush1.msra.mxu0 0.0
      %3233 = vmatprep.subr.mxu0 0.0
      %3234 = vmatpush1.msra.mxu0 0.0
      %3235 = vmatprep.subr.mxu0 0.0
      %3236 = vmatpush1.msra.mxu0 0.0
      %3237 = vmatprep.subr.mxu0 0.0
      %3238 = vmatpush1.msra.mxu0 0.0
      %3239 = vmatprep.subr.mxu0 0.0
      %3240 = vmatpush1.msra.mxu0 0.0
      %3241 = vmatprep.subr.mxu0 0.0
      %3242 = vmatpush1.msra.mxu0 0.0
      %3243 = vmatprep.subr.mxu0 0.0
      %3244 = vmatpush1.msra.mxu0 0.0
      %3245 = vmatprep.subr.mxu0 0.0
      %3246 = vmatpush1.msra.mxu0 0.0
      %3247 = vmatprep.mubr.f32.mxu0 0.0
      %3248 = vmatmul.mubr.f32.gmra.mrb[0].mxu0 %v3172
      %v3249 = vpop.f32.mrb[0].mxu0
      %v3250 = vadd.f32 0.0, %v3249
      %v3251 = vpop.f32.mrb[0].mxu0
      %3252 = vmatprep.mubr.f32.mxu0 0.0
      %3253 = vmatmul.mubr.f32.gmra.mrb[0].mxu0 %v3175
      %v3254 = vpop.f32.mrb[0].mxu0
      %v3255 = vadd.f32 0.0, %v3254
      %v3256 = vpop.f32.mrb[0].mxu0
      %3257 = vmatprep.mubr.f32.mxu0 0.0
      %3258 = vmatmul.mubr.f32.gmra.mrb[0].mxu0 %v3178
      %v3259 = vpop.f32.mrb[0].mxu0
      %v3260 = vadd.f32 0.0, %v3259
      %v3261 = vpop.f32.mrb[0].mxu0
      %3262 = vmatprep.mubr.f32.mxu0 0.0
      %3263 = vmatmul.mubr.f32.gmra.mrb[0].mxu0 %v3181
      %v3264 = vpop.f32.mrb[0].mxu0
      %v3265 = vadd.f32 0.0, %v3264
      %v3266 = vpop.f32.mrb[0].mxu0
      %3267 = vdwg.mxu0
      %v3269 = vsel %vm3144, %v3150, 0
      %v3272 = vsel %vm3144, %v3151, 0
      %v3275 = vsel %vm3144, %v3152, 0
      %v3278 = vsel %vm3144, %v3153, 0
      %3280 = vmatprep.subr.mxu0 0.0
      %3281 = vmatpush1.msra.mxu0 %v3154
      %3282 = vmatprep.subr.mxu0 0.0
      %3283 = vmatpush1.msra.mxu0 %v3155
      %3284 = vmatprep.subr.mxu0 0.0
      %3285 = vmatpush1.msra.mxu0 %v3156
      %3286 = vmatprep.subr.mxu0 0.0
      %3287 = vmatpush1.msra.mxu0 %v3157
      %3288 = vmatprep.subr.mxu0 0.0
      %3289 = vmatpush1.msra.mxu0 %v3158
      %3290 = vmatprep.subr.mxu0 0.0
      %3291 = vmatpush1.msra.mxu0 %v3159
      %3292 = vmatprep.subr.mxu0 0.0
      %3293 = vmatpush1.msra.mxu0 0.0
      %3294 = vmatprep.subr.mxu0 0.0
      %3295 = vmatpush1.msra.mxu0 0.0
      %3296 = vmatprep.subr.mxu0 0.0
      %3297 = vmatpush1.msra.mxu0 0.0
      %3298 = vmatprep.subr.mxu0 0.0
      %3299 = vmatpush1.msra.mxu0 0.0
      %3300 = vmatprep.subr.mxu0 0.0
      %3301 = vmatpush1.msra.mxu0 0.0
      %3302 = vmatprep.subr.mxu0 0.0
      %3303 = vmatpush1.msra.mxu0 0.0
      %3304 = vmatprep.subr.mxu0 0.0
      %3305 = vmatpush1.msra.mxu0 0.0
      %3306 = vmatprep.subr.mxu0 0.0
      %3307 = vmatpush1.msra.mxu0 0.0
      %3308 = vmatprep.subr.mxu0 0.0
      %3309 = vmatpush1.msra.mxu0 0.0
      %3310 = vmatprep.subr.mxu0 0.0
      %3311 = vmatpush1.msra.mxu0 0.0
      %3312 = vmatprep.subr.mxu0 0.0
      %3313 = vmatpush1.msra.mxu0 0.0
      %3314 = vmatprep.subr.mxu0 0.0
      %3315 = vmatpush1.msra.mxu0 0.0
      %3316 = vmatprep.subr.mxu0 0.0
      %3317 = vmatpush1.msra.mxu0 0.0
      %3318 = vmatprep.subr.mxu0 0.0
      %3319 = vmatpush1.msra.mxu0 0.0
      %3320 = vmatprep.subr.mxu0 0.0
      %3321 = vmatpush1.msra.mxu0 0.0
      %3322 = vmatprep.subr.mxu0 0.0
      %3323 = vmatpush1.msra.mxu0 0.0
      %3324 = vmatprep.subr.mxu0 0.0
      %3325 = vmatpush1.msra.mxu0 0.0
      %3326 = vmatprep.subr.mxu0 0.0
      %3327 = vmatpush1.msra.mxu0 0.0
      %3328 = vmatprep.subr.mxu0 0.0
      %3329 = vmatpush1.msra.mxu0 0.0
      %3330 = vmatprep.subr.mxu0 0.0
      %3331 = vmatpush1.msra.mxu0 0.0
      %3332 = vmatprep.subr.mxu0 0.0
      %3333 = vmatpush1.msra.mxu0 0.0
      %3334 = vmatprep.subr.mxu0 0.0
      %3335 = vmatpush1.msra.mxu0 0.0
      %3336 = vmatprep.subr.mxu0 0.0
      %3337 = vmatpush1.msra.mxu0 0.0
      %3338 = vmatprep.subr.mxu0 0.0
      %3339 = vmatpush1.msra.mxu0 0.0
      %3340 = vmatprep.subr.mxu0 0.0
      %3341 = vmatpush1.msra.mxu0 0.0
      %3342 = vmatprep.subr.mxu0 0.0
      %3343 = vmatpush1.msra.mxu0 0.0
      %3344 = vmatprep.mubr.f32.mxu0 0.0
      %3345 = vmatmul.mubr.f32.gmra.mrb[0].mxu0 %v3269
      %v3346 = vpop.f32.mrb[0].mxu0
      %v3347 = vadd.f32 %v3250, %v3346
      %v3348 = vpop.f32.mrb[0].mxu0
      %3349 = vmatprep.mubr.f32.mxu0 0.0
      %3350 = vmatmul.mubr.f32.gmra.mrb[0].mxu0 %v3272
      %v3351 = vpop.f32.mrb[0].mxu0
      %v3352 = vadd.f32 %v3255, %v3351
      %v3353 = vpop.f32.mrb[0].mxu0
      %3354 = vmatprep.mubr.f32.mxu0 0.0
      %3355 = vmatmul.mubr.f32.gmra.mrb[0].mxu0 %v3275
      %v3356 = vpop.f32.mrb[0].mxu0
      %v3357 = vadd.f32 %v3260, %v3356
      %v3358 = vpop.f32.mrb[0].mxu0
      %3359 = vmatprep.mubr.f32.mxu0 0.0
      %3360 = vmatmul.mubr.f32.gmra.mrb[0].mxu0 %v3278
      %v3361 = vpop.f32.mrb[0].mxu0
      %v3362 = vadd.f32 %v3265, %v3361
      %v3363 = vpop.f32.mrb[0].mxu0
      %3364 = vdwg.mxu0
      %v3365 = vld [vmem:[#allocation4 + $0x2] sm:$0xff]
      %v3366 = vld [vmem:[#allocation4 + $0xa] sm:$0xff]
      %v3367 = vld [vmem:[#allocation4 + $0x12] sm:$0xff]
      %v3368 = vld [vmem:[#allocation4 + $0x1a] sm:$0x3]
      %s3369 = scalar_lea.vmem %s10, 96
      %v3370 = vld [vmem:[%s3369] sm:$0xff]
      %v3371 = vld [vmem:[%s3369 + $0x8] sm:$0xff]
      %v3372 = vld [vmem:[%s3369 + $0x10] sm:$0xff]
      %v3373 = vld [vmem:[%s3369 + $0x18] sm:$0xff]
      %v3374 = vld [vmem:[%s3369 + $0x20] sm:$0xff]
      %v3375 = vld [vmem:[%s3369 + $0x28] sm:$0xff]
      %v3377 = vsel %vm3144, %v3365, 0
      %v3380 = vsel %vm3144, %v3366, 0
      %v3383 = vsel %vm3144, %v3367, 0
      %v3386 = vsel %vm3144, %v3368, 0
      %3388 = vmatprep.subr.mxu0 0.0
      %3389 = vmatpush1.msra.mxu0 %v3370
      %3390 = vmatprep.subr.mxu0 0.0
      %3391 = vmatpush1.msra.mxu0 %v3371
      %3392 = vmatprep.subr.mxu0 0.0
      %3393 = vmatpush1.msra.mxu0 %v3372
      %3394 = vmatprep.subr.mxu0 0.0
      %3395 = vmatpush1.msra.mxu0 %v3373
      %3396 = vmatprep.subr.mxu0 0.0
      %3397 = vmatpush1.msra.mxu0 %v3374
      %3398 = vmatprep.subr.mxu0 0.0
      %3399 = vmatpush1.msra.mxu0 %v3375
      %3400 = vmatprep.subr.mxu0 0.0
      %3401 = vmatpush1.msra.mxu0 0.0
      %3402 = vmatprep.subr.mxu0 0.0
      %3403 = vmatpush1.msra.mxu0 0.0
      %3404 = vmatprep.subr.mxu0 0.0
      %3405 = vmatpush1.msra.mxu0 0.0
      %3406 = vmatprep.subr.mxu0 0.0
      %3407 = vmatpush1.msra.mxu0 0.0
      %3408 = vmatprep.subr.mxu0 0.0
      %3409 = vmatpush1.msra.mxu0 0.0
      %3410 = vmatprep.subr.mxu0 0.0
      %3411 = vmatpush1.msra.mxu0 0.0
      %3412 = vmatprep.subr.mxu0 0.0
      %3413 = vmatpush1.msra.mxu0 0.0
      %3414 = vmatprep.subr.mxu0 0.0
      %3415 = vmatpush1.msra.mxu0 0.0
      %3416 = vmatprep.subr.mxu0 0.0
      %3417 = vmatpush1.msra.mxu0 0.0
      %3418 = vmatprep.subr.mxu0 0.0
      %3419 = vmatpush1.msra.mxu0 0.0
      %3420 = vmatprep.subr.mxu0 0.0
      %3421 = vmatpush1.msra.mxu0 0.0
      %3422 = vmatprep.subr.mxu0 0.0
      %3423 = vmatpush1.msra.mxu0 0.0
      %3424 = vmatprep.subr.mxu0 0.0
      %3425 = vmatpush1.msra.mxu0 0.0
      %3426 = vmatprep.subr.mxu0 0.0
      %3427 = vmatpush1.msra.mxu0 0.0
      %3428 = vmatprep.subr.mxu0 0.0
      %3429 = vmatpush1.msra.mxu0 0.0
      %3430 = vmatprep.subr.mxu0 0.0
      %3431 = vmatpush1.msra.mxu0 0.0
      %3432 = vmatprep.subr.mxu0 0.0
      %3433 = vmatpush1.msra.mxu0 0.0
      %3434 = vmatprep.subr.mxu0 0.0
      %3435 = vmatpush1.msra.mxu0 0.0
      %3436 = vmatprep.subr.mxu0 0.0
      %3437 = vmatpush1.msra.mxu0 0.0
      %3438 = vmatprep.subr.mxu0 0.0
      %3439 = vmatpush1.msra.mxu0 0.0
      %3440 = vmatprep.subr.mxu0 0.0
      %3441 = vmatpush1.msra.mxu0 0.0
      %3442 = vmatprep.subr.mxu0 0.0
      %3443 = vmatpush1.msra.mxu0 0.0
      %3444 = vmatprep.subr.mxu0 0.0
      %3445 = vmatpush1.msra.mxu0 0.0
      %3446 = vmatprep.subr.mxu0 0.0
      %3447 = vmatpush1.msra.mxu0 0.0
      %3448 = vmatprep.subr.mxu0 0.0
      %3449 = vmatpush1.msra.mxu0 0.0
      %3450 = vmatprep.subr.mxu0 0.0
      %3451 = vmatpush1.msra.mxu0 0.0
      %3452 = vmatprep.mubr.f32.mxu0 0.0
      %3453 = vmatmul.mubr.f32.gmra.mrb[0].mxu0 %v3377
      %v3454 = vpop.f32.mrb[0].mxu0
      %v3455 = vadd.f32 0.0, %v3454
      %v3456 = vpop.f32.mrb[0].mxu0
      %3457 = vmatprep.mubr.f32.mxu0 0.0
      %3458 = vmatmul.mubr.f32.gmra.mrb[0].mxu0 %v3380
      %v3459 = vpop.f32.mrb[0].mxu0
      %v3460 = vadd.f32 0.0, %v3459
      %v3461 = vpop.f32.mrb[0].mxu0
      %3462 = vmatprep.mubr.f32.mxu0 0.0
      %3463 = vmatmul.mubr.f32.gmra.mrb[0].mxu0 %v3383
      %v3464 = vpop.f32.mrb[0].mxu0
      %v3465 = vadd.f32 0.0, %v3464
      %v3466 = vpop.f32.mrb[0].mxu0
      %3467 = vmatprep.mubr.f32.mxu0 0.0
      %3468 = vmatmul.mubr.f32.gmra.mrb[0].mxu0 %v3386
      %v3469 = vpop.f32.mrb[0].mxu0
      %v3470 = vadd.f32 0.0, %v3469
      %v3471 = vpop.f32.mrb[0].mxu0
      %3472 = vdwg.mxu0
      %v3473 = vadd.f32 %v3347, %v3455
      %v3474 = vadd.f32 %v3352, %v3460
      %v3475 = vadd.f32 %v3357, %v3465
      %v3476 = vadd.f32 %v3362, %v3470
      %v3477 = vld [vmem:[%s11] sm:$0x1]
      %v3479 = vlaneseq
      %v3480 = vshrl.u32 %v3479, 7
      %v3481 = vsub.s32 0, %v3480
      %v3482 = vrot.slane %v3477, %v3481
      %v3484 = vadd.f32 %v3473, %v3482
      %v3485 = vadd.f32 %v3474, %v3482
      %v3486 = vadd.f32 %v3475, %v3482
      %v3487 = vadd.f32 %v3476, %v3482
      %v3488 = vmax.f32 %v3484, 0.0
      %v3489 = vmax.f32 %v3485, 0.0
      %v3490 = vmax.f32 %v3486, 0.0
      %v3491 = vmax.f32 %v3487, 0.0
      %3496 = vrot.lane.b32.xlu0 %v3488, 112
      %v3497 = vpop.permute.xlu0 %3496
      %3498 = vrot.lane.b32.xlu0 %v3489, 112
      %v3499 = vpop.permute.xlu0 %3498
      %3500 = vrot.lane.b32.xlu0 %v3490, 112
      %v3501 = vpop.permute.xlu0 %3500
      %3502 = vrot.lane.b32.xlu0 %v3491, 112
      %v3503 = vpop.permute.xlu0 %3502
      %v3508 = vmax.f32 %v3488, %v3497
      %v3509 = vmax.f32 %v3489, %v3499
      %v3510 = vmax.f32 %v3490, %v3501
      %v3511 = vmax.f32 %v3491, %v3503
      %v3512 = vld [vmem:[%s12] sm:$0x7f]
      %vm3513 = vcmask 211968
      %v3515 = vsel %vm3513, %v3512, 0
      %vm3517 = vcmask 1041408
      %v3519 = vsel %vm3517, %v3511, 0
      %3521 = vmatprep.subr.mxu0 0.0
      %3522 = vmatpush1.msra.mxu0 %v3508
      %3523 = vmatprep.subr.mxu0 0.0
      %3524 = vmatpush1.msra.mxu0 %v3509
      %3525 = vmatprep.subr.mxu0 0.0
      %3526 = vmatpush1.msra.mxu0 %v3510
      %3527 = vmatprep.subr.mxu0 0.0
      %3528 = vmatpush1.msra.mxu0 %v3519
      %3529 = vmatprep.subr.mxu0 0.0
      %3530 = vmatpush1.msra.mxu0 0.0
      %3531 = vmatprep.subr.mxu0 0.0
      %3532 = vmatpush1.msra.mxu0 0.0
      %3533 = vmatprep.subr.mxu0 0.0
      %3534 = vmatpush1.msra.mxu0 0.0
      %3535 = vmatprep.subr.mxu0 0.0
      %3536 = vmatpush1.msra.mxu0 0.0
      %3537 = vmatprep.subr.mxu0 0.0
      %3538 = vmatpush1.msra.mxu0 0.0
      %3539 = vmatprep.subr.mxu0 0.0
      %3540 = vmatpush1.msra.mxu0 0.0
      %3541 = vmatprep.subr.mxu0 0.0
      %3542 = vmatpush1.msra.mxu0 0.0
      %3543 = vmatprep.subr.mxu0 0.0
      %3544 = vmatpush1.msra.mxu0 0.0
      %3545 = vmatprep.subr.mxu0 0.0
      %3546 = vmatpush1.msra.mxu0 0.0
      %3547 = vmatprep.subr.mxu0 0.0
      %3548 = vmatpush1.msra.mxu0 0.0
      %3549 = vmatprep.subr.mxu0 0.0
      %3550 = vmatpush1.msra.mxu0 0.0
      %3551 = vmatprep.subr.mxu0 0.0
      %3552 = vmatpush1.msra.mxu0 0.0
      %3553 = vmatprep.subr.mxu0 0.0
      %3554 = vmatpush1.msra.mxu0 0.0
      %3555 = vmatprep.subr.mxu0 0.0
      %3556 = vmatpush1.msra.mxu0 0.0
      %3557 = vmatprep.subr.mxu0 0.0
      %3558 = vmatpush1.msra.mxu0 0.0
      %3559 = vmatprep.subr.mxu0 0.0
      %3560 = vmatpush1.msra.mxu0 0.0
      %3561 = vmatprep.subr.mxu0 0.0
      %3562 = vmatpush1.msra.mxu0 0.0
      %3563 = vmatprep.subr.mxu0 0.0
      %3564 = vmatpush1.msra.mxu0 0.0
      %3565 = vmatprep.subr.mxu0 0.0
      %3566 = vmatpush1.msra.mxu0 0.0
      %3567 = vmatprep.subr.mxu0 0.0
      %3568 = vmatpush1.msra.mxu0 0.0
      %3569 = vmatprep.subr.mxu0 0.0
      %3570 = vmatpush1.msra.mxu0 0.0
      %3571 = vmatprep.subr.mxu0 0.0
      %3572 = vmatpush1.msra.mxu0 0.0
      %3573 = vmatprep.subr.mxu0 0.0
      %3574 = vmatpush1.msra.mxu0 0.0
      %3575 = vmatprep.subr.mxu0 0.0
      %3576 = vmatpush1.msra.mxu0 0.0
      %3577 = vmatprep.subr.mxu0 0.0
      %3578 = vmatpush1.msra.mxu0 0.0
      %3579 = vmatprep.subr.mxu0 0.0
      %3580 = vmatpush1.msra.mxu0 0.0
      %3581 = vmatprep.subr.mxu0 0.0
      %3582 = vmatpush1.msra.mxu0 0.0
      %3583 = vmatprep.subr.mxu0 0.0
      %3584 = vmatpush1.msra.mxu0 0.0
      %3585 = vmatprep.mubr.f32.mxu0 0.0
      %3586 = vmatmul.mubr.f32.gmra.mrb[0].mxu0 %v3515
      %v3587 = vpop.f32.mrb[0].mxu0
      %v3588 = vadd.f32 0.0, %v3587
      %v3589 = vpop.f32.mrb[0].mxu0
      %3590 = vdwg.mxu0
      %s3591 = scalar_lea.vmem %s12, 8
      %v3592 = vld [vmem:[%s3591] sm:$0x7f]
      %v3594 = vsel %vm3513, %v3592, 0
      %3596 = vmatprep.subr.mxu0 0.0
      %3597 = vmatpush1.msra.mxu0 %v3508
      %3598 = vmatprep.subr.mxu0 0.0
      %3599 = vmatpush1.msra.mxu0 %v3509
      %3600 = vmatprep.subr.mxu0 0.0
      %3601 = vmatpush1.msra.mxu0 %v3510
      %3602 = vmatprep.subr.mxu0 0.0
      %3603 = vmatpush1.msra.mxu0 %v3519
      %3604 = vmatprep.subr.mxu0 0.0
      %3605 = vmatpush1.msra.mxu0 0.0
      %3606 = vmatprep.subr.mxu0 0.0
      %3607 = vmatpush1.msra.mxu0 0.0
      %3608 = vmatprep.subr.mxu0 0.0
      %3609 = vmatpush1.msra.mxu0 0.0
      %3610 = vmatprep.subr.mxu0 0.0
      %3611 = vmatpush1.msra.mxu0 0.0
      %3612 = vmatprep.subr.mxu0 0.0
      %3613 = vmatpush1.msra.mxu0 0.0
      %3614 = vmatprep.subr.mxu0 0.0
      %3615 = vmatpush1.msra.mxu0 0.0
      %3616 = vmatprep.subr.mxu0 0.0
      %3617 = vmatpush1.msra.mxu0 0.0
      %3618 = vmatprep.subr.mxu0 0.0
      %3619 = vmatpush1.msra.mxu0 0.0
      %3620 = vmatprep.subr.mxu0 0.0
      %3621 = vmatpush1.msra.mxu0 0.0
      %3622 = vmatprep.subr.mxu0 0.0
      %3623 = vmatpush1.msra.mxu0 0.0
      %3624 = vmatprep.subr.mxu0 0.0
      %3625 = vmatpush1.msra.mxu0 0.0
      %3626 = vmatprep.subr.mxu0 0.0
      %3627 = vmatpush1.msra.mxu0 0.0
      %3628 = vmatprep.subr.mxu0 0.0
      %3629 = vmatpush1.msra.mxu0 0.0
      %3630 = vmatprep.subr.mxu0 0.0
      %3631 = vmatpush1.msra.mxu0 0.0
      %3632 = vmatprep.subr.mxu0 0.0
      %3633 = vmatpush1.msra.mxu0 0.0
      %3634 = vmatprep.subr.mxu0 0.0
      %3635 = vmatpush1.msra.mxu0 0.0
      %3636 = vmatprep.subr.mxu0 0.0
      %3637 = vmatpush1.msra.mxu0 0.0
      %3638 = vmatprep.subr.mxu0 0.0
      %3639 = vmatpush1.msra.mxu0 0.0
      %3640 = vmatprep.subr.mxu0 0.0
      %3641 = vmatpush1.msra.mxu0 0.0
      %3642 = vmatprep.subr.mxu0 0.0
      %3643 = vmatpush1.msra.mxu0 0.0
      %3644 = vmatprep.subr.mxu0 0.0
      %3645 = vmatpush1.msra.mxu0 0.0
      %3646 = vmatprep.subr.mxu0 0.0
      %3647 = vmatpush1.msra.mxu0 0.0
      %3648 = vmatprep.subr.mxu0 0.0
      %3649 = vmatpush1.msra.mxu0 0.0
      %3650 = vmatprep.subr.mxu0 0.0
      %3651 = vmatpush1.msra.mxu0 0.0
      %3652 = vmatprep.subr.mxu0 0.0
      %3653 = vmatpush1.msra.mxu0 0.0
      %3654 = vmatprep.subr.mxu0 0.0
      %3655 = vmatpush1.msra.mxu0 0.0
      %3656 = vmatprep.subr.mxu0 0.0
      %3657 = vmatpush1.msra.mxu0 0.0
      %3658 = vmatprep.subr.mxu0 0.0
      %3659 = vmatpush1.msra.mxu0 0.0
      %3660 = vmatprep.mubr.f32.mxu0 0.0
      %3661 = vmatmul.mubr.f32.gmra.mrb[0].mxu0 %v3594
      %v3662 = vpop.f32.mrb[0].mxu0
      %v3663 = vadd.f32 0.0, %v3662
      %v3664 = vpop.f32.mrb[0].mxu0
      %3665 = vdwg.mxu0
      %v3666 = vmax.f32 %v3588, %v3663
      %v3667 = vld [vmem:[%s13] sm:$0xff]
      %v3668 = vld [vmem:[%s13 + $0x8] sm:$0xff]
      %v3669 = vld [vmem:[%s14] sm:$0x1]
      %v3671 = vlaneseq
      %v3672 = vshrl.u32 %v3671, 7
      %v3673 = vsub.s32 0, %v3672
      %v3674 = vrot.slane %v3669, %v3673
      %vm3676 = vcmask 130048
      %v3678 = vsel %vm3676, %v3666, 0
      %3680 = vmatprep.subr.mxu0 0.0
      %3681 = vmatpush1.msra.mxu0 %v3667
      %3682 = vmatprep.subr.mxu0 0.0
      %3683 = vmatpush1.msra.mxu0 %v3668
      %3684 = vmatprep.subr.mxu0 0.0
      %3685 = vmatpush1.msra.mxu0 0.0
      %3686 = vmatprep.subr.mxu0 0.0
      %3687 = vmatpush1.msra.mxu0 0.0
      %3688 = vmatprep.subr.mxu0 0.0
      %3689 = vmatpush1.msra.mxu0 0.0
      %3690 = vmatprep.subr.mxu0 0.0
      %3691 = vmatpush1.msra.mxu0 0.0
      %3692 = vmatprep.subr.mxu0 0.0
      %3693 = vmatpush1.msra.mxu0 0.0
      %3694 = vmatprep.subr.mxu0 0.0
      %3695 = vmatpush1.msra.mxu0 0.0
      %3696 = vmatprep.subr.mxu0 0.0
      %3697 = vmatpush1.msra.mxu0 0.0
      %3698 = vmatprep.subr.mxu0 0.0
      %3699 = vmatpush1.msra.mxu0 0.0
      %3700 = vmatprep.subr.mxu0 0.0
      %3701 = vmatpush1.msra.mxu0 0.0
      %3702 = vmatprep.subr.mxu0 0.0
      %3703 = vmatpush1.msra.mxu0 0.0
      %3704 = vmatprep.subr.mxu0 0.0
      %3705 = vmatpush1.msra.mxu0 0.0
      %3706 = vmatprep.subr.mxu0 0.0
      %3707 = vmatpush1.msra.mxu0 0.0
      %3708 = vmatprep.subr.mxu0 0.0
      %3709 = vmatpush1.msra.mxu0 0.0
      %3710 = vmatprep.subr.mxu0 0.0
      %3711 = vmatpush1.msra.mxu0 0.0
      %3712 = vmatprep.subr.mxu0 0.0
      %3713 = vmatpush1.msra.mxu0 0.0
      %3714 = vmatprep.subr.mxu0 0.0
      %3715 = vmatpush1.msra.mxu0 0.0
      %3716 = vmatprep.subr.mxu0 0.0
      %3717 = vmatpush1.msra.mxu0 0.0
      %3718 = vmatprep.subr.mxu0 0.0
      %3719 = vmatpush1.msra.mxu0 0.0
      %3720 = vmatprep.subr.mxu0 0.0
      %3721 = vmatpush1.msra.mxu0 0.0
      %3722 = vmatprep.subr.mxu0 0.0
      %3723 = vmatpush1.msra.mxu0 0.0
      %3724 = vmatprep.subr.mxu0 0.0
      %3725 = vmatpush1.msra.mxu0 0.0
      %3726 = vmatprep.subr.mxu0 0.0
      %3727 = vmatpush1.msra.mxu0 0.0
      %3728 = vmatprep.subr.mxu0 0.0
      %3729 = vmatpush1.msra.mxu0 0.0
      %3730 = vmatprep.subr.mxu0 0.0
      %3731 = vmatpush1.msra.mxu0 0.0
      %3732 = vmatprep.subr.mxu0 0.0
      %3733 = vmatpush1.msra.mxu0 0.0
      %3734 = vmatprep.subr.mxu0 0.0
      %3735 = vmatpush1.msra.mxu0 0.0
      %3736 = vmatprep.subr.mxu0 0.0
      %3737 = vmatpush1.msra.mxu0 0.0
      %3738 = vmatprep.subr.mxu0 0.0
      %3739 = vmatpush1.msra.mxu0 0.0
      %3740 = vmatprep.subr.mxu0 0.0
      %3741 = vmatpush1.msra.mxu0 0.0
      %3742 = vmatprep.subr.mxu0 0.0
      %3743 = vmatpush1.msra.mxu0 0.0
      %3744 = vmatprep.mubr.f32.mxu0 0.0
      %3745 = vmatmul.mubr.f32.gmra.mrb[0].mxu0 %v3678
      %v3746 = vpop.f32.mrb[0].mxu0
      %v3747 = vadd.f32 %v3674, %v3746
      %v3748 = vpop.f32.mrb[0].mxu0
      %3749 = vdwg.mxu0
      %v3750 = vmax.f32 %v3747, 0.0
      %v3751 = vld [vmem:[%s15] sm:$0xff]
      %v3752 = vld [vmem:[%s15 + $0x8] sm:$0xff]
      %v3753 = vld [vmem:[%s16] sm:$0x1]
      %v3755 = vlaneseq
      %v3756 = vshrl.u32 %v3755, 7
      %v3757 = vsub.s32 0, %v3756
      %v3758 = vrot.slane %v3753, %v3757
      %v3761 = vsel %vm3676, %v3750, 0
      %3763 = vmatprep.subr.mxu0 0.0
      %3764 = vmatpush1.msra.mxu0 %v3751
      %3765 = vmatprep.subr.mxu0 0.0
      %3766 = vmatpush1.msra.mxu0 %v3752
      %3767 = vmatprep.subr.mxu0 0.0
      %3768 = vmatpush1.msra.mxu0 0.0
      %3769 = vmatprep.subr.mxu0 0.0
      %3770 = vmatpush1.msra.mxu0 0.0
      %3771 = vmatprep.subr.mxu0 0.0
      %3772 = vmatpush1.msra.mxu0 0.0
      %3773 = vmatprep.subr.mxu0 0.0
      %3774 = vmatpush1.msra.mxu0 0.0
      %3775 = vmatprep.subr.mxu0 0.0
      %3776 = vmatpush1.msra.mxu0 0.0
      %3777 = vmatprep.subr.mxu0 0.0
      %3778 = vmatpush1.msra.mxu0 0.0
      %3779 = vmatprep.subr.mxu0 0.0
      %3780 = vmatpush1.msra.mxu0 0.0
      %3781 = vmatprep.subr.mxu0 0.0
      %3782 = vmatpush1.msra.mxu0 0.0
      %3783 = vmatprep.subr.mxu0 0.0
      %3784 = vmatpush1.msra.mxu0 0.0
      %3785 = vmatprep.subr.mxu0 0.0
      %3786 = vmatpush1.msra.mxu0 0.0
      %3787 = vmatprep.subr.mxu0 0.0
      %3788 = vmatpush1.msra.mxu0 0.0
      %3789 = vmatprep.subr.mxu0 0.0
      %3790 = vmatpush1.msra.mxu0 0.0
      %3791 = vmatprep.subr.mxu0 0.0
      %3792 = vmatpush1.msra.mxu0 0.0
      %3793 = vmatprep.subr.mxu0 0.0
      %3794 = vmatpush1.msra.mxu0 0.0
      %3795 = vmatprep.subr.mxu0 0.0
      %3796 = vmatpush1.msra.mxu0 0.0
      %3797 = vmatprep.subr.mxu0 0.0
      %3798 = vmatpush1.msra.mxu0 0.0
      %3799 = vmatprep.subr.mxu0 0.0
      %3800 = vmatpush1.msra.mxu0 0.0
      %3801 = vmatprep.subr.mxu0 0.0
      %3802 = vmatpush1.msra.mxu0 0.0
      %3803 = vmatprep.subr.mxu0 0.0
      %3804 = vmatpush1.msra.mxu0 0.0
      %3805 = vmatprep.subr.mxu0 0.0
      %3806 = vmatpush1.msra.mxu0 0.0
      %3807 = vmatprep.subr.mxu0 0.0
      %3808 = vmatpush1.msra.mxu0 0.0
      %3809 = vmatprep.subr.mxu0 0.0
      %3810 = vmatpush1.msra.mxu0 0.0
      %3811 = vmatprep.subr.mxu0 0.0
      %3812 = vmatpush1.msra.mxu0 0.0
      %3813 = vmatprep.subr.mxu0 0.0
      %3814 = vmatpush1.msra.mxu0 0.0
      %3815 = vmatprep.subr.mxu0 0.0
      %3816 = vmatpush1.msra.mxu0 0.0
      %3817 = vmatprep.subr.mxu0 0.0
      %3818 = vmatpush1.msra.mxu0 0.0
      %3819 = vmatprep.subr.mxu0 0.0
      %3820 = vmatpush1.msra.mxu0 0.0
      %3821 = vmatprep.subr.mxu0 0.0
      %3822 = vmatpush1.msra.mxu0 0.0
      %3823 = vmatprep.subr.mxu0 0.0
      %3824 = vmatpush1.msra.mxu0 0.0
      %3825 = vmatprep.subr.mxu0 0.0
      %3826 = vmatpush1.msra.mxu0 0.0
      %3827 = vmatprep.mubr.f32.mxu0 0.0
      %3828 = vmatmul.mubr.f32.gmra.mrb[0].mxu0 %v3761
      %v3829 = vpop.f32.mrb[0].mxu0
      %v3830 = vadd.f32 %v3758, %v3829
      %v3831 = vpop.f32.mrb[0].mxu0
      %3832 = vdwg.mxu0
      %v3833 = vmax.f32 %v3830, 0.0
      %v3834 = vld [vmem:[%s17] sm:$0xff]
      %v3835 = vld [vmem:[%s17 + $0x8] sm:$0xff]
      %v3836 = vld [vmem:[%s18] sm:$0x1]
      %v3838 = vlaneseq
      %v3839 = vshrl.u32 %v3838, 7
      %v3840 = vsub.s32 0, %v3839
      %v3841 = vrot.slane %v3836, %v3840
      %v3844 = vsel %vm3676, %v3833, 0
      %3846 = vmatprep.subr.mxu0 0.0
      %3847 = vmatpush1.msra.mxu0 %v3834
      %3848 = vmatprep.subr.mxu0 0.0
      %3849 = vmatpush1.msra.mxu0 %v3835
      %3850 = vmatprep.subr.mxu0 0.0
      %3851 = vmatpush1.msra.mxu0 0.0
      %3852 = vmatprep.subr.mxu0 0.0
      %3853 = vmatpush1.msra.mxu0 0.0
      %3854 = vmatprep.subr.mxu0 0.0
      %3855 = vmatpush1.msra.mxu0 0.0
      %3856 = vmatprep.subr.mxu0 0.0
      %3857 = vmatpush1.msra.mxu0 0.0
      %3858 = vmatprep.subr.mxu0 0.0
      %3859 = vmatpush1.msra.mxu0 0.0
      %3860 = vmatprep.subr.mxu0 0.0
      %3861 = vmatpush1.msra.mxu0 0.0
      %3862 = vmatprep.subr.mxu0 0.0
      %3863 = vmatpush1.msra.mxu0 0.0
      %3864 = vmatprep.subr.mxu0 0.0
      %3865 = vmatpush1.msra.mxu0 0.0
      %3866 = vmatprep.subr.mxu0 0.0
      %3867 = vmatpush1.msra.mxu0 0.0
      %3868 = vmatprep.subr.mxu0 0.0
      %3869 = vmatpush1.msra.mxu0 0.0
      %3870 = vmatprep.subr.mxu0 0.0
      %3871 = vmatpush1.msra.mxu0 0.0
      %3872 = vmatprep.subr.mxu0 0.0
      %3873 = vmatpush1.msra.mxu0 0.0
      %3874 = vmatprep.subr.mxu0 0.0
      %3875 = vmatpush1.msra.mxu0 0.0
      %3876 = vmatprep.subr.mxu0 0.0
      %3877 = vmatpush1.msra.mxu0 0.0
      %3878 = vmatprep.subr.mxu0 0.0
      %3879 = vmatpush1.msra.mxu0 0.0
      %3880 = vmatprep.subr.mxu0 0.0
      %3881 = vmatpush1.msra.mxu0 0.0
      %3882 = vmatprep.subr.mxu0 0.0
      %3883 = vmatpush1.msra.mxu0 0.0
      %3884 = vmatprep.subr.mxu0 0.0
      %3885 = vmatpush1.msra.mxu0 0.0
      %3886 = vmatprep.subr.mxu0 0.0
      %3887 = vmatpush1.msra.mxu0 0.0
      %3888 = vmatprep.subr.mxu0 0.0
      %3889 = vmatpush1.msra.mxu0 0.0
      %3890 = vmatprep.subr.mxu0 0.0
      %3891 = vmatpush1.msra.mxu0 0.0
      %3892 = vmatprep.subr.mxu0 0.0
      %3893 = vmatpush1.msra.mxu0 0.0
      %3894 = vmatprep.subr.mxu0 0.0
      %3895 = vmatpush1.msra.mxu0 0.0
      %3896 = vmatprep.subr.mxu0 0.0
      %3897 = vmatpush1.msra.mxu0 0.0
      %3898 = vmatprep.subr.mxu0 0.0
      %3899 = vmatpush1.msra.mxu0 0.0
      %3900 = vmatprep.subr.mxu0 0.0
      %3901 = vmatpush1.msra.mxu0 0.0
      %3902 = vmatprep.subr.mxu0 0.0
      %3903 = vmatpush1.msra.mxu0 0.0
      %3904 = vmatprep.subr.mxu0 0.0
      %3905 = vmatpush1.msra.mxu0 0.0
      %3906 = vmatprep.subr.mxu0 0.0
      %3907 = vmatpush1.msra.mxu0 0.0
      %3908 = vmatprep.subr.mxu0 0.0
      %3909 = vmatpush1.msra.mxu0 0.0
      %3910 = vmatprep.mubr.f32.mxu0 0.0
      %3911 = vmatmul.mubr.f32.gmra.mrb[0].mxu0 %v3844
      %v3912 = vpop.f32.mrb[0].mxu0
      %v3913 = vadd.f32 %v3841, %v3912
      %v3914 = vpop.f32.mrb[0].mxu0
      %3915 = vdwg.mxu0
      %3916 = vst [vmem:[%s600] sm:$0x7f] %v3913
      %p3917 = scmp.lt.s32.totalorder %s30, 1
      %s3918 = scalar_select %p3917, %s30, 1
      %s3919 = smul.addr %s3918, 8
      %s3920 = scalar_lea.vmem %s19, %s3919
      // Predicated region
      $region97: #{vgg_forward.1} parent=95 // pred_check
        %p3921 = pneg %p452
      $region98: #{vgg_forward.1} parent=95 // pred_check_branch
        %3923 = sbr.rel (%p3921) target = $region100
      $region99: #{vgg_forward.1} parent=95 // pred_region
        _
      $region100: #{vgg_forward.1} parent=95 // pred_fallthru
        _
    $region96: #{vgg_forward.1} parent=5 // pred_fallthru
      _
    %p3924 = scmp.le.s32.totalorder 2, %s25
    // Predicated region
    $region101: #{vgg_forward.1} parent=5 // pred_check
      %p3925 = pneg %p3924
    $region102: #{vgg_forward.1} parent=5 // pred_check_branch
      %3927 = sbr.rel (%p3925) target = $region104
    $region103: #{vgg_forward.1} parent=5 // pred_region
      %s3928 = ssub.s32 %s25, 2
      // Predicated region
      $region105: #{vgg_forward.1} parent=103 // pred_check
        %p3929 = pneg %p458
      $region106: #{vgg_forward.1} parent=103 // pred_check_branch
        %3931 = sbr.rel (%p3929) target = $region108
      $region107: #{vgg_forward.1} parent=103 // pred_region
        %p3932 = scmp.lt.s32.totalorder %s31, 1
        %s3933 = scalar_select %p3932, %s31, 1
        %s3934 = smul.addr %s3933, 8
        %s3935 = scalar_lea.vmem %s19, %s3934
      $region108: #{vgg_forward.1} parent=103 // pred_fallthru
        _
    $region104: #{vgg_forward.1} parent=5 // pred_fallthru
      _
  $region6: #{vgg_forward.1} parent=0 // loop_footer
    %s29 = sadd.s32 1, %s25
  $region7: #{vgg_forward.1} parent=0 // loop_footer_branch
    %24 = sbr.rel target = $region3
  $region8: #{vgg_forward.1} parent=0 // loop_exit
    _

</llo_original>
